<compile_context>
chip_gen: v5e
topology: v5e:2x2
jax: 0.10.0
libtpu: 0.0.40
codegen_flags: <defaults>
</compile_context>

<pallas_src>
from functools import partial

import jax
import jax.numpy as jnp
from jax.experimental import pallas as pl
from jax.experimental.pallas import tpu as pltpu


def _round_up(v, m):
    return (v + m - 1) // m * m


# ----------------------------------------------------------------------------
# Tiled matmul + bias (+ReLU) kernel  (bf16 MXU inputs, f32 accumulation)
# ----------------------------------------------------------------------------

def _matmul_bias_kernel(x_ref, w_ref, b_ref, o_ref, acc_ref, *, relu):
    @pl.when(pl.program_id(2) == 0)
    def _():
        acc_ref[...] = jnp.zeros_like(acc_ref)

    acc_ref[...] += jnp.dot(x_ref[...], w_ref[...],
                            preferred_element_type=jnp.float32)

    @pl.when(pl.program_id(2) == pl.num_programs(2) - 1)
    def _():
        out = acc_ref[...] + b_ref[...]
        if relu:
            out = jnp.maximum(out, 0.0)
        o_ref[...] = out.astype(o_ref.dtype)


def matmul_bias(x, w, b, relu=False, out_dtype=jnp.float32):
    """x:(M,K) @ w:(K,N) + b:(N,) -> (M,N), optional ReLU.

    All dims are zero-padded to 128 multiples (exact: zero K-padding, padded M/N
    rows/cols sliced off), tiles are lane-dense and sized well under v7x's 64 MiB
    VMEM.  Grid = (M, N, K) tiles with an f32 VMEM accumulator over the K axis.
    """
    M, K = x.shape
    K2, N = w.shape
    assert K == K2
    Mp, Kp, Np = _round_up(M, 128), _round_up(K, 128), _round_up(N, 128)
    tm = 256 if Mp % 256 == 0 else 128
    tn = 256 if Np % 256 == 0 else 128
    tk = 512 if Kp % 512 == 0 else (256 if Kp % 256 == 0 else 128)

    xp = jnp.pad(x.astype(jnp.bfloat16), ((0, Mp - M), (0, Kp - K)))
    wp = jnp.pad(w.astype(jnp.bfloat16), ((0, Kp - K), (0, Np - N)))
    bp = jnp.pad(b.astype(jnp.float32), (0, Np - N)).reshape(1, Np)

    out = pl.pallas_call(
        partial(_matmul_bias_kernel, relu=relu),
        out_shape=jax.ShapeDtypeStruct((Mp, Np), out_dtype),
        grid=(Mp // tm, Np // tn, Kp // tk),
        in_specs=[
            pl.BlockSpec((tm, tk), lambda i, j, k: (i, k)),
            pl.BlockSpec((tk, tn), lambda i, j, k: (k, j)),
            pl.BlockSpec((1, tn), lambda i, j, k: (0, j)),
        ],
        out_specs=pl.BlockSpec((tm, tn), lambda i, j, k: (i, j)),
        scratch_shapes=[pltpu.VMEM((tm, tn), jnp.float32)],
        compiler_params=pltpu.CompilerParams(
            dimension_semantics=("parallel", "parallel", "arbitrary")),
        cost_estimate=pl.CostEstimate(
            flops=2 * Mp * Np * Kp, transcendentals=0,
            bytes_accessed=int(xp.size) * 2 + int(wp.size) * 2 + Mp * Np * 4),
    )(xp, wp, bp)
    return out[:M, :N]


# ----------------------------------------------------------------------------
# Fused conv kernel (no HBM im2col): tap offsets sliced in VMEM, accumulated f32
# ----------------------------------------------------------------------------

def _conv_tap_kernel(x_ref, w_ref, b_ref, o_ref, *, kh, kw, Wp, relu):
    # x_ref: (1, Hp*Wp + extra, Cin) bf16 flattened padded image (zero tail rows)
    # w_ref: (kh*kw*Cin, Cout) bf16, tap-major rows; b_ref: (1, Cout) f32
    # o_ref: (1, Hp*Wp, Cout)
    P = o_ref.shape[1]
    cout = o_ref.shape[2]
    cin = w_ref.shape[0] // (kh * kw)
    acc = jnp.zeros((P, cout), jnp.float32)
    for ki in range(kh):
        for kj in range(kw):
            off = ki * Wp + kj
            patch = x_ref[0, off:off + P, :]                       # (P, Cin)
            w_tap = w_ref[(ki * kw + kj) * cin:(ki * kw + kj + 1) * cin, :]
            acc = acc + jnp.dot(patch, w_tap,
                                preferred_element_type=jnp.float32)
    out = acc + b_ref[...]
    if relu:
        out = jnp.maximum(out, 0.0)
    o_ref[0] = out.astype(o_ref.dtype)


def conv2d_fused(x_nhwc, w, b, kh, kw, stride, pad, relu):
    """NHWC conv via a single fused Pallas kernel (input read from HBM once).

    The padded image is flattened to (Hp*Wp, Cin); every (ki,kj) tap is then a
    contiguous row-slice of it, accumulated in-register.  Valid / strided output
    pixels are selected outside the kernel.
    """
    N, H, W, C = x_nhwc.shape
    Cout = w.shape[1]
    Cp = _round_up(C, 8)                       # sublane-friendly contraction dim
    if Cp != C:
        x_nhwc = jnp.pad(x_nhwc, ((0, 0), (0, 0), (0, 0), (0, Cp - C)))
        w = jnp.pad(w.reshape(kh * kw, C, Cout),
                    ((0, 0), (0, Cp - C), (0, 0))).reshape(kh * kw * Cp, Cout)

    Hp, Wp = H + 2 * pad, W + 2 * pad
    P = Hp * Wp
    extra = (kh - 1) * Wp + (kw - 1)

    xp = jnp.pad(x_nhwc.astype(jnp.bfloat16),
                 ((0, 0), (pad, pad), (pad, pad), (0, 0)))
    xf = jnp.pad(xp.reshape(N, P, Cp), ((0, 0), (0, extra), (0, 0)))
    wb = w.astype(jnp.bfloat16)
    bb = b.reshape(1, Cout).astype(jnp.float32)

    out_flat = pl.pallas_call(
        partial(_conv_tap_kernel, kh=kh, kw=kw, Wp=Wp, relu=relu),
        out_shape=jax.ShapeDtypeStruct((N, P, Cout), jnp.bfloat16),
        grid=(N,),                              # left/right images -> 2 parallel tiles
        in_specs=[
            pl.BlockSpec((1, P + extra, Cp), lambda n: (n, 0, 0)),
            pl.BlockSpec((kh * kw * Cp, Cout), lambda n: (0, 0)),
            pl.BlockSpec((1, Cout), lambda n: (0, 0)),
        ],
        out_specs=pl.BlockSpec((1, P, Cout), lambda n: (n, 0, 0)),
        compiler_params=pltpu.CompilerParams(dimension_semantics=("parallel",)),
        cost_estimate=pl.CostEstimate(
            flops=2 * N * P * kh * kw * Cp * Cout, transcendentals=0,
            bytes_accessed=int(xf.size) * 2 + int(wb.size) * 2 + N * P * Cout * 2),
    )(xf, wb, bb)

    Ho = (H + 2 * pad - kh) // stride + 1
    Wo = (W + 2 * pad - kw) // stride + 1
    out = out_flat.reshape(N, Hp, Wp, Cout)
    return out[:, 0:stride * Ho:stride, 0:stride * Wo:stride, :]


# ----------------------------------------------------------------------------
# Loss-reduction kernels (tiled, lane-dense, SMEM scalar accumulators)
# ----------------------------------------------------------------------------

def _disp_stats_kernel(pred_ref, tgt_ref, out_ref):
    @pl.when(pl.program_id(0) == 0)
    def _():
        out_ref[0] = jnp.float32(0.0)
        out_ref[1] = jnp.float32(0.0)
        out_ref[2] = jnp.float32(0.0)
    pred = pred_ref[...]
    tgt = tgt_ref[...]
    d = pred - tgt
    ad = jnp.abs(d)
    smooth = jnp.where(ad < 1.0, 0.5 * d * d, ad - 0.5)   # SmoothL1, beta=1
    mask = (tgt >= 0.0).astype(jnp.float32)               # matches targe.ge(0)
    out_ref[0] += jnp.sum(smooth * mask)
    out_ref[1] += jnp.sum(ad * mask)
    out_ref[2] += jnp.sum(mask)


def disp_stats(pred, tgt):
    pred = pred.reshape(-1).astype(jnp.float32)
    tgt = tgt.reshape(-1).astype(jnp.float32)
    n = pred.shape[0]
    rows_per_step = 8 if n < 64 * 128 else 64
    blk = rows_per_step * 128
    npad = _round_up(n, blk)
    pred = jnp.pad(pred, (0, npad - n))
    tgt = jnp.pad(tgt, (0, npad - n), constant_values=-1.0)   # padding is invalid
    pred2 = pred.reshape(npad // 128, 128)                    # lane-dense
    tgt2 = tgt.reshape(npad // 128, 128)
    return pl.pallas_call(
        _disp_stats_kernel,
        out_shape=jax.ShapeDtypeStruct((3,), jnp.float32),
        grid=(npad // blk,),
        in_specs=[pl.BlockSpec((rows_per_step, 128), lambda i: (i, 0))] * 2,
        out_specs=pl.BlockSpec((3,), lambda i: (0,),
                               memory_space=pltpu.MemorySpace.SMEM),
        compiler_params=pltpu.CompilerParams(dimension_semantics=("arbitrary",)),
    )(pred2, tgt2)


def _semseg_stats_kernel(logits_ref, labels_ref, out_ref, *, num_classes):
    # logits_ref: (C, rows, 128) f32 class-major; labels_ref: (rows, 128) i32
    @pl.when(pl.program_id(0) == 0)
    def _():
        out_ref[0] = jnp.float32(0.0)
        out_ref[1] = jnp.float32(0.0)
        out_ref[2] = jnp.float32(0.0)

    labels = labels_ref[...]
    lg = [logits_ref[c] for c in range(num_classes)]
    m = lg[0]
    for c in range(1, num_classes):
        m = jnp.maximum(m, lg[c])
    ssum = jnp.zeros_like(m)
    picked = jnp.zeros_like(m)
    pred = jnp.full(m.shape, num_classes, jnp.int32)
    for c in range(num_classes - 1, -1, -1):          # reverse: first argmax wins
        z_c = lg[c] - m
        ssum = ssum + jnp.exp(z_c)
        picked = jnp.where(labels == c, z_c, picked)
        pred = jnp.where(lg[c] >= m, jnp.int32(c), pred)
    logp = picked - jnp.log(ssum)                     # log_softmax at label class

    valid = jnp.logical_and(labels != 255, labels >= 0)
    validf = valid.astype(jnp.float32)
    correct = jnp.logical_and(pred == labels, valid).astype(jnp.float32)
    out_ref[0] += jnp.sum(-logp * validf)             # NLL sum
    out_ref[1] += jnp.sum(validf)                     # valid pixel count
    out_ref[2] += jnp.sum(correct)                    # correct count


def semseg_stats(logits_pc, labels_p, num_classes):
    P = logits_pc.shape[0]
    rows_per_step = 8 if P < 64 * 128 else 64
    blk = rows_per_step * 128
    Pp = _round_up(P, blk)
    lg = jnp.pad(logits_pc.astype(jnp.float32), ((0, Pp - P), (0, 0)))
    lb = jnp.pad(labels_p.astype(jnp.int32), (0, Pp - P), constant_values=255)
    lg_cm = jnp.transpose(lg).reshape(num_classes, Pp // 128, 128)  # class-major
    lb2 = lb.reshape(Pp // 128, 128)                                # lane-dense
    return pl.pallas_call(
        partial(_semseg_stats_kernel, num_classes=num_classes),
        out_shape=jax.ShapeDtypeStruct((3,), jnp.float32),
        grid=(Pp // blk,),
        in_specs=[
            pl.BlockSpec((num_classes, rows_per_step, 128), lambda i: (0, i, 0)),
            pl.BlockSpec((rows_per_step, 128), lambda i: (i, 0)),
        ],
        out_specs=pl.BlockSpec((3,), lambda i: (0,),
                               memory_space=pltpu.MemorySpace.SMEM),
        compiler_params=pltpu.CompilerParams(dimension_semantics=("arbitrary",)),
    )(lg_cm, lb2)


# ----------------------------------------------------------------------------
# Parameter init
# ----------------------------------------------------------------------------

def kaiming_uniform(key, shape, fan_in):
    bound = (6.0 / fan_in) ** 0.5
    return jax.random.uniform(key, shape, jnp.float32, -bound, bound)


def init_params(key, num_classes):
    ks = jax.random.split(key, 8)
    p = {}
    p["enc1_w"] = kaiming_uniform(ks[0], (3 * 3 * 3, 16), 3 * 3 * 3)
    p["enc1_b"] = jnp.zeros((16,), jnp.float32)
    p["enc2_w"] = kaiming_uniform(ks[1], (3 * 3 * 16, 32), 3 * 3 * 16)
    p["enc2_b"] = jnp.zeros((32,), jnp.float32)
    p["dec_w"] = kaiming_uniform(ks[2], (32, 32), 32)
    p["dec_b"] = jnp.zeros((32,), jnp.float32)
    p["disp0_w"] = kaiming_uniform(ks[3], (64, 1), 64)
    p["disp0_b"] = jnp.zeros((1,), jnp.float32)
    p["disp1_w"] = kaiming_uniform(ks[4], (64, 1), 64)
    p["disp1_b"] = jnp.zeros((1,), jnp.float32)
    p["sem0_w"] = kaiming_uniform(ks[5], (64, num_classes), 64)
    p["sem0_b"] = jnp.zeros((num_classes,), jnp.float32)
    p["sem1_w"] = kaiming_uniform(ks[6], (64, num_classes), 64)
    p["sem1_b"] = jnp.zeros((num_classes,), jnp.float32)
    return p


# ----------------------------------------------------------------------------
# Generalized_SEGDISP training-mode forward
# ----------------------------------------------------------------------------

CFG = {
    "TRAIN_IMS_PER_BATCH": 1,
    "NUM_CLASSES": 8,
    "DISP_DEEP_SUB_SCALE": (1.0, 0.7),
    "SEM_DEEP_SUB_SCALE": (1.0, 0.4),
}


def generalized_segdisp_forward(params, data_nchw, label_info):
    ims = CFG["TRAIN_IMS_PER_BATCH"]
    ncls = CFG["NUM_CLASSES"]
    data = jnp.transpose(data_nchw, (0, 2, 3, 1)).astype(jnp.float32)  # NHWC

    # ---------------- encoder (resFeature) ----------------
    # TODO(synk): representative stack; real encoder/decoder/MiniCSPN are external.
    f1 = conv2d_fused(data, params["enc1_w"], params["enc1_b"], 3, 3, 1, 1, True)
    res_feat = conv2d_fused(f1, params["enc2_w"], params["enc2_b"], 3, 3, 2, 1, True)

    # ---------------- decoder (asppFeature, 1x1) ----------------
    aspp = conv2d_fused(res_feat, params["dec_w"], params["dec_b"], 1, 1, 1, 0, True)

    # ---------------- minicspn (stereo heads) ----------------
    feat_c = jnp.concatenate([aspp[:ims], aspp[ims:]], axis=-1)        # (ims,8,8,64)
    Hc, Wc, Cf = feat_c.shape[1], feat_c.shape[2], feat_c.shape[3]
    rows_c = feat_c.reshape(ims * Hc * Wc, Cf)

    # Fuse all four 1x1 heads into ONE lane-dense matmul (N padded to 128 inside).
    # 1x1 heads commute with 2x nearest-neighbour upsampling, so the fine heads
    # run on the coarse grid and only their small outputs get upsampled (exact).
    w_heads = jnp.concatenate([params["disp0_w"], params["sem0_w"],
                               params["disp1_w"], params["sem1_w"]], axis=1)
    b_heads = jnp.concatenate([params["disp0_b"], params["sem0_b"],
                               params["disp1_b"], params["sem1_b"]])
    head = matmul_bias(rows_c, w_heads, b_heads)                       # (ims*Hc*Wc, 2+2C)

    disp_c = head[:, 0].reshape(ims, Hc, Wc)
    sem_c = head[:, 1:1 + ncls]                                        # (ims*Hc*Wc, C)
    disp_f = head[:, 1 + ncls].reshape(ims, Hc, Wc)
    sem_f = head[:, 2 + ncls:2 + 2 * ncls].reshape(ims, Hc, Wc, ncls)
    up2 = lambda t: jnp.repeat(jnp.repeat(t, 2, axis=1), 2, axis=2)
    disp_f = up2(disp_f)                                               # (ims,16,16)
    sem_f = up2(sem_f).reshape(ims * 2 * Hc * 2 * Wc, ncls)            # (ims*256, C)

    # ---------------- disparity losses (SmoothL1, sparse adaptive-max-pool) ----
    disp_label = label_info["disp_label_0"].astype(jnp.float32)        # (ims,16,16)
    Hf, Wf = disp_label.shape[1], disp_label.shape[2]
    tgt_c = jnp.max(disp_label.reshape(ims, Hc, Hf // Hc, Wc, Wf // Wc), axis=(2, 4))

    loss_disp = jnp.float32(0.0)
    pixel_epe = jnp.float32(0.0)
    for ids, (dp, tg) in enumerate(zip([disp_c, disp_f], [tgt_c, disp_label])):
        stats = disp_stats(dp, tg)
        cnt = jnp.maximum(stats[2], 1.0)       # guard all-invalid tiles (no NaN)
        loss_disp = loss_disp + CFG["DISP_DEEP_SUB_SCALE"][ids] * (stats[0] / cnt)
        pixel_epe = stats[1] / cnt             # last scale kept (matches reference)

    # ---------------- semseg losses (log_softmax + NLL, ignore_index=255) ------
    s_fine = semseg_stats(sem_f, label_info["semseg_0"].reshape(-1), ncls)
    s_coarse = semseg_stats(sem_c, label_info["semseg_1"].reshape(-1), ncls)
    loss_semseg = s_fine[0] / jnp.maximum(s_fine[1], 1.0) + \
        CFG["SEM_DEEP_SUB_SCALE"][1] * (s_coarse[0] / jnp.maximum(s_coarse[1], 1.0))
    accuracy_pixel = s_fine[2] / (s_fine[1] + 1e-10)

    return {
        "losses": {
            "loss_disp": loss_disp.reshape(1),
            "loss_semseg": loss_semseg.reshape(1),
        },
        "metrics": {
            "pixel_epe": pixel_epe.reshape(1),
            "accuracy_pixel": accuracy_pixel.reshape(1),
        },
        "disp_image": "",
        "semseg_image": "",
    }


# ----------------------------------------------------------------------------
# Driver
# ----------------------------------------------------------------------------

if __name__ == "__main__":
    key = jax.random.PRNGKey(0)
    k_par, k_dat, k_dsp, k_l0, k_l1, k_m0, k_m1, k_md = jax.random.split(key, 8)

    num_classes = CFG["NUM_CLASSES"]
    ims = CFG["TRAIN_IMS_PER_BATCH"]
    params = init_params(k_par, num_classes)

    # stacked [left; right] batch, NCHW
    data = jax.random.normal(k_dat, (2 * ims, 3, 16, 16), jnp.float32)

    # disparity ground truth with some invalid (<0) pixels
    disp_gt = jax.random.uniform(k_dsp, (ims, 16, 16), jnp.float32, 0.0, 48.0)
    disp_gt = jnp.where(jax.random.uniform(k_md, (ims, 16, 16)) < 0.15, -1.0, disp_gt)

    # semseg labels at two scales with some 255 (ignore) pixels
    lbl0 = jax.random.randint(k_l0, (ims, 16, 16), 0, num_classes, jnp.int32)
    lbl0 = jnp.where(jax.random.uniform(k_m0, (ims, 16, 16)) < 0.1, 255, lbl0)
    lbl1 = jax.random.randint(k_l1, (ims, 8, 8), 0, num_classes, jnp.int32)
    lbl1 = jnp.where(jax.random.uniform(k_m1, (ims, 8, 8)) < 0.1, 255, lbl1)

    label_info = {"disp_label_0": disp_gt, "semseg_0": lbl0, "semseg_1": lbl1}

    out = generalized_segdisp_forward(params, data, label_info)
    jax.block_until_ready(out["losses"]["loss_disp"])
    jax.block_until_ready(out["losses"]["loss_semseg"])
    jax.block_until_ready(out["metrics"]["pixel_epe"])
    jax.block_until_ready(out["metrics"]["accuracy_pixel"])
    print("KERNEL_OK")
</pallas_src>

<mosaic_0001>
module attributes {stable_mosaic.version = 11 : i64} {
  func.func @_conv_tap_kernel(%arg0: i32, %arg1: memref<1x362x8xbf16, #tpu.memory_space<vmem>>, %arg2: memref<72x16xbf16, #tpu.memory_space<vmem>>, %arg3: memref<1x16xf32, #tpu.memory_space<vmem>>, %arg4: memref<1x324x16xbf16, #tpu.memory_space<vmem>>) attributes {dimension_semantics = [#tpu.dimension_semantics<parallel>], iteration_bounds = array<i64: 2>, scalar_prefetch = 0 : i64, scratch_operands = 0 : i64, tpu.core_type = #tpu.core_type<tc>, window_params = [{transform_indices = @transform_0, window_bounds = array<i64: 1, 362, 8>}, {pipeline_mode = #tpu.pipeline_mode<synchronous>, transform_indices = @transform_1, window_bounds = array<i64: 72, 16>}, {pipeline_mode = #tpu.pipeline_mode<synchronous>, transform_indices = @transform_2, window_bounds = array<i64: 1, 16>}, {transform_indices = @transform_3, window_bounds = array<i64: 1, 324, 16>}]} {
    %cst = arith.constant 0.000000e+00 : f32
    %0 = vector.broadcast %cst : f32 to vector<324x16xf32>
    %c0 = arith.constant 0 : index
    %c0_0 = arith.constant 0 : index
    %c0_1 = arith.constant 0 : index
    %1 = vector.load %arg1[%c0, %c0_0, %c0_1] : memref<1x362x8xbf16, #tpu.memory_space<vmem>>, vector<1x324x8xbf16>
    %2 = vector.shape_cast %1 : vector<1x324x8xbf16> to vector<324x8xbf16>
    %c0_2 = arith.constant 0 : index
    %c0_3 = arith.constant 0 : index
    %3 = vector.load %arg2[%c0_2, %c0_3] : memref<72x16xbf16, #tpu.memory_space<vmem>>, vector<8x16xbf16>
    %cst_4 = arith.constant dense<0.000000e+00> : vector<324x16xf32>
    %4 = tpu.matmul %2, %3, %cst_4 {dimension_numbers = #tpu.dot_dimension_numbers<[1], [0], [0], [1], [0, 0, 1, 1], [], []>} : vector<324x8xbf16>, vector<8x16xbf16>, vector<324x16xf32> -> vector<324x16xf32>
    %5 = arith.addf %0, %4 : vector<324x16xf32>
    %c0_5 = arith.constant 0 : index
    %c1 = arith.constant 1 : index
    %c0_6 = arith.constant 0 : index
    %6 = vector.load %arg1[%c0_5, %c1, %c0_6] : memref<1x362x8xbf16, #tpu.memory_space<vmem>>, vector<1x324x8xbf16>
    %7 = vector.shape_cast %6 : vector<1x324x8xbf16> to vector<324x8xbf16>
    %c8 = arith.constant 8 : index
    %c0_7 = arith.constant 0 : index
    %8 = vector.load %arg2[%c8, %c0_7] : memref<72x16xbf16, #tpu.memory_space<vmem>>, vector<8x16xbf16>
    %cst_8 = arith.constant dense<0.000000e+00> : vector<324x16xf32>
    %9 = tpu.matmul %7, %8, %cst_8 {dimension_numbers = #tpu.dot_dimension_numbers<[1], [0], [0], [1], [0, 0, 1, 1], [], []>} : vector<324x8xbf16>, vector<8x16xbf16>, vector<324x16xf32> -> vector<324x16xf32>
    %10 = arith.addf %5, %9 : vector<324x16xf32>
    %c0_9 = arith.constant 0 : index
    %c2 = arith.constant 2 : index
    %c0_10 = arith.constant 0 : index
    %11 = vector.load %arg1[%c0_9, %c2, %c0_10] : memref<1x362x8xbf16, #tpu.memory_space<vmem>>, vector<1x324x8xbf16>
    %12 = vector.shape_cast %11 : vector<1x324x8xbf16> to vector<324x8xbf16>
    %c16 = arith.constant 16 : index
    %c0_11 = arith.constant 0 : index
    %13 = vector.load %arg2[%c16, %c0_11] : memref<72x16xbf16, #tpu.memory_space<vmem>>, vector<8x16xbf16>
    %cst_12 = arith.constant dense<0.000000e+00> : vector<324x16xf32>
    %14 = tpu.matmul %12, %13, %cst_12 {dimension_numbers = #tpu.dot_dimension_numbers<[1], [0], [0], [1], [0, 0, 1, 1], [], []>} : vector<324x8xbf16>, vector<8x16xbf16>, vector<324x16xf32> -> vector<324x16xf32>
    %15 = arith.addf %10, %14 : vector<324x16xf32>
    %c0_13 = arith.constant 0 : index
    %c18 = arith.constant 18 : index
    %c0_14 = arith.constant 0 : index
    %16 = vector.load %arg1[%c0_13, %c18, %c0_14] : memref<1x362x8xbf16, #tpu.memory_space<vmem>>, vector<1x324x8xbf16>
    %17 = vector.shape_cast %16 : vector<1x324x8xbf16> to vector<324x8xbf16>
    %c24 = arith.constant 24 : index
    %c0_15 = arith.constant 0 : index
    %18 = vector.load %arg2[%c24, %c0_15] : memref<72x16xbf16, #tpu.memory_space<vmem>>, vector<8x16xbf16>
    %cst_16 = arith.constant dense<0.000000e+00> : vector<324x16xf32>
    %19 = tpu.matmul %17, %18, %cst_16 {dimension_numbers = #tpu.dot_dimension_numbers<[1], [0], [0], [1], [0, 0, 1, 1], [], []>} : vector<324x8xbf16>, vector<8x16xbf16>, vector<324x16xf32> -> vector<324x16xf32>
    %20 = arith.addf %15, %19 : vector<324x16xf32>
    %c0_17 = arith.constant 0 : index
    %c19 = arith.constant 19 : index
    %c0_18 = arith.constant 0 : index
    %21 = vector.load %arg1[%c0_17, %c19, %c0_18] : memref<1x362x8xbf16, #tpu.memory_space<vmem>>, vector<1x324x8xbf16>
    %22 = vector.shape_cast %21 : vector<1x324x8xbf16> to vector<324x8xbf16>
    %c32 = arith.constant 32 : index
    %c0_19 = arith.constant 0 : index
    %23 = vector.load %arg2[%c32, %c0_19] : memref<72x16xbf16, #tpu.memory_space<vmem>>, vector<8x16xbf16>
    %cst_20 = arith.constant dense<0.000000e+00> : vector<324x16xf32>
    %24 = tpu.matmul %22, %23, %cst_20 {dimension_numbers = #tpu.dot_dimension_numbers<[1], [0], [0], [1], [0, 0, 1, 1], [], []>} : vector<324x8xbf16>, vector<8x16xbf16>, vector<324x16xf32> -> vector<324x16xf32>
    %25 = arith.addf %20, %24 : vector<324x16xf32>
    %c0_21 = arith.constant 0 : index
    %c20 = arith.constant 20 : index
    %c0_22 = arith.constant 0 : index
    %26 = vector.load %arg1[%c0_21, %c20, %c0_22] : memref<1x362x8xbf16, #tpu.memory_space<vmem>>, vector<1x324x8xbf16>
    %27 = vector.shape_cast %26 : vector<1x324x8xbf16> to vector<324x8xbf16>
    %c40 = arith.constant 40 : index
    %c0_23 = arith.constant 0 : index
    %28 = vector.load %arg2[%c40, %c0_23] : memref<72x16xbf16, #tpu.memory_space<vmem>>, vector<8x16xbf16>
    %cst_24 = arith.constant dense<0.000000e+00> : vector<324x16xf32>
    %29 = tpu.matmul %27, %28, %cst_24 {dimension_numbers = #tpu.dot_dimension_numbers<[1], [0], [0], [1], [0, 0, 1, 1], [], []>} : vector<324x8xbf16>, vector<8x16xbf16>, vector<324x16xf32> -> vector<324x16xf32>
    %30 = arith.addf %25, %29 : vector<324x16xf32>
    %c0_25 = arith.constant 0 : index
    %c36 = arith.constant 36 : index
    %c0_26 = arith.constant 0 : index
    %31 = vector.load %arg1[%c0_25, %c36, %c0_26] : memref<1x362x8xbf16, #tpu.memory_space<vmem>>, vector<1x324x8xbf16>
    %32 = vector.shape_cast %31 : vector<1x324x8xbf16> to vector<324x8xbf16>
    %c48 = arith.constant 48 : index
    %c0_27 = arith.constant 0 : index
    %33 = vector.load %arg2[%c48, %c0_27] : memref<72x16xbf16, #tpu.memory_space<vmem>>, vector<8x16xbf16>
    %cst_28 = arith.constant dense<0.000000e+00> : vector<324x16xf32>
    %34 = tpu.matmul %32, %33, %cst_28 {dimension_numbers = #tpu.dot_dimension_numbers<[1], [0], [0], [1], [0, 0, 1, 1], [], []>} : vector<324x8xbf16>, vector<8x16xbf16>, vector<324x16xf32> -> vector<324x16xf32>
    %35 = arith.addf %30, %34 : vector<324x16xf32>
    %c0_29 = arith.constant 0 : index
    %c37 = arith.constant 37 : index
    %c0_30 = arith.constant 0 : index
    %36 = vector.load %arg1[%c0_29, %c37, %c0_30] : memref<1x362x8xbf16, #tpu.memory_space<vmem>>, vector<1x324x8xbf16>
    %37 = vector.shape_cast %36 : vector<1x324x8xbf16> to vector<324x8xbf16>
    %c56 = arith.constant 56 : index
    %c0_31 = arith.constant 0 : index
    %38 = vector.load %arg2[%c56, %c0_31] : memref<72x16xbf16, #tpu.memory_space<vmem>>, vector<8x16xbf16>
    %cst_32 = arith.constant dense<0.000000e+00> : vector<324x16xf32>
    %39 = tpu.matmul %37, %38, %cst_32 {dimension_numbers = #tpu.dot_dimension_numbers<[1], [0], [0], [1], [0, 0, 1, 1], [], []>} : vector<324x8xbf16>, vector<8x16xbf16>, vector<324x16xf32> -> vector<324x16xf32>
    %40 = arith.addf %35, %39 : vector<324x16xf32>
    %c0_33 = arith.constant 0 : index
    %c38 = arith.constant 38 : index
    %c0_34 = arith.constant 0 : index
    %41 = vector.load %arg1[%c0_33, %c38, %c0_34] : memref<1x362x8xbf16, #tpu.memory_space<vmem>>, vector<1x324x8xbf16>
    %42 = vector.shape_cast %41 : vector<1x324x8xbf16> to vector<324x8xbf16>
    %c64 = arith.constant 64 : index
    %c0_35 = arith.constant 0 : index
    %43 = vector.load %arg2[%c64, %c0_35] : memref<72x16xbf16, #tpu.memory_space<vmem>>, vector<8x16xbf16>
    %cst_36 = arith.constant dense<0.000000e+00> : vector<324x16xf32>
    %44 = tpu.matmul %42, %43, %cst_36 {dimension_numbers = #tpu.dot_dimension_numbers<[1], [0], [0], [1], [0, 0, 1, 1], [], []>} : vector<324x8xbf16>, vector<8x16xbf16>, vector<324x16xf32> -> vector<324x16xf32>
    %45 = arith.addf %40, %44 : vector<324x16xf32>
    %c0_37 = arith.constant 0 : index
    %c0_38 = arith.constant 0 : index
    %46 = vector.load %arg3[%c0_37, %c0_38] : memref<1x16xf32, #tpu.memory_space<vmem>>, vector<1x16xf32>
    %47 = vector.broadcast %46 : vector<1x16xf32> to vector<324x16xf32>
    %48 = arith.addf %45, %47 : vector<324x16xf32>
    %cst_39 = arith.constant 0.000000e+00 : f32
    %49 = vector.broadcast %cst_39 : f32 to vector<324x16xf32>
    %50 = arith.maximumf %48, %49 : vector<324x16xf32>
    %51 = arith.truncf %50 : vector<324x16xf32> to vector<324x16xbf16>
    %c0_40 = arith.constant 0 : index
    %c0_41 = arith.constant 0 : index
    %c0_42 = arith.constant 0 : index
    %52 = vector.load %arg4[%c0_40, %c0_41, %c0_42] : memref<1x324x16xbf16, #tpu.memory_space<vmem>>, vector<1x324x16xbf16>
    %53 = vector.shape_cast %52 : vector<1x324x16xbf16> to vector<324x16xbf16>
    %54 = vector.shape_cast %51 : vector<324x16xbf16> to vector<1x324x16xbf16>
    tpu.vector_store %arg4[%c0_40, %c0_41, %c0_42], %54 {strides = array<i32>} : memref<1x324x16xbf16, #tpu.memory_space<vmem>>, vector<1x324x16xbf16>,
    return
  }
  func.func @transform_0(%arg0: i32) -> (i32, i32, i32) {
    %c0_i32 = arith.constant 0 : i32
    %c0_i32_0 = arith.constant 0 : i32
    %c0_i32_1 = arith.constant 0 : i32
    return %arg0, %c0_i32, %c0_i32_0 : i32, i32, i32
  }
  func.func @transform_1(%arg0: i32) -> (i32, i32) {
    %c0_i32 = arith.constant 0 : i32
    %c0_i32_0 = arith.constant 0 : i32
    %c0_i32_1 = arith.constant 0 : i32
    return %c0_i32, %c0_i32_0 : i32, i32
  }
  func.func @transform_2(%arg0: i32) -> (i32, i32) {
    %c0_i32 = arith.constant 0 : i32
    %c0_i32_0 = arith.constant 0 : i32
    %c0_i32_1 = arith.constant 0 : i32
    return %c0_i32, %c0_i32_0 : i32, i32
  }
  func.func @transform_3(%arg0: i32) -> (i32, i32, i32) {
    %c0_i32 = arith.constant 0 : i32
    %c0_i32_0 = arith.constant 0 : i32
    %c0_i32_1 = arith.constant 0 : i32
    return %arg0, %c0_i32, %c0_i32_0 : i32, i32, i32
  }
}

</mosaic_0001>

<llo_original>
// kernel: tpu_custom_call.1
$region0: #{tpu_custom_call.1}
  #allocation0 [shape = 'u32[]', space=smem, size = 0x4, offset = 0x4, fixed_abs, tag = 'smem constant byte address 0x4 - core index']
  #allocation1 [shape = 'u32[72,128]{1,0:T(1,128)}', space=vmem, size = 0x9000, scoped, tag = 'internal scratch']
  %s0 = inlined_call_operand.vmem [shape: bf16[2,362,8], index: 0, kind: input, shape index: {}]
  %s1 = inlined_call_operand.vmem [shape: bf16[72,16], index: 1, kind: input, shape index: {}]
  %s2 = inlined_call_operand.vmem [shape: f32[1,16], index: 2, kind: input, shape index: {}]
  %s3 = inlined_call_operand.vmem [shape: bf16[2,324,16], index: 3, kind: output, shape index: {}]
  %s4 = sld [smem:[#allocation0]]
  $region45: #{tpu_custom_call.1} parent=0
    _
  %s6 = ssub.s32 1, %s4
  %s7 = scalar_select 0, %s6, %s4
  loop: start=0, step=1, limit=4
  $region2: #{tpu_custom_call.1} parent=0 // loop_pre_header
    _
  $region3: #{tpu_custom_call.1} parent=0 // loop_header
    %s9 = sphi 0, %s13
    %p10 = scmp.ge.s32.totalorder %s9, 4
    %s19 = sphi 0, %s21
    %s22 = sphi 0, %s19
    %s23 = sphi 0, %s22
    %s39 = sphi 0, %s23
    %s43 = sphi 0, %s43
    %s45 = sphi 0, %s43
    %s46 = sphi 0, %s45
    %s60 = sphi 0, %s46
    %s64 = sphi 0, %s64
    %s66 = sphi 0, %s64
    %s67 = sphi 0, %s66
    %s81 = sphi 0, %s67
    %s87 = sphi 0, %s89
    %s90 = sphi 0, %s87
    %s91 = sphi 0, %s90
    %s107 = sphi 0, %s91
  $region4: #{tpu_custom_call.1} parent=0 // loop_header_branch
    %12 = sbr.rel (%p10) target = $region8
  $region5: #{tpu_custom_call.1} parent=0 // loop_body
    %s14 = ssub.s32 %s9, 1
    %s15 = ssub.s32 %s9, 2
    %s16 = sadd.s32 %s9, 1
    %s17 = ssub.s32 %s9, %s16
    %p18 = scmp.eq.s32.totalorder %s17, 0
    %s20 = sadd.s32 %s19, 1
    %s21 = scalar_select %p18, %s19, %s20
    %p24 = pneg %p18
    %p25 = scmp.eq.s32.totalorder %s9, 1
    %p26 = por %p24, %p25
    %p27 = scmp.ne.s32.totalorder %s19, %s22
    %p28 = scmp.eq.s32.totalorder %s9, 0
    %p29 = por %p27, %p28
    %p30 = scmp.ne.s32.totalorder %s19, %s22
    %p31 = scmp.eq.s32.totalorder %s14, 1
    %p32 = por %p30, %p31
    %p33 = scmp.ne.s32.totalorder %s22, %s23
    %p34 = scmp.eq.s32.totalorder %s14, 0
    %p35 = por %p33, %p34
    %p36 = scmp.ne.s32.totalorder %s22, %s23
    %p37 = scmp.eq.s32.totalorder %s15, 1
    %p38 = por %p36, %p37
    %p40 = scmp.ne.s32.totalorder %s23, %s39
    %p41 = scmp.eq.s32.totalorder %s15, 0
    %p42 = por %p40, %p41
    %s44 = sadd.s32 %s43, 1
    %p47 = scmp.eq.s32.totalorder %s9, 1
    %p48 = scmp.ne.s32.totalorder %s43, %s45
    %p49 = scmp.eq.s32.totalorder %s9, 0
    %p50 = por %p48, %p49
    %p51 = scmp.ne.s32.totalorder %s43, %s45
    %p52 = scmp.eq.s32.totalorder %s14, 1
    %p53 = por %p51, %p52
    %p54 = scmp.ne.s32.totalorder %s45, %s46
    %p55 = scmp.eq.s32.totalorder %s14, 0
    %p56 = por %p54, %p55
    %p57 = scmp.ne.s32.totalorder %s45, %s46
    %p58 = scmp.eq.s32.totalorder %s15, 1
    %p59 = por %p57, %p58
    %p61 = scmp.ne.s32.totalorder %s46, %s60
    %p62 = scmp.eq.s32.totalorder %s15, 0
    %p63 = por %p61, %p62
    %s65 = sadd.s32 %s64, 1
    %p68 = scmp.eq.s32.totalorder %s9, 1
    %p69 = scmp.ne.s32.totalorder %s64, %s66
    %p70 = scmp.eq.s32.totalorder %s9, 0
    %p71 = por %p69, %p70
    %p72 = scmp.ne.s32.totalorder %s64, %s66
    %p73 = scmp.eq.s32.totalorder %s14, 1
    %p74 = por %p72, %p73
    %p75 = scmp.ne.s32.totalorder %s66, %s67
    %p76 = scmp.eq.s32.totalorder %s14, 0
    %p77 = por %p75, %p76
    %p78 = scmp.ne.s32.totalorder %s66, %s67
    %p79 = scmp.eq.s32.totalorder %s15, 1
    %p80 = por %p78, %p79
    %p82 = scmp.ne.s32.totalorder %s67, %s81
    %p83 = scmp.eq.s32.totalorder %s15, 0
    %p84 = por %p82, %p83
    %s85 = ssub.s32 %s9, %s16
    %p86 = scmp.eq.s32.totalorder %s85, 0
    %s88 = sadd.s32 %s87, 1
    %s89 = scalar_select %p86, %s87, %s88
    %p92 = pneg %p86
    %p93 = scmp.eq.s32.totalorder %s9, 1
    %p94 = por %p92, %p93
    %p95 = scmp.ne.s32.totalorder %s87, %s90
    %p96 = scmp.eq.s32.totalorder %s9, 0
    %p97 = por %p95, %p96
    %p98 = scmp.ne.s32.totalorder %s87, %s90
    %p99 = scmp.eq.s32.totalorder %s14, 1
    %p100 = por %p98, %p99
    %p101 = scmp.ne.s32.totalorder %s90, %s91
    %p102 = scmp.eq.s32.totalorder %s14, 0
    %p103 = por %p101, %p102
    %p104 = scmp.ne.s32.totalorder %s90, %s91
    %p105 = scmp.eq.s32.totalorder %s15, 1
    %p106 = por %p104, %p105
    %p108 = scmp.ne.s32.totalorder %s91, %s107
    %p109 = scmp.eq.s32.totalorder %s15, 0
    %p110 = por %p108, %p109
    %p111 = scmp.le.s32.totalorder 1, %s9
    %p112 = scmp.lt.s32.totalorder %s9, 3
    %p113 = pnand %p111, %p112
    %p114 = pneg %p113
    // Predicated region
    $region9: #{tpu_custom_call.1} parent=5 // pred_check
      _
    $region10: #{tpu_custom_call.1} parent=5 // pred_check_branch
      %116 = sbr.rel (%p113) target = $region12
    $region11: #{tpu_custom_call.1} parent=5 // pred_region
      %s117 = ssub.s32 %s9, 1
      // Predicated region
      $region13: #{tpu_custom_call.1} parent=11 // pred_check
        %p118 = pneg %p56
      $region14: #{tpu_custom_call.1} parent=11 // pred_check_branch
        %120 = sbr.rel (%p118) target = $region16
      $region15: #{tpu_custom_call.1} parent=11 // pred_region
        _
      $region16: #{tpu_custom_call.1} parent=11 // pred_fallthru
        _
      // Predicated region
      $region17: #{tpu_custom_call.1} parent=11 // pred_check
        %p121 = pneg %p77
      $region18: #{tpu_custom_call.1} parent=11 // pred_check_branch
        %123 = sbr.rel (%p121) target = $region20
      $region19: #{tpu_custom_call.1} parent=11 // pred_region
        _
      $region20: #{tpu_custom_call.1} parent=11 // pred_fallthru
        _
    $region12: #{tpu_custom_call.1} parent=5 // pred_fallthru
      _
    %p124 = scmp.lt.s32.totalorder %s9, 2
    // Predicated region
    $region21: #{tpu_custom_call.1} parent=5 // pred_check
      %p125 = pneg %p124
    $region22: #{tpu_custom_call.1} parent=5 // pred_check_branch
      %127 = sbr.rel (%p125) target = $region24
    $region23: #{tpu_custom_call.1} parent=5 // pred_region
      // Predicated region
      $region25: #{tpu_custom_call.1} parent=23 // pred_check
        %p128 = pneg %p29
      $region26: #{tpu_custom_call.1} parent=23 // pred_check_branch
        %130 = sbr.rel (%p128) target = $region28
      $region27: #{tpu_custom_call.1} parent=23 // pred_region
        %p131 = scmp.lt.s32.totalorder %s9, 1
        %s132 = scalar_select %p131, %s9, 1
        %s133 = smul.addr %s132, 46
        %s134 = smul.addr %s133, 4
        %s135 = scalar_lea.vmem %s0, %s134
      $region28: #{tpu_custom_call.1} parent=23 // pred_fallthru
        _
    $region24: #{tpu_custom_call.1} parent=5 // pred_fallthru
      _
    %p136 = scmp.le.s32.totalorder 1, %s9
    %p137 = scmp.lt.s32.totalorder %s9, 3
    %p138 = pnand %p136, %p137
    %p139 = pneg %p138
    // Predicated region
    $region29: #{tpu_custom_call.1} parent=5 // pred_check
      _
    $region30: #{tpu_custom_call.1} parent=5 // pred_check_branch
      %141 = sbr.rel (%p138) target = $region32
    $region31: #{tpu_custom_call.1} parent=5 // pred_region
      %s142 = ssub.s32 %s9, 1
      %p143 = scmp.lt.s32.totalorder %s14, 1
      %s144 = scalar_select %p143, %s14, 1
      %s145 = smul.addr %s144, 46
      %s146 = smul.addr %s145, 4
      %s147 = scalar_lea.vmem %s0, %s146
      %p148 = pneg %p35
      %p149 = pneg %p32
      %p150 = pneg %p56
      %p151 = pneg %p53
      %p152 = pneg %p77
      %p153 = pneg %p74
      %p154 = pneg %p103
      %p155 = pneg %p100
      %p156 = scmp.lt.s32.totalorder %s14, 1
      %s157 = scalar_select %p156, %s14, 1
      %s158 = smul.addr %s157, 41
      %s159 = smul.addr %s158, 4
      %s160 = scalar_lea.vmem %s3, %s159
      %p161 = scmp.lt.s32.totalorder %s14, 1
      %s162 = scalar_select %p161, %s14, 1
      %s163 = smul.addr %s162, 46
      %s164 = smul.addr %s163, 4
      %s165 = scalar_lea.vmem %s0, %s164
      %p166 = scmp.lt.s32.totalorder %s14, 1
      %s167 = scalar_select %p166, %s14, 1
      %s168 = smul.addr %s167, 41
      %s169 = smul.addr %s168, 4
      %s170 = scalar_lea.vmem %s3, %s169
      %v172 = vld [vmem:[%s165] sm:$0xf]
      %v173 = vld [vmem:[%s165 + $0x4] sm:$0xf]
      %v174 = vld [vmem:[%s165 + $0x8] sm:$0xf]
      %v175 = vld [vmem:[%s165 + $0xc] sm:$0xf]
      %v176 = vld [vmem:[%s165 + $0x10] sm:$0xf]
      %v177 = vld [vmem:[%s165 + $0x14] sm:$0xf]
      %v178 = vld [vmem:[%s165 + $0x18] sm:$0xf]
      %v179 = vld [vmem:[%s165 + $0x1c] sm:$0xf]
      %v180 = vld [vmem:[%s165 + $0x20] sm:$0xf]
      %v181 = vld [vmem:[%s165 + $0x24] sm:$0xf]
      %v182 = vld [vmem:[%s165 + $0x28] sm:$0xf]
      %v183 = vld [vmem:[%s165 + $0x2c] sm:$0xf]
      %v184 = vld [vmem:[%s165 + $0x30] sm:$0xf]
      %v185 = vld [vmem:[%s165 + $0x34] sm:$0xf]
      %v186 = vld [vmem:[%s165 + $0x38] sm:$0xf]
      %v187 = vld [vmem:[%s165 + $0x3c] sm:$0xf]
      %v188 = vld [vmem:[%s165 + $0x40] sm:$0xf]
      %v189 = vld [vmem:[%s165 + $0x44] sm:$0xf]
      %v190 = vld [vmem:[%s165 + $0x48] sm:$0xf]
      %v191 = vld [vmem:[%s165 + $0x4c] sm:$0xf]
      %v192 = vld [vmem:[%s165 + $0x50] sm:$0xf]
      %v193 = vld [vmem:[%s165 + $0x54] sm:$0xf]
      %v194 = vld [vmem:[%s165 + $0x58] sm:$0xf]
      %v195 = vld [vmem:[%s165 + $0x5c] sm:$0xf]
      %v196 = vld [vmem:[%s165 + $0x60] sm:$0xf]
      %v197 = vld [vmem:[%s165 + $0x64] sm:$0xf]
      %v198 = vld [vmem:[%s165 + $0x68] sm:$0xf]
      %v199 = vld [vmem:[%s165 + $0x6c] sm:$0xf]
      %v200 = vld [vmem:[%s165 + $0x70] sm:$0xf]
      %v201 = vld [vmem:[%s165 + $0x74] sm:$0xf]
      %v202 = vld [vmem:[%s165 + $0x78] sm:$0xf]
      %v203 = vld [vmem:[%s165 + $0x7c] sm:$0xf]
      %v204 = vld [vmem:[%s165 + $0x80] sm:$0xf]
      %v205 = vld [vmem:[%s165 + $0x84] sm:$0xf]
      %v206 = vld [vmem:[%s165 + $0x88] sm:$0xf]
      %v207 = vld [vmem:[%s165 + $0x8c] sm:$0xf]
      %v208 = vld [vmem:[%s165 + $0x90] sm:$0xf]
      %v209 = vld [vmem:[%s165 + $0x94] sm:$0xf]
      %v210 = vld [vmem:[%s165 + $0x98] sm:$0xf]
      %v211 = vld [vmem:[%s165 + $0x9c] sm:$0xf]
      %v212 = vld [vmem:[%s165 + $0xa0] sm:$0x3]
      %v213 = vld [vmem:[%s1] sm:$0xf]
      %v214 = vld [vmem:[%s165 + $0xa0] sm:$0x7]
      %v215 = vld [vmem:[%s1 + $0x4] sm:$0xf]
      %v257 = vunpack.c.l.b16 %v172
      %v258 = vunpack.c.l.b16 %v173
      %v259 = vunpack.c.l.b16 %v174
      %v260 = vunpack.c.l.b16 %v175
      %v261 = vunpack.c.l.b16 %v176
      %v262 = vunpack.c.l.b16 %v177
      %v263 = vunpack.c.l.b16 %v178
      %v264 = vunpack.c.l.b16 %v179
      %v265 = vunpack.c.l.b16 %v180
      %v266 = vunpack.c.l.b16 %v181
      %v267 = vunpack.c.l.b16 %v182
      %v268 = vunpack.c.l.b16 %v183
      %v269 = vunpack.c.l.b16 %v184
      %v270 = vunpack.c.l.b16 %v185
      %v271 = vunpack.c.l.b16 %v186
      %v272 = vunpack.c.l.b16 %v187
      %v273 = vunpack.c.l.b16 %v188
      %v274 = vunpack.c.l.b16 %v189
      %v275 = vunpack.c.l.b16 %v190
      %v276 = vunpack.c.l.b16 %v191
      %v277 = vunpack.c.l.b16 %v192
      %v278 = vunpack.c.l.b16 %v193
      %v279 = vunpack.c.l.b16 %v194
      %v280 = vunpack.c.l.b16 %v195
      %v281 = vunpack.c.l.b16 %v196
      %v282 = vunpack.c.l.b16 %v197
      %v283 = vunpack.c.l.b16 %v198
      %v284 = vunpack.c.l.b16 %v199
      %v285 = vunpack.c.l.b16 %v200
      %v286 = vunpack.c.l.b16 %v201
      %v287 = vunpack.c.l.b16 %v202
      %v288 = vunpack.c.l.b16 %v203
      %v289 = vunpack.c.l.b16 %v204
      %v290 = vunpack.c.l.b16 %v205
      %v291 = vunpack.c.l.b16 %v206
      %v292 = vunpack.c.l.b16 %v207
      %v293 = vunpack.c.l.b16 %v208
      %v294 = vunpack.c.l.b16 %v209
      %v295 = vunpack.c.l.b16 %v210
      %v296 = vunpack.c.l.b16 %v211
      %v297 = vunpack.c.l.b16 %v214
      %v298 = vpack.c.b16 %v258, %v257
      %v299 = vpack.c.b16 %v260, %v259
      %v300 = vpack.c.b16 %v262, %v261
      %v301 = vpack.c.b16 %v264, %v263
      %v302 = vpack.c.b16 %v266, %v265
      %v303 = vpack.c.b16 %v268, %v267
      %v304 = vpack.c.b16 %v270, %v269
      %v305 = vpack.c.b16 %v272, %v271
      %v306 = vpack.c.b16 %v274, %v273
      %v307 = vpack.c.b16 %v276, %v275
      %v308 = vpack.c.b16 %v278, %v277
      %v309 = vpack.c.b16 %v280, %v279
      %v310 = vpack.c.b16 %v282, %v281
      %v311 = vpack.c.b16 %v284, %v283
      %v312 = vpack.c.b16 %v286, %v285
      %v313 = vpack.c.b16 %v288, %v287
      %v314 = vpack.c.b16 %v290, %v289
      %v315 = vpack.c.b16 %v292, %v291
      %v316 = vpack.c.b16 %v294, %v293
      %v317 = vpack.c.b16 %v296, %v295
      %v318 = vpack.c.b16 %v297, %v297
      %vm319 = vsmask.f32 7424
      %v321 = vshrl.u32 %v298, 16
      %v323 = vshll.u32 %v298, 16
      %v325 = vrot.slane %v323, 1
      %v326 = vor.u32 %v321, %v325
      %v328 = vshll.u32 %v299, 16
      %v330 = vrot.slane %v328, 1
      %v331 = vsel %vm319, %v326, %v330
      %v332 = vshrl.u32 %v299, 16
      %v334 = vor.u32 %v332, %v330
      %v336 = vshll.u32 %v300, 16
      %v338 = vrot.slane %v336, 1
      %v339 = vsel %vm319, %v334, %v338
      %v340 = vshrl.u32 %v300, 16
      %v342 = vor.u32 %v340, %v338
      %v344 = vshll.u32 %v301, 16
      %v346 = vrot.slane %v344, 1
      %v347 = vsel %vm319, %v342, %v346
      %v348 = vshrl.u32 %v301, 16
      %v350 = vor.u32 %v348, %v346
      %v352 = vshll.u32 %v302, 16
      %v354 = vrot.slane %v352, 1
      %v355 = vsel %vm319, %v350, %v354
      %v356 = vshrl.u32 %v302, 16
      %v358 = vor.u32 %v356, %v354
      %v360 = vshll.u32 %v303, 16
      %v362 = vrot.slane %v360, 1
      %v363 = vsel %vm319, %v358, %v362
      %v364 = vshrl.u32 %v303, 16
      %v366 = vor.u32 %v364, %v362
      %v368 = vshll.u32 %v304, 16
      %v370 = vrot.slane %v368, 1
      %v371 = vsel %vm319, %v366, %v370
      %v372 = vshrl.u32 %v304, 16
      %v374 = vor.u32 %v372, %v370
      %v376 = vshll.u32 %v305, 16
      %v378 = vrot.slane %v376, 1
      %v379 = vsel %vm319, %v374, %v378
      %v380 = vshrl.u32 %v305, 16
      %v382 = vor.u32 %v380, %v378
      %v384 = vshll.u32 %v306, 16
      %v386 = vrot.slane %v384, 1
      %v387 = vsel %vm319, %v382, %v386
      %v388 = vshrl.u32 %v306, 16
      %v390 = vor.u32 %v388, %v386
      %v392 = vshll.u32 %v307, 16
      %v394 = vrot.slane %v392, 1
      %v395 = vsel %vm319, %v390, %v394
      %v396 = vshrl.u32 %v307, 16
      %v398 = vor.u32 %v396, %v394
      %v400 = vshll.u32 %v308, 16
      %v402 = vrot.slane %v400, 1
      %v403 = vsel %vm319, %v398, %v402
      %v404 = vshrl.u32 %v308, 16
      %v406 = vor.u32 %v404, %v402
      %v408 = vshll.u32 %v309, 16
      %v410 = vrot.slane %v408, 1
      %v411 = vsel %vm319, %v406, %v410
      %v412 = vshrl.u32 %v309, 16
      %v414 = vor.u32 %v412, %v410
      %v416 = vshll.u32 %v310, 16
      %v418 = vrot.slane %v416, 1
      %v419 = vsel %vm319, %v414, %v418
      %v420 = vshrl.u32 %v310, 16
      %v422 = vor.u32 %v420, %v418
      %v424 = vshll.u32 %v311, 16
      %v426 = vrot.slane %v424, 1
      %v427 = vsel %vm319, %v422, %v426
      %v428 = vshrl.u32 %v311, 16
      %v430 = vor.u32 %v428, %v426
      %v432 = vshll.u32 %v312, 16
      %v434 = vrot.slane %v432, 1
      %v435 = vsel %vm319, %v430, %v434
      %v436 = vshrl.u32 %v312, 16
      %v438 = vor.u32 %v436, %v434
      %v440 = vshll.u32 %v313, 16
      %v442 = vrot.slane %v440, 1
      %v443 = vsel %vm319, %v438, %v442
      %v444 = vshrl.u32 %v313, 16
      %v446 = vor.u32 %v444, %v442
      %v448 = vshll.u32 %v314, 16
      %v450 = vrot.slane %v448, 1
      %v451 = vsel %vm319, %v446, %v450
      %v452 = vshrl.u32 %v314, 16
      %v454 = vor.u32 %v452, %v450
      %v456 = vshll.u32 %v315, 16
      %v458 = vrot.slane %v456, 1
      %v459 = vsel %vm319, %v454, %v458
      %v460 = vshrl.u32 %v315, 16
      %v462 = vor.u32 %v460, %v458
      %v464 = vshll.u32 %v316, 16
      %v466 = vrot.slane %v464, 1
      %v467 = vsel %vm319, %v462, %v466
      %v468 = vshrl.u32 %v316, 16
      %v470 = vor.u32 %v468, %v466
      %v472 = vshll.u32 %v317, 16
      %v474 = vrot.slane %v472, 1
      %v475 = vsel %vm319, %v470, %v474
      %v476 = vshrl.u32 %v317, 16
      %v478 = vor.u32 %v476, %v474
      %v480 = vshll.u32 %v318, 16
      %v482 = vrot.slane %v480, 1
      %v483 = vsel %vm319, %v478, %v482
      %v484 = vshrl.u32 %v318, 16
      %v486 = vor.u32 %v484, %v482
      %vm487 = vcmask 64512
      %v489 = vsel %vm487, %v331, 0
      %v492 = vsel %vm487, %v339, 0
      %v495 = vsel %vm487, %v347, 0
      %v498 = vsel %vm487, %v355, 0
      %v501 = vsel %vm487, %v363, 0
      %v504 = vsel %vm487, %v371, 0
      %v507 = vsel %vm487, %v379, 0
      %v510 = vsel %vm487, %v387, 0
      %v513 = vsel %vm487, %v395, 0
      %v516 = vsel %vm487, %v403, 0
      %v519 = vsel %vm487, %v411, 0
      %v522 = vsel %vm487, %v419, 0
      %v525 = vsel %vm487, %v427, 0
      %v528 = vsel %vm487, %v435, 0
      %v531 = vsel %vm487, %v443, 0
      %v534 = vsel %vm487, %v451, 0
      %v537 = vsel %vm487, %v459, 0
      %v540 = vsel %vm487, %v467, 0
      %v543 = vsel %vm487, %v475, 0
      %v546 = vsel %vm487, %v483, 0
      %v549 = vsel %vm487, %v486, 0
      %vm551 = vcmask 1043456
      %v553 = vsel %vm551, %v215, 0
      %555 = vmatpush.bf16.msra.mxu0 0
      %556 = vmatpush.bf16.msra.mxu0 0
      %557 = vmatpush.bf16.msra.mxu0 0
      %558 = vmatpush.bf16.msra.mxu0 0
      %559 = vmatpush.bf16.msra.mxu0 0
      %560 = vmatpush.bf16.msra.mxu0 0
      %561 = vmatpush.bf16.msra.mxu0 0
      %562 = vmatpush.bf16.msra.mxu0 %v553
      %563 = vmatmul.bf16.gmra.mxu0 %v489
      %v564 = vpop.f32.mrf.mxu0
      %v565 = vadd.f32 0.0, %v564
      %v566 = vpop.f32.mrf.mxu0
      %v567 = vadd.f32 0.0, %v566
      %568 = vmatmul.bf16.gmra.mxu0 %v492
      %v569 = vpop.f32.mrf.mxu0
      %v570 = vadd.f32 0.0, %v569
      %v571 = vpop.f32.mrf.mxu0
      %v572 = vadd.f32 0.0, %v571
      %573 = vmatmul.bf16.gmra.mxu0 %v495
      %v574 = vpop.f32.mrf.mxu0
      %v575 = vadd.f32 0.0, %v574
      %v576 = vpop.f32.mrf.mxu0
      %v577 = vadd.f32 0.0, %v576
      %578 = vmatmul.bf16.gmra.mxu0 %v498
      %v579 = vpop.f32.mrf.mxu0
      %v580 = vadd.f32 0.0, %v579
      %v581 = vpop.f32.mrf.mxu0
      %v582 = vadd.f32 0.0, %v581
      %583 = vmatmul.bf16.gmra.mxu0 %v501
      %v584 = vpop.f32.mrf.mxu0
      %v585 = vadd.f32 0.0, %v584
      %v586 = vpop.f32.mrf.mxu0
      %v587 = vadd.f32 0.0, %v586
      %588 = vmatmul.bf16.gmra.mxu0 %v504
      %v589 = vpop.f32.mrf.mxu0
      %v590 = vadd.f32 0.0, %v589
      %v591 = vpop.f32.mrf.mxu0
      %v592 = vadd.f32 0.0, %v591
      %593 = vmatmul.bf16.gmra.mxu0 %v507
      %v594 = vpop.f32.mrf.mxu0
      %v595 = vadd.f32 0.0, %v594
      %v596 = vpop.f32.mrf.mxu0
      %v597 = vadd.f32 0.0, %v596
      %598 = vmatmul.bf16.gmra.mxu0 %v510
      %v599 = vpop.f32.mrf.mxu0
      %v600 = vadd.f32 0.0, %v599
      %v601 = vpop.f32.mrf.mxu0
      %v602 = vadd.f32 0.0, %v601
      %603 = vmatmul.bf16.gmra.mxu0 %v513
      %v604 = vpop.f32.mrf.mxu0
      %v605 = vadd.f32 0.0, %v604
      %v606 = vpop.f32.mrf.mxu0
      %v607 = vadd.f32 0.0, %v606
      %608 = vmatmul.bf16.gmra.mxu0 %v516
      %v609 = vpop.f32.mrf.mxu0
      %v610 = vadd.f32 0.0, %v609
      %v611 = vpop.f32.mrf.mxu0
      %v612 = vadd.f32 0.0, %v611
      %613 = vmatmul.bf16.gmra.mxu0 %v519
      %v614 = vpop.f32.mrf.mxu0
      %v615 = vadd.f32 0.0, %v614
      %v616 = vpop.f32.mrf.mxu0
      %v617 = vadd.f32 0.0, %v616
      %618 = vmatmul.bf16.gmra.mxu0 %v522
      %v619 = vpop.f32.mrf.mxu0
      %v620 = vadd.f32 0.0, %v619
      %v621 = vpop.f32.mrf.mxu0
      %v622 = vadd.f32 0.0, %v621
      %623 = vmatmul.bf16.gmra.mxu0 %v525
      %v624 = vpop.f32.mrf.mxu0
      %v625 = vadd.f32 0.0, %v624
      %v626 = vpop.f32.mrf.mxu0
      %v627 = vadd.f32 0.0, %v626
      %628 = vmatmul.bf16.gmra.mxu0 %v528
      %v629 = vpop.f32.mrf.mxu0
      %v630 = vadd.f32 0.0, %v629
      %v631 = vpop.f32.mrf.mxu0
      %v632 = vadd.f32 0.0, %v631
      %633 = vmatmul.bf16.gmra.mxu0 %v531
      %v634 = vpop.f32.mrf.mxu0
      %v635 = vadd.f32 0.0, %v634
      %v636 = vpop.f32.mrf.mxu0
      %v637 = vadd.f32 0.0, %v636
      %638 = vmatmul.bf16.gmra.mxu0 %v534
      %v639 = vpop.f32.mrf.mxu0
      %v640 = vadd.f32 0.0, %v639
      %v641 = vpop.f32.mrf.mxu0
      %v642 = vadd.f32 0.0, %v641
      %643 = vmatmul.bf16.gmra.mxu0 %v537
      %v644 = vpop.f32.mrf.mxu0
      %v645 = vadd.f32 0.0, %v644
      %v646 = vpop.f32.mrf.mxu0
      %v647 = vadd.f32 0.0, %v646
      %648 = vmatmul.bf16.gmra.mxu0 %v540
      %v649 = vpop.f32.mrf.mxu0
      %v650 = vadd.f32 0.0, %v649
      %v651 = vpop.f32.mrf.mxu0
      %v652 = vadd.f32 0.0, %v651
      %653 = vmatmul.bf16.gmra.mxu0 %v543
      %v654 = vpop.f32.mrf.mxu0
      %v655 = vadd.f32 0.0, %v654
      %v656 = vpop.f32.mrf.mxu0
      %v657 = vadd.f32 0.0, %v656
      %658 = vmatmul.bf16.gmra.mxu0 %v546
      %v659 = vpop.f32.mrf.mxu0
      %v660 = vadd.f32 0.0, %v659
      %v661 = vpop.f32.mrf.mxu0
      %v662 = vadd.f32 0.0, %v661
      %663 = vmatmul.bf16.gmra.mxu0 %v549
      %v664 = vpop.f32.mrf.mxu0
      %v665 = vadd.f32 0.0, %v664
      %v666 = vpop.f32.mrf.mxu0
      %667 = vdwg.mxu0
      %v669 = vunpack.c.l.b16 %v212
      %v670 = vpack.c.b16 %v669, %v669
      %v671 = vsel %vm487, %v298, 0
      %v673 = vsel %vm487, %v299, 0
      %v675 = vsel %vm487, %v300, 0
      %v677 = vsel %vm487, %v301, 0
      %v679 = vsel %vm487, %v302, 0
      %v681 = vsel %vm487, %v303, 0
      %v683 = vsel %vm487, %v304, 0
      %v685 = vsel %vm487, %v305, 0
      %v687 = vsel %vm487, %v306, 0
      %v689 = vsel %vm487, %v307, 0
      %v691 = vsel %vm487, %v308, 0
      %v693 = vsel %vm487, %v309, 0
      %v695 = vsel %vm487, %v310, 0
      %v697 = vsel %vm487, %v311, 0
      %v699 = vsel %vm487, %v312, 0
      %v701 = vsel %vm487, %v313, 0
      %v703 = vsel %vm487, %v314, 0
      %v705 = vsel %vm487, %v315, 0
      %v707 = vsel %vm487, %v316, 0
      %v709 = vsel %vm487, %v317, 0
      %v712 = vsel %vm487, %v670, 0
      %v715 = vsel %vm551, %v213, 0
      %717 = vmatpush.bf16.msra.mxu0 0
      %718 = vmatpush.bf16.msra.mxu0 0
      %719 = vmatpush.bf16.msra.mxu0 0
      %720 = vmatpush.bf16.msra.mxu0 0
      %721 = vmatpush.bf16.msra.mxu0 0
      %722 = vmatpush.bf16.msra.mxu0 0
      %723 = vmatpush.bf16.msra.mxu0 0
      %724 = vmatpush.bf16.msra.mxu0 %v715
      %725 = vmatmul.bf16.gmra.mxu0 %v671
      %v726 = vpop.f32.mrf.mxu0
      %v727 = vadd.f32 %v565, %v726
      %v728 = vpop.f32.mrf.mxu0
      %v729 = vadd.f32 %v567, %v728
      %730 = vmatmul.bf16.gmra.mxu0 %v673
      %v731 = vpop.f32.mrf.mxu0
      %v732 = vadd.f32 %v570, %v731
      %v733 = vpop.f32.mrf.mxu0
      %v734 = vadd.f32 %v572, %v733
      %735 = vmatmul.bf16.gmra.mxu0 %v675
      %v736 = vpop.f32.mrf.mxu0
      %v737 = vadd.f32 %v575, %v736
      %v738 = vpop.f32.mrf.mxu0
      %v739 = vadd.f32 %v577, %v738
      %740 = vmatmul.bf16.gmra.mxu0 %v677
      %v741 = vpop.f32.mrf.mxu0
      %v742 = vadd.f32 %v580, %v741
      %v743 = vpop.f32.mrf.mxu0
      %v744 = vadd.f32 %v582, %v743
      %745 = vmatmul.bf16.gmra.mxu0 %v679
      %v746 = vpop.f32.mrf.mxu0
      %v747 = vadd.f32 %v585, %v746
      %v748 = vpop.f32.mrf.mxu0
      %v749 = vadd.f32 %v587, %v748
      %750 = vmatmul.bf16.gmra.mxu0 %v681
      %v751 = vpop.f32.mrf.mxu0
      %v752 = vadd.f32 %v590, %v751
      %v753 = vpop.f32.mrf.mxu0
      %v754 = vadd.f32 %v592, %v753
      %755 = vmatmul.bf16.gmra.mxu0 %v683
      %v756 = vpop.f32.mrf.mxu0
      %v757 = vadd.f32 %v595, %v756
      %v758 = vpop.f32.mrf.mxu0
      %v759 = vadd.f32 %v597, %v758
      %760 = vmatmul.bf16.gmra.mxu0 %v685
      %v761 = vpop.f32.mrf.mxu0
      %v762 = vadd.f32 %v600, %v761
      %v763 = vpop.f32.mrf.mxu0
      %v764 = vadd.f32 %v602, %v763
      %765 = vmatmul.bf16.gmra.mxu0 %v687
      %v766 = vpop.f32.mrf.mxu0
      %v767 = vadd.f32 %v605, %v766
      %v768 = vpop.f32.mrf.mxu0
      %v769 = vadd.f32 %v607, %v768
      %770 = vmatmul.bf16.gmra.mxu0 %v689
      %v771 = vpop.f32.mrf.mxu0
      %v772 = vadd.f32 %v610, %v771
      %v773 = vpop.f32.mrf.mxu0
      %v774 = vadd.f32 %v612, %v773
      %775 = vmatmul.bf16.gmra.mxu0 %v691
      %v776 = vpop.f32.mrf.mxu0
      %v777 = vadd.f32 %v615, %v776
      %v778 = vpop.f32.mrf.mxu0
      %v779 = vadd.f32 %v617, %v778
      %780 = vmatmul.bf16.gmra.mxu0 %v693
      %v781 = vpop.f32.mrf.mxu0
      %v782 = vadd.f32 %v620, %v781
      %v783 = vpop.f32.mrf.mxu0
      %v784 = vadd.f32 %v622, %v783
      %785 = vmatmul.bf16.gmra.mxu0 %v695
      %v786 = vpop.f32.mrf.mxu0
      %v787 = vadd.f32 %v625, %v786
      %v788 = vpop.f32.mrf.mxu0
      %v789 = vadd.f32 %v627, %v788
      %790 = vmatmul.bf16.gmra.mxu0 %v697
      %v791 = vpop.f32.mrf.mxu0
      %v792 = vadd.f32 %v630, %v791
      %v793 = vpop.f32.mrf.mxu0
      %v794 = vadd.f32 %v632, %v793
      %795 = vmatmul.bf16.gmra.mxu0 %v699
      %v796 = vpop.f32.mrf.mxu0
      %v797 = vadd.f32 %v635, %v796
      %v798 = vpop.f32.mrf.mxu0
      %v799 = vadd.f32 %v637, %v798
      %800 = vmatmul.bf16.gmra.mxu0 %v701
      %v801 = vpop.f32.mrf.mxu0
      %v802 = vadd.f32 %v640, %v801
      %v803 = vpop.f32.mrf.mxu0
      %v804 = vadd.f32 %v642, %v803
      %805 = vmatmul.bf16.gmra.mxu0 %v703
      %v806 = vpop.f32.mrf.mxu0
      %v807 = vadd.f32 %v645, %v806
      %v808 = vpop.f32.mrf.mxu0
      %v809 = vadd.f32 %v647, %v808
      %810 = vmatmul.bf16.gmra.mxu0 %v705
      %v811 = vpop.f32.mrf.mxu0
      %v812 = vadd.f32 %v650, %v811
      %v813 = vpop.f32.mrf.mxu0
      %v814 = vadd.f32 %v652, %v813
      %815 = vmatmul.bf16.gmra.mxu0 %v707
      %v816 = vpop.f32.mrf.mxu0
      %v817 = vadd.f32 %v655, %v816
      %v818 = vpop.f32.mrf.mxu0
      %v819 = vadd.f32 %v657, %v818
      %820 = vmatmul.bf16.gmra.mxu0 %v709
      %v821 = vpop.f32.mrf.mxu0
      %v822 = vadd.f32 %v660, %v821
      %v823 = vpop.f32.mrf.mxu0
      %v824 = vadd.f32 %v662, %v823
      %825 = vmatmul.bf16.gmra.mxu0 %v712
      %v826 = vpop.f32.mrf.mxu0
      %v827 = vadd.f32 %v665, %v826
      %v828 = vpop.f32.mrf.mxu0
      %829 = vdwg.mxu0
      %v830 = vld [vmem:[%s165] sm:$0xe]
      %v831 = vld [vmem:[%s1 + $0x8] sm:$0xf]
      %v833 = vunpack.c.l.b16 %v830
      %v834 = vpack.c.b16 %v258, %v833
      %vm835 = vcmask 1046528
      %v836 = vrot.slane %v834, 1
      %v837 = vrot.slane %v299, 1
      %v838 = vsel %vm835, %v836, %v837
      %v839 = vrot.slane %v300, 1
      %v840 = vsel %vm835, %v837, %v839
      %v841 = vrot.slane %v301, 1
      %v842 = vsel %vm835, %v839, %v841
      %v843 = vrot.slane %v302, 1
      %v844 = vsel %vm835, %v841, %v843
      %v845 = vrot.slane %v303, 1
      %v846 = vsel %vm835, %v843, %v845
      %v847 = vrot.slane %v304, 1
      %v848 = vsel %vm835, %v845, %v847
      %v849 = vrot.slane %v305, 1
      %v850 = vsel %vm835, %v847, %v849
      %v851 = vrot.slane %v306, 1
      %v852 = vsel %vm835, %v849, %v851
      %v853 = vrot.slane %v307, 1
      %v854 = vsel %vm835, %v851, %v853
      %v855 = vrot.slane %v308, 1
      %v856 = vsel %vm835, %v853, %v855
      %v857 = vrot.slane %v309, 1
      %v858 = vsel %vm835, %v855, %v857
      %v859 = vrot.slane %v310, 1
      %v860 = vsel %vm835, %v857, %v859
      %v861 = vrot.slane %v311, 1
      %v862 = vsel %vm835, %v859, %v861
      %v863 = vrot.slane %v312, 1
      %v864 = vsel %vm835, %v861, %v863
      %v865 = vrot.slane %v313, 1
      %v866 = vsel %vm835, %v863, %v865
      %v867 = vrot.slane %v314, 1
      %v868 = vsel %vm835, %v865, %v867
      %v869 = vrot.slane %v315, 1
      %v870 = vsel %vm835, %v867, %v869
      %v871 = vrot.slane %v316, 1
      %v872 = vsel %vm835, %v869, %v871
      %v873 = vrot.slane %v317, 1
      %v874 = vsel %vm835, %v871, %v873
      %v875 = vrot.slane %v318, 1
      %v876 = vsel %vm835, %v873, %v875
      %v878 = vsel %vm487, %v838, 0
      %v881 = vsel %vm487, %v840, 0
      %v884 = vsel %vm487, %v842, 0
      %v887 = vsel %vm487, %v844, 0
      %v890 = vsel %vm487, %v846, 0
      %v893 = vsel %vm487, %v848, 0
      %v896 = vsel %vm487, %v850, 0
      %v899 = vsel %vm487, %v852, 0
      %v902 = vsel %vm487, %v854, 0
      %v905 = vsel %vm487, %v856, 0
      %v908 = vsel %vm487, %v858, 0
      %v911 = vsel %vm487, %v860, 0
      %v914 = vsel %vm487, %v862, 0
      %v917 = vsel %vm487, %v864, 0
      %v920 = vsel %vm487, %v866, 0
      %v923 = vsel %vm487, %v868, 0
      %v926 = vsel %vm487, %v870, 0
      %v929 = vsel %vm487, %v872, 0
      %v932 = vsel %vm487, %v874, 0
      %v935 = vsel %vm487, %v876, 0
      %v938 = vsel %vm487, %v875, 0
      %v941 = vsel %vm551, %v831, 0
      %943 = vmatpush.bf16.msra.mxu0 0
      %944 = vmatpush.bf16.msra.mxu0 0
      %945 = vmatpush.bf16.msra.mxu0 0
      %946 = vmatpush.bf16.msra.mxu0 0
      %947 = vmatpush.bf16.msra.mxu0 0
      %948 = vmatpush.bf16.msra.mxu0 0
      %949 = vmatpush.bf16.msra.mxu0 0
      %950 = vmatpush.bf16.msra.mxu0 %v941
      %951 = vmatmul.bf16.gmra.mxu0 %v878
      %v952 = vpop.f32.mrf.mxu0
      %v953 = vadd.f32 0.0, %v952
      %v954 = vpop.f32.mrf.mxu0
      %v955 = vadd.f32 0.0, %v954
      %956 = vmatmul.bf16.gmra.mxu0 %v881
      %v957 = vpop.f32.mrf.mxu0
      %v958 = vadd.f32 0.0, %v957
      %v959 = vpop.f32.mrf.mxu0
      %v960 = vadd.f32 0.0, %v959
      %961 = vmatmul.bf16.gmra.mxu0 %v884
      %v962 = vpop.f32.mrf.mxu0
      %v963 = vadd.f32 0.0, %v962
      %v964 = vpop.f32.mrf.mxu0
      %v965 = vadd.f32 0.0, %v964
      %966 = vmatmul.bf16.gmra.mxu0 %v887
      %v967 = vpop.f32.mrf.mxu0
      %v968 = vadd.f32 0.0, %v967
      %v969 = vpop.f32.mrf.mxu0
      %v970 = vadd.f32 0.0, %v969
      %971 = vmatmul.bf16.gmra.mxu0 %v890
      %v972 = vpop.f32.mrf.mxu0
      %v973 = vadd.f32 0.0, %v972
      %v974 = vpop.f32.mrf.mxu0
      %v975 = vadd.f32 0.0, %v974
      %976 = vmatmul.bf16.gmra.mxu0 %v893
      %v977 = vpop.f32.mrf.mxu0
      %v978 = vadd.f32 0.0, %v977
      %v979 = vpop.f32.mrf.mxu0
      %v980 = vadd.f32 0.0, %v979
      %981 = vmatmul.bf16.gmra.mxu0 %v896
      %v982 = vpop.f32.mrf.mxu0
      %v983 = vadd.f32 0.0, %v982
      %v984 = vpop.f32.mrf.mxu0
      %v985 = vadd.f32 0.0, %v984
      %986 = vmatmul.bf16.gmra.mxu0 %v899
      %v987 = vpop.f32.mrf.mxu0
      %v988 = vadd.f32 0.0, %v987
      %v989 = vpop.f32.mrf.mxu0
      %v990 = vadd.f32 0.0, %v989
      %991 = vmatmul.bf16.gmra.mxu0 %v902
      %v992 = vpop.f32.mrf.mxu0
      %v993 = vadd.f32 0.0, %v992
      %v994 = vpop.f32.mrf.mxu0
      %v995 = vadd.f32 0.0, %v994
      %996 = vmatmul.bf16.gmra.mxu0 %v905
      %v997 = vpop.f32.mrf.mxu0
      %v998 = vadd.f32 0.0, %v997
      %v999 = vpop.f32.mrf.mxu0
      %v1000 = vadd.f32 0.0, %v999
      %1001 = vmatmul.bf16.gmra.mxu0 %v908
      %v1002 = vpop.f32.mrf.mxu0
      %v1003 = vadd.f32 0.0, %v1002
      %v1004 = vpop.f32.mrf.mxu0
      %v1005 = vadd.f32 0.0, %v1004
      %1006 = vmatmul.bf16.gmra.mxu0 %v911
      %v1007 = vpop.f32.mrf.mxu0
      %v1008 = vadd.f32 0.0, %v1007
      %v1009 = vpop.f32.mrf.mxu0
      %v1010 = vadd.f32 0.0, %v1009
      %1011 = vmatmul.bf16.gmra.mxu0 %v914
      %v1012 = vpop.f32.mrf.mxu0
      %v1013 = vadd.f32 0.0, %v1012
      %v1014 = vpop.f32.mrf.mxu0
      %v1015 = vadd.f32 0.0, %v1014
      %1016 = vmatmul.bf16.gmra.mxu0 %v917
      %v1017 = vpop.f32.mrf.mxu0
      %v1018 = vadd.f32 0.0, %v1017
      %v1019 = vpop.f32.mrf.mxu0
      %v1020 = vadd.f32 0.0, %v1019
      %1021 = vmatmul.bf16.gmra.mxu0 %v920
      %v1022 = vpop.f32.mrf.mxu0
      %v1023 = vadd.f32 0.0, %v1022
      %v1024 = vpop.f32.mrf.mxu0
      %v1025 = vadd.f32 0.0, %v1024
      %1026 = vmatmul.bf16.gmra.mxu0 %v923
      %v1027 = vpop.f32.mrf.mxu0
      %v1028 = vadd.f32 0.0, %v1027
      %v1029 = vpop.f32.mrf.mxu0
      %v1030 = vadd.f32 0.0, %v1029
      %1031 = vmatmul.bf16.gmra.mxu0 %v926
      %v1032 = vpop.f32.mrf.mxu0
      %v1033 = vadd.f32 0.0, %v1032
      %v1034 = vpop.f32.mrf.mxu0
      %v1035 = vadd.f32 0.0, %v1034
      %1036 = vmatmul.bf16.gmra.mxu0 %v929
      %v1037 = vpop.f32.mrf.mxu0
      %v1038 = vadd.f32 0.0, %v1037
      %v1039 = vpop.f32.mrf.mxu0
      %v1040 = vadd.f32 0.0, %v1039
      %1041 = vmatmul.bf16.gmra.mxu0 %v932
      %v1042 = vpop.f32.mrf.mxu0
      %v1043 = vadd.f32 0.0, %v1042
      %v1044 = vpop.f32.mrf.mxu0
      %v1045 = vadd.f32 0.0, %v1044
      %1046 = vmatmul.bf16.gmra.mxu0 %v935
      %v1047 = vpop.f32.mrf.mxu0
      %v1048 = vadd.f32 0.0, %v1047
      %v1049 = vpop.f32.mrf.mxu0
      %v1050 = vadd.f32 0.0, %v1049
      %1051 = vmatmul.bf16.gmra.mxu0 %v938
      %v1052 = vpop.f32.mrf.mxu0
      %v1053 = vadd.f32 0.0, %v1052
      %v1054 = vpop.f32.mrf.mxu0
      %1055 = vdwg.mxu0
      %v1056 = vadd.f32 %v727, %v953
      %v1057 = vadd.f32 %v729, %v955
      %v1058 = vadd.f32 %v732, %v958
      %v1059 = vadd.f32 %v734, %v960
      %v1060 = vadd.f32 %v737, %v963
      %v1061 = vadd.f32 %v739, %v965
      %v1062 = vadd.f32 %v742, %v968
      %v1063 = vadd.f32 %v744, %v970
      %v1064 = vadd.f32 %v747, %v973
      %v1065 = vadd.f32 %v749, %v975
      %v1066 = vadd.f32 %v752, %v978
      %v1067 = vadd.f32 %v754, %v980
      %v1068 = vadd.f32 %v757, %v983
      %v1069 = vadd.f32 %v759, %v985
      %v1070 = vadd.f32 %v762, %v988
      %v1071 = vadd.f32 %v764, %v990
      %v1072 = vadd.f32 %v767, %v993
      %v1073 = vadd.f32 %v769, %v995
      %v1074 = vadd.f32 %v772, %v998
      %v1075 = vadd.f32 %v774, %v1000
      %v1076 = vadd.f32 %v777, %v1003
      %v1077 = vadd.f32 %v779, %v1005
      %v1078 = vadd.f32 %v782, %v1008
      %v1079 = vadd.f32 %v784, %v1010
      %v1080 = vadd.f32 %v787, %v1013
      %v1081 = vadd.f32 %v789, %v1015
      %v1082 = vadd.f32 %v792, %v1018
      %v1083 = vadd.f32 %v794, %v1020
      %v1084 = vadd.f32 %v797, %v1023
      %v1085 = vadd.f32 %v799, %v1025
      %v1086 = vadd.f32 %v802, %v1028
      %v1087 = vadd.f32 %v804, %v1030
      %v1088 = vadd.f32 %v807, %v1033
      %v1089 = vadd.f32 %v809, %v1035
      %v1090 = vadd.f32 %v812, %v1038
      %v1091 = vadd.f32 %v814, %v1040
      %v1092 = vadd.f32 %v817, %v1043
      %v1093 = vadd.f32 %v819, %v1045
      %v1094 = vadd.f32 %v822, %v1048
      %v1095 = vadd.f32 %v824, %v1050
      %v1096 = vadd.f32 %v827, %v1053
      %v1097 = vld [vmem:[%s165 + $0x8] sm:$0xe]
      %v1098 = vld [vmem:[%s165 + $0xc] sm:$0xf]
      %v1099 = vld [vmem:[%s165 + $0x10] sm:$0xf]
      %v1100 = vld [vmem:[%s165 + $0x14] sm:$0xf]
      %v1101 = vld [vmem:[%s165 + $0x18] sm:$0xf]
      %v1102 = vld [vmem:[%s165 + $0x1c] sm:$0xf]
      %v1103 = vld [vmem:[%s165 + $0x20] sm:$0xf]
      %v1104 = vld [vmem:[%s165 + $0x24] sm:$0xf]
      %v1105 = vld [vmem:[%s165 + $0x28] sm:$0xf]
      %v1106 = vld [vmem:[%s165 + $0x2c] sm:$0xf]
      %v1107 = vld [vmem:[%s165 + $0x30] sm:$0xf]
      %v1108 = vld [vmem:[%s165 + $0x34] sm:$0xf]
      %v1109 = vld [vmem:[%s165 + $0x38] sm:$0xf]
      %v1110 = vld [vmem:[%s165 + $0x3c] sm:$0xf]
      %v1111 = vld [vmem:[%s165 + $0x40] sm:$0xf]
      %v1112 = vld [vmem:[%s165 + $0x44] sm:$0xf]
      %v1113 = vld [vmem:[%s165 + $0x48] sm:$0xf]
      %v1114 = vld [vmem:[%s165 + $0x4c] sm:$0xf]
      %v1115 = vld [vmem:[%s165 + $0x50] sm:$0xf]
      %v1116 = vld [vmem:[%s165 + $0x54] sm:$0xf]
      %v1117 = vld [vmem:[%s165 + $0x58] sm:$0xf]
      %v1118 = vld [vmem:[%s165 + $0x5c] sm:$0xf]
      %v1119 = vld [vmem:[%s165 + $0x60] sm:$0xf]
      %v1120 = vld [vmem:[%s165 + $0x64] sm:$0xf]
      %v1121 = vld [vmem:[%s165 + $0x68] sm:$0xf]
      %v1122 = vld [vmem:[%s165 + $0x6c] sm:$0xf]
      %v1123 = vld [vmem:[%s165 + $0x70] sm:$0xf]
      %v1124 = vld [vmem:[%s165 + $0x74] sm:$0xf]
      %v1125 = vld [vmem:[%s165 + $0x78] sm:$0xf]
      %v1126 = vld [vmem:[%s165 + $0x7c] sm:$0xf]
      %v1127 = vld [vmem:[%s165 + $0x80] sm:$0xf]
      %v1128 = vld [vmem:[%s165 + $0x84] sm:$0xf]
      %v1129 = vld [vmem:[%s165 + $0x88] sm:$0xf]
      %v1130 = vld [vmem:[%s165 + $0x8c] sm:$0xf]
      %v1131 = vld [vmem:[%s165 + $0x90] sm:$0xf]
      %v1132 = vld [vmem:[%s165 + $0x94] sm:$0xf]
      %v1133 = vld [vmem:[%s165 + $0x98] sm:$0xf]
      %v1134 = vld [vmem:[%s165 + $0x9c] sm:$0xf]
      %v1135 = vld [vmem:[%s165 + $0xa0] sm:$0xf]
      %v1136 = vld [vmem:[%s165 + $0xa4] sm:$0xf]
      %v1137 = vld [vmem:[%s165 + $0xa8] sm:$0x7]
      %v1138 = vld [vmem:[%s1 + $0xc] sm:$0xf]
      %v1180 = vunpack.c.l.b16 %v1097
      %v1181 = vunpack.c.l.b16 %v1098
      %v1182 = vunpack.c.l.b16 %v1099
      %v1183 = vunpack.c.l.b16 %v1100
      %v1184 = vunpack.c.l.b16 %v1101
      %v1185 = vunpack.c.l.b16 %v1102
      %v1186 = vunpack.c.l.b16 %v1103
      %v1187 = vunpack.c.l.b16 %v1104
      %v1188 = vunpack.c.l.b16 %v1105
      %v1189 = vunpack.c.l.b16 %v1106
      %v1190 = vunpack.c.l.b16 %v1107
      %v1191 = vunpack.c.l.b16 %v1108
      %v1192 = vunpack.c.l.b16 %v1109
      %v1193 = vunpack.c.l.b16 %v1110
      %v1194 = vunpack.c.l.b16 %v1111
      %v1195 = vunpack.c.l.b16 %v1112
      %v1196 = vunpack.c.l.b16 %v1113
      %v1197 = vunpack.c.l.b16 %v1114
      %v1198 = vunpack.c.l.b16 %v1115
      %v1199 = vunpack.c.l.b16 %v1116
      %v1200 = vunpack.c.l.b16 %v1117
      %v1201 = vunpack.c.l.b16 %v1118
      %v1202 = vunpack.c.l.b16 %v1119
      %v1203 = vunpack.c.l.b16 %v1120
      %v1204 = vunpack.c.l.b16 %v1121
      %v1205 = vunpack.c.l.b16 %v1122
      %v1206 = vunpack.c.l.b16 %v1123
      %v1207 = vunpack.c.l.b16 %v1124
      %v1208 = vunpack.c.l.b16 %v1125
      %v1209 = vunpack.c.l.b16 %v1126
      %v1210 = vunpack.c.l.b16 %v1127
      %v1211 = vunpack.c.l.b16 %v1128
      %v1212 = vunpack.c.l.b16 %v1129
      %v1213 = vunpack.c.l.b16 %v1130
      %v1214 = vunpack.c.l.b16 %v1131
      %v1215 = vunpack.c.l.b16 %v1132
      %v1216 = vunpack.c.l.b16 %v1133
      %v1217 = vunpack.c.l.b16 %v1134
      %v1218 = vunpack.c.l.b16 %v1135
      %v1219 = vunpack.c.l.b16 %v1136
      %v1220 = vunpack.c.l.b16 %v1137
      %v1221 = vpack.c.b16 %v1181, %v1180
      %v1222 = vpack.c.b16 %v1183, %v1182
      %v1223 = vpack.c.b16 %v1185, %v1184
      %v1224 = vpack.c.b16 %v1187, %v1186
      %v1225 = vpack.c.b16 %v1189, %v1188
      %v1226 = vpack.c.b16 %v1191, %v1190
      %v1227 = vpack.c.b16 %v1193, %v1192
      %v1228 = vpack.c.b16 %v1195, %v1194
      %v1229 = vpack.c.b16 %v1197, %v1196
      %v1230 = vpack.c.b16 %v1199, %v1198
      %v1231 = vpack.c.b16 %v1201, %v1200
      %v1232 = vpack.c.b16 %v1203, %v1202
      %v1233 = vpack.c.b16 %v1205, %v1204
      %v1234 = vpack.c.b16 %v1207, %v1206
      %v1235 = vpack.c.b16 %v1209, %v1208
      %v1236 = vpack.c.b16 %v1211, %v1210
      %v1237 = vpack.c.b16 %v1213, %v1212
      %v1238 = vpack.c.b16 %v1215, %v1214
      %v1239 = vpack.c.b16 %v1217, %v1216
      %v1240 = vpack.c.b16 %v1219, %v1218
      %v1241 = vpack.c.b16 %v1220, %v1220
      %v1242 = vrot.slane %v1221, 1
      %v1243 = vrot.slane %v1222, 1
      %v1244 = vsel %vm835, %v1242, %v1243
      %v1245 = vrot.slane %v1223, 1
      %v1246 = vsel %vm835, %v1243, %v1245
      %v1247 = vrot.slane %v1224, 1
      %v1248 = vsel %vm835, %v1245, %v1247
      %v1249 = vrot.slane %v1225, 1
      %v1250 = vsel %vm835, %v1247, %v1249
      %v1251 = vrot.slane %v1226, 1
      %v1252 = vsel %vm835, %v1249, %v1251
      %v1253 = vrot.slane %v1227, 1
      %v1254 = vsel %vm835, %v1251, %v1253
      %v1255 = vrot.slane %v1228, 1
      %v1256 = vsel %vm835, %v1253, %v1255
      %v1257 = vrot.slane %v1229, 1
      %v1258 = vsel %vm835, %v1255, %v1257
      %v1259 = vrot.slane %v1230, 1
      %v1260 = vsel %vm835, %v1257, %v1259
      %v1261 = vrot.slane %v1231, 1
      %v1262 = vsel %vm835, %v1259, %v1261
      %v1263 = vrot.slane %v1232, 1
      %v1264 = vsel %vm835, %v1261, %v1263
      %v1265 = vrot.slane %v1233, 1
      %v1266 = vsel %vm835, %v1263, %v1265
      %v1267 = vrot.slane %v1234, 1
      %v1268 = vsel %vm835, %v1265, %v1267
      %v1269 = vrot.slane %v1235, 1
      %v1270 = vsel %vm835, %v1267, %v1269
      %v1271 = vrot.slane %v1236, 1
      %v1272 = vsel %vm835, %v1269, %v1271
      %v1273 = vrot.slane %v1237, 1
      %v1274 = vsel %vm835, %v1271, %v1273
      %v1275 = vrot.slane %v1238, 1
      %v1276 = vsel %vm835, %v1273, %v1275
      %v1277 = vrot.slane %v1239, 1
      %v1278 = vsel %vm835, %v1275, %v1277
      %v1279 = vrot.slane %v1240, 1
      %v1280 = vsel %vm835, %v1277, %v1279
      %v1281 = vrot.slane %v1241, 1
      %v1282 = vsel %vm835, %v1279, %v1281
      %v1284 = vsel %vm487, %v1244, 0
      %v1287 = vsel %vm487, %v1246, 0
      %v1290 = vsel %vm487, %v1248, 0
      %v1293 = vsel %vm487, %v1250, 0
      %v1296 = vsel %vm487, %v1252, 0
      %v1299 = vsel %vm487, %v1254, 0
      %v1302 = vsel %vm487, %v1256, 0
      %v1305 = vsel %vm487, %v1258, 0
      %v1308 = vsel %vm487, %v1260, 0
      %v1311 = vsel %vm487, %v1262, 0
      %v1314 = vsel %vm487, %v1264, 0
      %v1317 = vsel %vm487, %v1266, 0
      %v1320 = vsel %vm487, %v1268, 0
      %v1323 = vsel %vm487, %v1270, 0
      %v1326 = vsel %vm487, %v1272, 0
      %v1329 = vsel %vm487, %v1274, 0
      %v1332 = vsel %vm487, %v1276, 0
      %v1335 = vsel %vm487, %v1278, 0
      %v1338 = vsel %vm487, %v1280, 0
      %v1341 = vsel %vm487, %v1282, 0
      %v1344 = vsel %vm487, %v1281, 0
      %v1347 = vsel %vm551, %v1138, 0
      %1349 = vmatpush.bf16.msra.mxu0 0
      %1350 = vmatpush.bf16.msra.mxu0 0
      %1351 = vmatpush.bf16.msra.mxu0 0
      %1352 = vmatpush.bf16.msra.mxu0 0
      %1353 = vmatpush.bf16.msra.mxu0 0
      %1354 = vmatpush.bf16.msra.mxu0 0
      %1355 = vmatpush.bf16.msra.mxu0 0
      %1356 = vmatpush.bf16.msra.mxu0 %v1347
      %1357 = vmatmul.bf16.gmra.mxu0 %v1284
      %v1358 = vpop.f32.mrf.mxu0
      %v1359 = vadd.f32 0.0, %v1358
      %v1360 = vpop.f32.mrf.mxu0
      %v1361 = vadd.f32 0.0, %v1360
      %1362 = vmatmul.bf16.gmra.mxu0 %v1287
      %v1363 = vpop.f32.mrf.mxu0
      %v1364 = vadd.f32 0.0, %v1363
      %v1365 = vpop.f32.mrf.mxu0
      %v1366 = vadd.f32 0.0, %v1365
      %1367 = vmatmul.bf16.gmra.mxu0 %v1290
      %v1368 = vpop.f32.mrf.mxu0
      %v1369 = vadd.f32 0.0, %v1368
      %v1370 = vpop.f32.mrf.mxu0
      %v1371 = vadd.f32 0.0, %v1370
      %1372 = vmatmul.bf16.gmra.mxu0 %v1293
      %v1373 = vpop.f32.mrf.mxu0
      %v1374 = vadd.f32 0.0, %v1373
      %v1375 = vpop.f32.mrf.mxu0
      %v1376 = vadd.f32 0.0, %v1375
      %1377 = vmatmul.bf16.gmra.mxu0 %v1296
      %v1378 = vpop.f32.mrf.mxu0
      %v1379 = vadd.f32 0.0, %v1378
      %v1380 = vpop.f32.mrf.mxu0
      %v1381 = vadd.f32 0.0, %v1380
      %1382 = vmatmul.bf16.gmra.mxu0 %v1299
      %v1383 = vpop.f32.mrf.mxu0
      %v1384 = vadd.f32 0.0, %v1383
      %v1385 = vpop.f32.mrf.mxu0
      %v1386 = vadd.f32 0.0, %v1385
      %1387 = vmatmul.bf16.gmra.mxu0 %v1302
      %v1388 = vpop.f32.mrf.mxu0
      %v1389 = vadd.f32 0.0, %v1388
      %v1390 = vpop.f32.mrf.mxu0
      %v1391 = vadd.f32 0.0, %v1390
      %1392 = vmatmul.bf16.gmra.mxu0 %v1305
      %v1393 = vpop.f32.mrf.mxu0
      %v1394 = vadd.f32 0.0, %v1393
      %v1395 = vpop.f32.mrf.mxu0
      %v1396 = vadd.f32 0.0, %v1395
      %1397 = vmatmul.bf16.gmra.mxu0 %v1308
      %v1398 = vpop.f32.mrf.mxu0
      %v1399 = vadd.f32 0.0, %v1398
      %v1400 = vpop.f32.mrf.mxu0
      %v1401 = vadd.f32 0.0, %v1400
      %1402 = vmatmul.bf16.gmra.mxu0 %v1311
      %v1403 = vpop.f32.mrf.mxu0
      %v1404 = vadd.f32 0.0, %v1403
      %v1405 = vpop.f32.mrf.mxu0
      %v1406 = vadd.f32 0.0, %v1405
      %1407 = vmatmul.bf16.gmra.mxu0 %v1314
      %v1408 = vpop.f32.mrf.mxu0
      %v1409 = vadd.f32 0.0, %v1408
      %v1410 = vpop.f32.mrf.mxu0
      %v1411 = vadd.f32 0.0, %v1410
      %1412 = vmatmul.bf16.gmra.mxu0 %v1317
      %v1413 = vpop.f32.mrf.mxu0
      %v1414 = vadd.f32 0.0, %v1413
      %v1415 = vpop.f32.mrf.mxu0
      %v1416 = vadd.f32 0.0, %v1415
      %1417 = vmatmul.bf16.gmra.mxu0 %v1320
      %v1418 = vpop.f32.mrf.mxu0
      %v1419 = vadd.f32 0.0, %v1418
      %v1420 = vpop.f32.mrf.mxu0
      %v1421 = vadd.f32 0.0, %v1420
      %1422 = vmatmul.bf16.gmra.mxu0 %v1323
      %v1423 = vpop.f32.mrf.mxu0
      %v1424 = vadd.f32 0.0, %v1423
      %v1425 = vpop.f32.mrf.mxu0
      %v1426 = vadd.f32 0.0, %v1425
      %1427 = vmatmul.bf16.gmra.mxu0 %v1326
      %v1428 = vpop.f32.mrf.mxu0
      %v1429 = vadd.f32 0.0, %v1428
      %v1430 = vpop.f32.mrf.mxu0
      %v1431 = vadd.f32 0.0, %v1430
      %1432 = vmatmul.bf16.gmra.mxu0 %v1329
      %v1433 = vpop.f32.mrf.mxu0
      %v1434 = vadd.f32 0.0, %v1433
      %v1435 = vpop.f32.mrf.mxu0
      %v1436 = vadd.f32 0.0, %v1435
      %1437 = vmatmul.bf16.gmra.mxu0 %v1332
      %v1438 = vpop.f32.mrf.mxu0
      %v1439 = vadd.f32 0.0, %v1438
      %v1440 = vpop.f32.mrf.mxu0
      %v1441 = vadd.f32 0.0, %v1440
      %1442 = vmatmul.bf16.gmra.mxu0 %v1335
      %v1443 = vpop.f32.mrf.mxu0
      %v1444 = vadd.f32 0.0, %v1443
      %v1445 = vpop.f32.mrf.mxu0
      %v1446 = vadd.f32 0.0, %v1445
      %1447 = vmatmul.bf16.gmra.mxu0 %v1338
      %v1448 = vpop.f32.mrf.mxu0
      %v1449 = vadd.f32 0.0, %v1448
      %v1450 = vpop.f32.mrf.mxu0
      %v1451 = vadd.f32 0.0, %v1450
      %1452 = vmatmul.bf16.gmra.mxu0 %v1341
      %v1453 = vpop.f32.mrf.mxu0
      %v1454 = vadd.f32 0.0, %v1453
      %v1455 = vpop.f32.mrf.mxu0
      %v1456 = vadd.f32 0.0, %v1455
      %1457 = vmatmul.bf16.gmra.mxu0 %v1344
      %v1458 = vpop.f32.mrf.mxu0
      %v1459 = vadd.f32 0.0, %v1458
      %v1460 = vpop.f32.mrf.mxu0
      %1461 = vdwg.mxu0
      %v1462 = vadd.f32 %v1056, %v1359
      %v1463 = vadd.f32 %v1057, %v1361
      %v1464 = vadd.f32 %v1058, %v1364
      %v1465 = vadd.f32 %v1059, %v1366
      %v1466 = vadd.f32 %v1060, %v1369
      %v1467 = vadd.f32 %v1061, %v1371
      %v1468 = vadd.f32 %v1062, %v1374
      %v1469 = vadd.f32 %v1063, %v1376
      %v1470 = vadd.f32 %v1064, %v1379
      %v1471 = vadd.f32 %v1065, %v1381
      %v1472 = vadd.f32 %v1066, %v1384
      %v1473 = vadd.f32 %v1067, %v1386
      %v1474 = vadd.f32 %v1068, %v1389
      %v1475 = vadd.f32 %v1069, %v1391
      %v1476 = vadd.f32 %v1070, %v1394
      %v1477 = vadd.f32 %v1071, %v1396
      %v1478 = vadd.f32 %v1072, %v1399
      %v1479 = vadd.f32 %v1073, %v1401
      %v1480 = vadd.f32 %v1074, %v1404
      %v1481 = vadd.f32 %v1075, %v1406
      %v1482 = vadd.f32 %v1076, %v1409
      %v1483 = vadd.f32 %v1077, %v1411
      %v1484 = vadd.f32 %v1078, %v1414
      %v1485 = vadd.f32 %v1079, %v1416
      %v1486 = vadd.f32 %v1080, %v1419
      %v1487 = vadd.f32 %v1081, %v1421
      %v1488 = vadd.f32 %v1082, %v1424
      %v1489 = vadd.f32 %v1083, %v1426
      %v1490 = vadd.f32 %v1084, %v1429
      %v1491 = vadd.f32 %v1085, %v1431
      %v1492 = vadd.f32 %v1086, %v1434
      %v1493 = vadd.f32 %v1087, %v1436
      %v1494 = vadd.f32 %v1088, %v1439
      %v1495 = vadd.f32 %v1089, %v1441
      %v1496 = vadd.f32 %v1090, %v1444
      %v1497 = vadd.f32 %v1091, %v1446
      %v1498 = vadd.f32 %v1092, %v1449
      %v1499 = vadd.f32 %v1093, %v1451
      %v1500 = vadd.f32 %v1094, %v1454
      %v1501 = vadd.f32 %v1095, %v1456
      %v1502 = vadd.f32 %v1096, %v1459
      %v1503 = vld [vmem:[%s165 + $0xa8] sm:$0xf]
      %v1504 = vld [vmem:[%s1 + $0x10] sm:$0xf]
      %v1506 = vunpack.c.l.b16 %v1503
      %v1507 = vpack.c.b16 %v1506, %v1506
      %vm1508 = vsmask.f32 6400
      %v1510 = vshrl.u32 %v1221, 16
      %v1512 = vrot.slane %v1510, 1
      %v1513 = vshll.u32 %v1221, 16
      %v1515 = vrot.slane %v1513, 2
      %v1516 = vor.u32 %v1512, %v1515
      %v1518 = vshrl.u32 %v1222, 16
      %v1520 = vrot.slane %v1518, 1
      %v1521 = vshll.u32 %v1222, 16
      %v1523 = vrot.slane %v1521, 2
      %v1524 = vor.u32 %v1520, %v1523
      %v1525 = vsel %vm1508, %v1516, %v1524
      %v1527 = vshrl.u32 %v1223, 16
      %v1529 = vrot.slane %v1527, 1
      %v1530 = vshll.u32 %v1223, 16
      %v1532 = vrot.slane %v1530, 2
      %v1533 = vor.u32 %v1529, %v1532
      %v1534 = vsel %vm1508, %v1524, %v1533
      %v1536 = vshrl.u32 %v1224, 16
      %v1538 = vrot.slane %v1536, 1
      %v1539 = vshll.u32 %v1224, 16
      %v1541 = vrot.slane %v1539, 2
      %v1542 = vor.u32 %v1538, %v1541
      %v1543 = vsel %vm1508, %v1533, %v1542
      %v1545 = vshrl.u32 %v1225, 16
      %v1547 = vrot.slane %v1545, 1
      %v1548 = vshll.u32 %v1225, 16
      %v1550 = vrot.slane %v1548, 2
      %v1551 = vor.u32 %v1547, %v1550
      %v1552 = vsel %vm1508, %v1542, %v1551
      %v1554 = vshrl.u32 %v1226, 16
      %v1556 = vrot.slane %v1554, 1
      %v1557 = vshll.u32 %v1226, 16
      %v1559 = vrot.slane %v1557, 2
      %v1560 = vor.u32 %v1556, %v1559
      %v1561 = vsel %vm1508, %v1551, %v1560
      %v1563 = vshrl.u32 %v1227, 16
      %v1565 = vrot.slane %v1563, 1
      %v1566 = vshll.u32 %v1227, 16
      %v1568 = vrot.slane %v1566, 2
      %v1569 = vor.u32 %v1565, %v1568
      %v1570 = vsel %vm1508, %v1560, %v1569
      %v1572 = vshrl.u32 %v1228, 16
      %v1574 = vrot.slane %v1572, 1
      %v1575 = vshll.u32 %v1228, 16
      %v1577 = vrot.slane %v1575, 2
      %v1578 = vor.u32 %v1574, %v1577
      %v1579 = vsel %vm1508, %v1569, %v1578
      %v1581 = vshrl.u32 %v1229, 16
      %v1583 = vrot.slane %v1581, 1
      %v1584 = vshll.u32 %v1229, 16
      %v1586 = vrot.slane %v1584, 2
      %v1587 = vor.u32 %v1583, %v1586
      %v1588 = vsel %vm1508, %v1578, %v1587
      %v1590 = vshrl.u32 %v1230, 16
      %v1592 = vrot.slane %v1590, 1
      %v1593 = vshll.u32 %v1230, 16
      %v1595 = vrot.slane %v1593, 2
      %v1596 = vor.u32 %v1592, %v1595
      %v1597 = vsel %vm1508, %v1587, %v1596
      %v1599 = vshrl.u32 %v1231, 16
      %v1601 = vrot.slane %v1599, 1
      %v1602 = vshll.u32 %v1231, 16
      %v1604 = vrot.slane %v1602, 2
      %v1605 = vor.u32 %v1601, %v1604
      %v1606 = vsel %vm1508, %v1596, %v1605
      %v1608 = vshrl.u32 %v1232, 16
      %v1610 = vrot.slane %v1608, 1
      %v1611 = vshll.u32 %v1232, 16
      %v1613 = vrot.slane %v1611, 2
      %v1614 = vor.u32 %v1610, %v1613
      %v1615 = vsel %vm1508, %v1605, %v1614
      %v1617 = vshrl.u32 %v1233, 16
      %v1619 = vrot.slane %v1617, 1
      %v1620 = vshll.u32 %v1233, 16
      %v1622 = vrot.slane %v1620, 2
      %v1623 = vor.u32 %v1619, %v1622
      %v1624 = vsel %vm1508, %v1614, %v1623
      %v1626 = vshrl.u32 %v1234, 16
      %v1628 = vrot.slane %v1626, 1
      %v1629 = vshll.u32 %v1234, 16
      %v1631 = vrot.slane %v1629, 2
      %v1632 = vor.u32 %v1628, %v1631
      %v1633 = vsel %vm1508, %v1623, %v1632
      %v1635 = vshrl.u32 %v1235, 16
      %v1637 = vrot.slane %v1635, 1
      %v1638 = vshll.u32 %v1235, 16
      %v1640 = vrot.slane %v1638, 2
      %v1641 = vor.u32 %v1637, %v1640
      %v1642 = vsel %vm1508, %v1632, %v1641
      %v1644 = vshrl.u32 %v1236, 16
      %v1646 = vrot.slane %v1644, 1
      %v1647 = vshll.u32 %v1236, 16
      %v1649 = vrot.slane %v1647, 2
      %v1650 = vor.u32 %v1646, %v1649
      %v1651 = vsel %vm1508, %v1641, %v1650
      %v1653 = vshrl.u32 %v1237, 16
      %v1655 = vrot.slane %v1653, 1
      %v1656 = vshll.u32 %v1237, 16
      %v1658 = vrot.slane %v1656, 2
      %v1659 = vor.u32 %v1655, %v1658
      %v1660 = vsel %vm1508, %v1650, %v1659
      %v1662 = vshrl.u32 %v1238, 16
      %v1664 = vrot.slane %v1662, 1
      %v1665 = vshll.u32 %v1238, 16
      %v1667 = vrot.slane %v1665, 2
      %v1668 = vor.u32 %v1664, %v1667
      %v1669 = vsel %vm1508, %v1659, %v1668
      %v1671 = vshrl.u32 %v1239, 16
      %v1673 = vrot.slane %v1671, 1
      %v1674 = vshll.u32 %v1239, 16
      %v1676 = vrot.slane %v1674, 2
      %v1677 = vor.u32 %v1673, %v1676
      %v1678 = vsel %vm1508, %v1668, %v1677
      %v1680 = vshrl.u32 %v1240, 16
      %v1682 = vrot.slane %v1680, 1
      %v1683 = vshll.u32 %v1240, 16
      %v1685 = vrot.slane %v1683, 2
      %v1686 = vor.u32 %v1682, %v1685
      %v1687 = vsel %vm1508, %v1677, %v1686
      %v1689 = vshrl.u32 %v1507, 16
      %v1691 = vrot.slane %v1689, 1
      %v1692 = vshll.u32 %v1507, 16
      %v1694 = vrot.slane %v1692, 2
      %v1695 = vor.u32 %v1691, %v1694
      %v1696 = vsel %vm1508, %v1686, %v1695
      %v1698 = vsel %vm487, %v1525, 0
      %v1701 = vsel %vm487, %v1534, 0
      %v1704 = vsel %vm487, %v1543, 0
      %v1707 = vsel %vm487, %v1552, 0
      %v1710 = vsel %vm487, %v1561, 0
      %v1713 = vsel %vm487, %v1570, 0
      %v1716 = vsel %vm487, %v1579, 0
      %v1719 = vsel %vm487, %v1588, 0
      %v1722 = vsel %vm487, %v1597, 0
      %v1725 = vsel %vm487, %v1606, 0
      %v1728 = vsel %vm487, %v1615, 0
      %v1731 = vsel %vm487, %v1624, 0
      %v1734 = vsel %vm487, %v1633, 0
      %v1737 = vsel %vm487, %v1642, 0
      %v1740 = vsel %vm487, %v1651, 0
      %v1743 = vsel %vm487, %v1660, 0
      %v1746 = vsel %vm487, %v1669, 0
      %v1749 = vsel %vm487, %v1678, 0
      %v1752 = vsel %vm487, %v1687, 0
      %v1755 = vsel %vm487, %v1696, 0
      %v1758 = vsel %vm487, %v1695, 0
      %v1761 = vsel %vm551, %v1504, 0
      %1763 = vmatpush.bf16.msra.mxu0 0
      %1764 = vmatpush.bf16.msra.mxu0 0
      %1765 = vmatpush.bf16.msra.mxu0 0
      %1766 = vmatpush.bf16.msra.mxu0 0
      %1767 = vmatpush.bf16.msra.mxu0 0
      %1768 = vmatpush.bf16.msra.mxu0 0
      %1769 = vmatpush.bf16.msra.mxu0 0
      %1770 = vmatpush.bf16.msra.mxu0 %v1761
      %1771 = vmatmul.bf16.gmra.mxu0 %v1698
      %v1772 = vpop.f32.mrf.mxu0
      %v1773 = vadd.f32 0.0, %v1772
      %v1774 = vpop.f32.mrf.mxu0
      %v1775 = vadd.f32 0.0, %v1774
      %1776 = vmatmul.bf16.gmra.mxu0 %v1701
      %v1777 = vpop.f32.mrf.mxu0
      %v1778 = vadd.f32 0.0, %v1777
      %v1779 = vpop.f32.mrf.mxu0
      %v1780 = vadd.f32 0.0, %v1779
      %1781 = vmatmul.bf16.gmra.mxu0 %v1704
      %v1782 = vpop.f32.mrf.mxu0
      %v1783 = vadd.f32 0.0, %v1782
      %v1784 = vpop.f32.mrf.mxu0
      %v1785 = vadd.f32 0.0, %v1784
      %1786 = vmatmul.bf16.gmra.mxu0 %v1707
      %v1787 = vpop.f32.mrf.mxu0
      %v1788 = vadd.f32 0.0, %v1787
      %v1789 = vpop.f32.mrf.mxu0
      %v1790 = vadd.f32 0.0, %v1789
      %1791 = vmatmul.bf16.gmra.mxu0 %v1710
      %v1792 = vpop.f32.mrf.mxu0
      %v1793 = vadd.f32 0.0, %v1792
      %v1794 = vpop.f32.mrf.mxu0
      %v1795 = vadd.f32 0.0, %v1794
      %1796 = vmatmul.bf16.gmra.mxu0 %v1713
      %v1797 = vpop.f32.mrf.mxu0
      %v1798 = vadd.f32 0.0, %v1797
      %v1799 = vpop.f32.mrf.mxu0
      %v1800 = vadd.f32 0.0, %v1799
      %1801 = vmatmul.bf16.gmra.mxu0 %v1716
      %v1802 = vpop.f32.mrf.mxu0
      %v1803 = vadd.f32 0.0, %v1802
      %v1804 = vpop.f32.mrf.mxu0
      %v1805 = vadd.f32 0.0, %v1804
      %1806 = vmatmul.bf16.gmra.mxu0 %v1719
      %v1807 = vpop.f32.mrf.mxu0
      %v1808 = vadd.f32 0.0, %v1807
      %v1809 = vpop.f32.mrf.mxu0
      %v1810 = vadd.f32 0.0, %v1809
      %1811 = vmatmul.bf16.gmra.mxu0 %v1722
      %v1812 = vpop.f32.mrf.mxu0
      %v1813 = vadd.f32 0.0, %v1812
      %v1814 = vpop.f32.mrf.mxu0
      %v1815 = vadd.f32 0.0, %v1814
      %1816 = vmatmul.bf16.gmra.mxu0 %v1725
      %v1817 = vpop.f32.mrf.mxu0
      %v1818 = vadd.f32 0.0, %v1817
      %v1819 = vpop.f32.mrf.mxu0
      %v1820 = vadd.f32 0.0, %v1819
      %1821 = vmatmul.bf16.gmra.mxu0 %v1728
      %v1822 = vpop.f32.mrf.mxu0
      %v1823 = vadd.f32 0.0, %v1822
      %v1824 = vpop.f32.mrf.mxu0
      %v1825 = vadd.f32 0.0, %v1824
      %1826 = vmatmul.bf16.gmra.mxu0 %v1731
      %v1827 = vpop.f32.mrf.mxu0
      %v1828 = vadd.f32 0.0, %v1827
      %v1829 = vpop.f32.mrf.mxu0
      %v1830 = vadd.f32 0.0, %v1829
      %1831 = vmatmul.bf16.gmra.mxu0 %v1734
      %v1832 = vpop.f32.mrf.mxu0
      %v1833 = vadd.f32 0.0, %v1832
      %v1834 = vpop.f32.mrf.mxu0
      %v1835 = vadd.f32 0.0, %v1834
      %1836 = vmatmul.bf16.gmra.mxu0 %v1737
      %v1837 = vpop.f32.mrf.mxu0
      %v1838 = vadd.f32 0.0, %v1837
      %v1839 = vpop.f32.mrf.mxu0
      %v1840 = vadd.f32 0.0, %v1839
      %1841 = vmatmul.bf16.gmra.mxu0 %v1740
      %v1842 = vpop.f32.mrf.mxu0
      %v1843 = vadd.f32 0.0, %v1842
      %v1844 = vpop.f32.mrf.mxu0
      %v1845 = vadd.f32 0.0, %v1844
      %1846 = vmatmul.bf16.gmra.mxu0 %v1743
      %v1847 = vpop.f32.mrf.mxu0
      %v1848 = vadd.f32 0.0, %v1847
      %v1849 = vpop.f32.mrf.mxu0
      %v1850 = vadd.f32 0.0, %v1849
      %1851 = vmatmul.bf16.gmra.mxu0 %v1746
      %v1852 = vpop.f32.mrf.mxu0
      %v1853 = vadd.f32 0.0, %v1852
      %v1854 = vpop.f32.mrf.mxu0
      %v1855 = vadd.f32 0.0, %v1854
      %1856 = vmatmul.bf16.gmra.mxu0 %v1749
      %v1857 = vpop.f32.mrf.mxu0
      %v1858 = vadd.f32 0.0, %v1857
      %v1859 = vpop.f32.mrf.mxu0
      %v1860 = vadd.f32 0.0, %v1859
      %1861 = vmatmul.bf16.gmra.mxu0 %v1752
      %v1862 = vpop.f32.mrf.mxu0
      %v1863 = vadd.f32 0.0, %v1862
      %v1864 = vpop.f32.mrf.mxu0
      %v1865 = vadd.f32 0.0, %v1864
      %1866 = vmatmul.bf16.gmra.mxu0 %v1755
      %v1867 = vpop.f32.mrf.mxu0
      %v1868 = vadd.f32 0.0, %v1867
      %v1869 = vpop.f32.mrf.mxu0
      %v1870 = vadd.f32 0.0, %v1869
      %1871 = vmatmul.bf16.gmra.mxu0 %v1758
      %v1872 = vpop.f32.mrf.mxu0
      %v1873 = vadd.f32 0.0, %v1872
      %v1874 = vpop.f32.mrf.mxu0
      %1875 = vdwg.mxu0
      %v1876 = vadd.f32 %v1462, %v1773
      %v1877 = vadd.f32 %v1463, %v1775
      %v1878 = vadd.f32 %v1464, %v1778
      %v1879 = vadd.f32 %v1465, %v1780
      %v1880 = vadd.f32 %v1466, %v1783
      %v1881 = vadd.f32 %v1467, %v1785
      %v1882 = vadd.f32 %v1468, %v1788
      %v1883 = vadd.f32 %v1469, %v1790
      %v1884 = vadd.f32 %v1470, %v1793
      %v1885 = vadd.f32 %v1471, %v1795
      %v1886 = vadd.f32 %v1472, %v1798
      %v1887 = vadd.f32 %v1473, %v1800
      %v1888 = vadd.f32 %v1474, %v1803
      %v1889 = vadd.f32 %v1475, %v1805
      %v1890 = vadd.f32 %v1476, %v1808
      %v1891 = vadd.f32 %v1477, %v1810
      %v1892 = vadd.f32 %v1478, %v1813
      %v1893 = vadd.f32 %v1479, %v1815
      %v1894 = vadd.f32 %v1480, %v1818
      %v1895 = vadd.f32 %v1481, %v1820
      %v1896 = vadd.f32 %v1482, %v1823
      %v1897 = vadd.f32 %v1483, %v1825
      %v1898 = vadd.f32 %v1484, %v1828
      %v1899 = vadd.f32 %v1485, %v1830
      %v1900 = vadd.f32 %v1486, %v1833
      %v1901 = vadd.f32 %v1487, %v1835
      %v1902 = vadd.f32 %v1488, %v1838
      %v1903 = vadd.f32 %v1489, %v1840
      %v1904 = vadd.f32 %v1490, %v1843
      %v1905 = vadd.f32 %v1491, %v1845
      %v1906 = vadd.f32 %v1492, %v1848
      %v1907 = vadd.f32 %v1493, %v1850
      %v1908 = vadd.f32 %v1494, %v1853
      %v1909 = vadd.f32 %v1495, %v1855
      %v1910 = vadd.f32 %v1496, %v1858
      %v1911 = vadd.f32 %v1497, %v1860
      %v1912 = vadd.f32 %v1498, %v1863
      %v1913 = vadd.f32 %v1499, %v1865
      %v1914 = vadd.f32 %v1500, %v1868
      %v1915 = vadd.f32 %v1501, %v1870
      %v1916 = vadd.f32 %v1502, %v1873
      %v1917 = vld [vmem:[%s165 + $0x8] sm:$0xc]
      %v1918 = vld [vmem:[%s1 + $0x14] sm:$0xf]
      %v1920 = vunpack.c.l.b16 %v1917
      %v1921 = vpack.c.b16 %v1181, %v1920
      %vm1922 = vcmask 1045504
      %v1923 = vrot.slane %v1921, 2
      %v1924 = vrot.slane %v1222, 2
      %v1925 = vsel %vm1922, %v1923, %v1924
      %v1926 = vrot.slane %v1223, 2
      %v1927 = vsel %vm1922, %v1924, %v1926
      %v1928 = vrot.slane %v1224, 2
      %v1929 = vsel %vm1922, %v1926, %v1928
      %v1930 = vrot.slane %v1225, 2
      %v1931 = vsel %vm1922, %v1928, %v1930
      %v1932 = vrot.slane %v1226, 2
      %v1933 = vsel %vm1922, %v1930, %v1932
      %v1934 = vrot.slane %v1227, 2
      %v1935 = vsel %vm1922, %v1932, %v1934
      %v1936 = vrot.slane %v1228, 2
      %v1937 = vsel %vm1922, %v1934, %v1936
      %v1938 = vrot.slane %v1229, 2
      %v1939 = vsel %vm1922, %v1936, %v1938
      %v1940 = vrot.slane %v1230, 2
      %v1941 = vsel %vm1922, %v1938, %v1940
      %v1942 = vrot.slane %v1231, 2
      %v1943 = vsel %vm1922, %v1940, %v1942
      %v1944 = vrot.slane %v1232, 2
      %v1945 = vsel %vm1922, %v1942, %v1944
      %v1946 = vrot.slane %v1233, 2
      %v1947 = vsel %vm1922, %v1944, %v1946
      %v1948 = vrot.slane %v1234, 2
      %v1949 = vsel %vm1922, %v1946, %v1948
      %v1950 = vrot.slane %v1235, 2
      %v1951 = vsel %vm1922, %v1948, %v1950
      %v1952 = vrot.slane %v1236, 2
      %v1953 = vsel %vm1922, %v1950, %v1952
      %v1954 = vrot.slane %v1237, 2
      %v1955 = vsel %vm1922, %v1952, %v1954
      %v1956 = vrot.slane %v1238, 2
      %v1957 = vsel %vm1922, %v1954, %v1956
      %v1958 = vrot.slane %v1239, 2
      %v1959 = vsel %vm1922, %v1956, %v1958
      %v1960 = vrot.slane %v1240, 2
      %v1961 = vsel %vm1922, %v1958, %v1960
      %v1962 = vrot.slane %v1507, 2
      %v1963 = vsel %vm1922, %v1960, %v1962
      %v1965 = vsel %vm487, %v1925, 0
      %v1968 = vsel %vm487, %v1927, 0
      %v1971 = vsel %vm487, %v1929, 0
      %v1974 = vsel %vm487, %v1931, 0
      %v1977 = vsel %vm487, %v1933, 0
      %v1980 = vsel %vm487, %v1935, 0
      %v1983 = vsel %vm487, %v1937, 0
      %v1986 = vsel %vm487, %v1939, 0
      %v1989 = vsel %vm487, %v1941, 0
      %v1992 = vsel %vm487, %v1943, 0
      %v1995 = vsel %vm487, %v1945, 0
      %v1998 = vsel %vm487, %v1947, 0
      %v2001 = vsel %vm487, %v1949, 0
      %v2004 = vsel %vm487, %v1951, 0
      %v2007 = vsel %vm487, %v1953, 0
      %v2010 = vsel %vm487, %v1955, 0
      %v2013 = vsel %vm487, %v1957, 0
      %v2016 = vsel %vm487, %v1959, 0
      %v2019 = vsel %vm487, %v1961, 0
      %v2022 = vsel %vm487, %v1963, 0
      %v2025 = vsel %vm487, %v1962, 0
      %v2028 = vsel %vm551, %v1918, 0
      %2030 = vmatpush.bf16.msra.mxu0 0
      %2031 = vmatpush.bf16.msra.mxu0 0
      %2032 = vmatpush.bf16.msra.mxu0 0
      %2033 = vmatpush.bf16.msra.mxu0 0
      %2034 = vmatpush.bf16.msra.mxu0 0
      %2035 = vmatpush.bf16.msra.mxu0 0
      %2036 = vmatpush.bf16.msra.mxu0 0
      %2037 = vmatpush.bf16.msra.mxu0 %v2028
      %2038 = vmatmul.bf16.gmra.mxu0 %v1965
      %v2039 = vpop.f32.mrf.mxu0
      %v2040 = vadd.f32 0.0, %v2039
      %v2041 = vpop.f32.mrf.mxu0
      %v2042 = vadd.f32 0.0, %v2041
      %2043 = vmatmul.bf16.gmra.mxu0 %v1968
      %v2044 = vpop.f32.mrf.mxu0
      %v2045 = vadd.f32 0.0, %v2044
      %v2046 = vpop.f32.mrf.mxu0
      %v2047 = vadd.f32 0.0, %v2046
      %2048 = vmatmul.bf16.gmra.mxu0 %v1971
      %v2049 = vpop.f32.mrf.mxu0
      %v2050 = vadd.f32 0.0, %v2049
      %v2051 = vpop.f32.mrf.mxu0
      %v2052 = vadd.f32 0.0, %v2051
      %2053 = vmatmul.bf16.gmra.mxu0 %v1974
      %v2054 = vpop.f32.mrf.mxu0
      %v2055 = vadd.f32 0.0, %v2054
      %v2056 = vpop.f32.mrf.mxu0
      %v2057 = vadd.f32 0.0, %v2056
      %2058 = vmatmul.bf16.gmra.mxu0 %v1977
      %v2059 = vpop.f32.mrf.mxu0
      %v2060 = vadd.f32 0.0, %v2059
      %v2061 = vpop.f32.mrf.mxu0
      %v2062 = vadd.f32 0.0, %v2061
      %2063 = vmatmul.bf16.gmra.mxu0 %v1980
      %v2064 = vpop.f32.mrf.mxu0
      %v2065 = vadd.f32 0.0, %v2064
      %v2066 = vpop.f32.mrf.mxu0
      %v2067 = vadd.f32 0.0, %v2066
      %2068 = vmatmul.bf16.gmra.mxu0 %v1983
      %v2069 = vpop.f32.mrf.mxu0
      %v2070 = vadd.f32 0.0, %v2069
      %v2071 = vpop.f32.mrf.mxu0
      %v2072 = vadd.f32 0.0, %v2071
      %2073 = vmatmul.bf16.gmra.mxu0 %v1986
      %v2074 = vpop.f32.mrf.mxu0
      %v2075 = vadd.f32 0.0, %v2074
      %v2076 = vpop.f32.mrf.mxu0
      %v2077 = vadd.f32 0.0, %v2076
      %2078 = vmatmul.bf16.gmra.mxu0 %v1989
      %v2079 = vpop.f32.mrf.mxu0
      %v2080 = vadd.f32 0.0, %v2079
      %v2081 = vpop.f32.mrf.mxu0
      %v2082 = vadd.f32 0.0, %v2081
      %2083 = vmatmul.bf16.gmra.mxu0 %v1992
      %v2084 = vpop.f32.mrf.mxu0
      %v2085 = vadd.f32 0.0, %v2084
      %v2086 = vpop.f32.mrf.mxu0
      %v2087 = vadd.f32 0.0, %v2086
      %2088 = vmatmul.bf16.gmra.mxu0 %v1995
      %v2089 = vpop.f32.mrf.mxu0
      %v2090 = vadd.f32 0.0, %v2089
      %v2091 = vpop.f32.mrf.mxu0
      %v2092 = vadd.f32 0.0, %v2091
      %2093 = vmatmul.bf16.gmra.mxu0 %v1998
      %v2094 = vpop.f32.mrf.mxu0
      %v2095 = vadd.f32 0.0, %v2094
      %v2096 = vpop.f32.mrf.mxu0
      %v2097 = vadd.f32 0.0, %v2096
      %2098 = vmatmul.bf16.gmra.mxu0 %v2001
      %v2099 = vpop.f32.mrf.mxu0
      %v2100 = vadd.f32 0.0, %v2099
      %v2101 = vpop.f32.mrf.mxu0
      %v2102 = vadd.f32 0.0, %v2101
      %2103 = vmatmul.bf16.gmra.mxu0 %v2004
      %v2104 = vpop.f32.mrf.mxu0
      %v2105 = vadd.f32 0.0, %v2104
      %v2106 = vpop.f32.mrf.mxu0
      %v2107 = vadd.f32 0.0, %v2106
      %2108 = vmatmul.bf16.gmra.mxu0 %v2007
      %v2109 = vpop.f32.mrf.mxu0
      %v2110 = vadd.f32 0.0, %v2109
      %v2111 = vpop.f32.mrf.mxu0
      %v2112 = vadd.f32 0.0, %v2111
      %2113 = vmatmul.bf16.gmra.mxu0 %v2010
      %v2114 = vpop.f32.mrf.mxu0
      %v2115 = vadd.f32 0.0, %v2114
      %v2116 = vpop.f32.mrf.mxu0
      %v2117 = vadd.f32 0.0, %v2116
      %2118 = vmatmul.bf16.gmra.mxu0 %v2013
      %v2119 = vpop.f32.mrf.mxu0
      %v2120 = vadd.f32 0.0, %v2119
      %v2121 = vpop.f32.mrf.mxu0
      %v2122 = vadd.f32 0.0, %v2121
      %2123 = vmatmul.bf16.gmra.mxu0 %v2016
      %v2124 = vpop.f32.mrf.mxu0
      %v2125 = vadd.f32 0.0, %v2124
      %v2126 = vpop.f32.mrf.mxu0
      %v2127 = vadd.f32 0.0, %v2126
      %2128 = vmatmul.bf16.gmra.mxu0 %v2019
      %v2129 = vpop.f32.mrf.mxu0
      %v2130 = vadd.f32 0.0, %v2129
      %v2131 = vpop.f32.mrf.mxu0
      %v2132 = vadd.f32 0.0, %v2131
      %2133 = vmatmul.bf16.gmra.mxu0 %v2022
      %v2134 = vpop.f32.mrf.mxu0
      %v2135 = vadd.f32 0.0, %v2134
      %v2136 = vpop.f32.mrf.mxu0
      %v2137 = vadd.f32 0.0, %v2136
      %2138 = vmatmul.bf16.gmra.mxu0 %v2025
      %v2139 = vpop.f32.mrf.mxu0
      %v2140 = vadd.f32 0.0, %v2139
      %v2141 = vpop.f32.mrf.mxu0
      %2142 = vdwg.mxu0
      %v2143 = vadd.f32 %v1876, %v2040
      %v2144 = vadd.f32 %v1877, %v2042
      %v2145 = vadd.f32 %v1878, %v2045
      %v2146 = vadd.f32 %v1879, %v2047
      %v2147 = vadd.f32 %v1880, %v2050
      %v2148 = vadd.f32 %v1881, %v2052
      %v2149 = vadd.f32 %v1882, %v2055
      %v2150 = vadd.f32 %v1883, %v2057
      %v2151 = vadd.f32 %v1884, %v2060
      %v2152 = vadd.f32 %v1885, %v2062
      %v2153 = vadd.f32 %v1886, %v2065
      %v2154 = vadd.f32 %v1887, %v2067
      %v2155 = vadd.f32 %v1888, %v2070
      %v2156 = vadd.f32 %v1889, %v2072
      %v2157 = vadd.f32 %v1890, %v2075
      %v2158 = vadd.f32 %v1891, %v2077
      %v2159 = vadd.f32 %v1892, %v2080
      %v2160 = vadd.f32 %v1893, %v2082
      %v2161 = vadd.f32 %v1894, %v2085
      %v2162 = vadd.f32 %v1895, %v2087
      %v2163 = vadd.f32 %v1896, %v2090
      %v2164 = vadd.f32 %v1897, %v2092
      %v2165 = vadd.f32 %v1898, %v2095
      %v2166 = vadd.f32 %v1899, %v2097
      %v2167 = vadd.f32 %v1900, %v2100
      %v2168 = vadd.f32 %v1901, %v2102
      %v2169 = vadd.f32 %v1902, %v2105
      %v2170 = vadd.f32 %v1903, %v2107
      %v2171 = vadd.f32 %v1904, %v2110
      %v2172 = vadd.f32 %v1905, %v2112
      %v2173 = vadd.f32 %v1906, %v2115
      %v2174 = vadd.f32 %v1907, %v2117
      %v2175 = vadd.f32 %v1908, %v2120
      %v2176 = vadd.f32 %v1909, %v2122
      %v2177 = vadd.f32 %v1910, %v2125
      %v2178 = vadd.f32 %v1911, %v2127
      %v2179 = vadd.f32 %v1912, %v2130
      %v2180 = vadd.f32 %v1913, %v2132
      %v2181 = vadd.f32 %v1914, %v2135
      %v2182 = vadd.f32 %v1915, %v2137
      %v2183 = vadd.f32 %v1916, %v2140
      %v2184 = vld [vmem:[%s165 + $0x10] sm:$0xc]
      %v2185 = vld [vmem:[%s165 + $0x14] sm:$0xf]
      %v2186 = vld [vmem:[%s165 + $0x18] sm:$0xf]
      %v2187 = vld [vmem:[%s165 + $0x1c] sm:$0xf]
      %v2188 = vld [vmem:[%s165 + $0x20] sm:$0xf]
      %v2189 = vld [vmem:[%s165 + $0x24] sm:$0xf]
      %v2190 = vld [vmem:[%s165 + $0x28] sm:$0xf]
      %v2191 = vld [vmem:[%s165 + $0x2c] sm:$0xf]
      %v2192 = vld [vmem:[%s165 + $0x30] sm:$0xf]
      %v2193 = vld [vmem:[%s165 + $0x34] sm:$0xf]
      %v2194 = vld [vmem:[%s165 + $0x38] sm:$0xf]
      %v2195 = vld [vmem:[%s165 + $0x3c] sm:$0xf]
      %v2196 = vld [vmem:[%s165 + $0x40] sm:$0xf]
      %v2197 = vld [vmem:[%s165 + $0x44] sm:$0xf]
      %v2198 = vld [vmem:[%s165 + $0x48] sm:$0xf]
      %v2199 = vld [vmem:[%s165 + $0x4c] sm:$0xf]
      %v2200 = vld [vmem:[%s165 + $0x50] sm:$0xf]
      %v2201 = vld [vmem:[%s165 + $0x54] sm:$0xf]
      %v2202 = vld [vmem:[%s165 + $0x58] sm:$0xf]
      %v2203 = vld [vmem:[%s165 + $0x5c] sm:$0xf]
      %v2204 = vld [vmem:[%s165 + $0x60] sm:$0xf]
      %v2205 = vld [vmem:[%s165 + $0x64] sm:$0xf]
      %v2206 = vld [vmem:[%s165 + $0x68] sm:$0xf]
      %v2207 = vld [vmem:[%s165 + $0x6c] sm:$0xf]
      %v2208 = vld [vmem:[%s165 + $0x70] sm:$0xf]
      %v2209 = vld [vmem:[%s165 + $0x74] sm:$0xf]
      %v2210 = vld [vmem:[%s165 + $0x78] sm:$0xf]
      %v2211 = vld [vmem:[%s165 + $0x7c] sm:$0xf]
      %v2212 = vld [vmem:[%s165 + $0x80] sm:$0xf]
      %v2213 = vld [vmem:[%s165 + $0x84] sm:$0xf]
      %v2214 = vld [vmem:[%s165 + $0x88] sm:$0xf]
      %v2215 = vld [vmem:[%s165 + $0x8c] sm:$0xf]
      %v2216 = vld [vmem:[%s165 + $0x90] sm:$0xf]
      %v2217 = vld [vmem:[%s165 + $0x94] sm:$0xf]
      %v2218 = vld [vmem:[%s165 + $0x98] sm:$0xf]
      %v2219 = vld [vmem:[%s165 + $0x9c] sm:$0xf]
      %v2220 = vld [vmem:[%s165 + $0xa0] sm:$0xf]
      %v2221 = vld [vmem:[%s165 + $0xa4] sm:$0xf]
      %v2222 = vld [vmem:[%s165 + $0xa8] sm:$0xf]
      %v2223 = vld [vmem:[%s165 + $0xac] sm:$0xf]
      %v2224 = vld [vmem:[%s165 + $0xb0] sm:$0xf]
      %v2225 = vld [vmem:[%s1 + $0x18] sm:$0xf]
      %v2267 = vunpack.c.l.b16 %v2184
      %v2268 = vunpack.c.l.b16 %v2185
      %v2269 = vunpack.c.l.b16 %v2186
      %v2270 = vunpack.c.l.b16 %v2187
      %v2271 = vunpack.c.l.b16 %v2188
      %v2272 = vunpack.c.l.b16 %v2189
      %v2273 = vunpack.c.l.b16 %v2190
      %v2274 = vunpack.c.l.b16 %v2191
      %v2275 = vunpack.c.l.b16 %v2192
      %v2276 = vunpack.c.l.b16 %v2193
      %v2277 = vunpack.c.l.b16 %v2194
      %v2278 = vunpack.c.l.b16 %v2195
      %v2279 = vunpack.c.l.b16 %v2196
      %v2280 = vunpack.c.l.b16 %v2197
      %v2281 = vunpack.c.l.b16 %v2198
      %v2282 = vunpack.c.l.b16 %v2199
      %v2283 = vunpack.c.l.b16 %v2200
      %v2284 = vunpack.c.l.b16 %v2201
      %v2285 = vunpack.c.l.b16 %v2202
      %v2286 = vunpack.c.l.b16 %v2203
      %v2287 = vunpack.c.l.b16 %v2204
      %v2288 = vunpack.c.l.b16 %v2205
      %v2289 = vunpack.c.l.b16 %v2206
      %v2290 = vunpack.c.l.b16 %v2207
      %v2291 = vunpack.c.l.b16 %v2208
      %v2292 = vunpack.c.l.b16 %v2209
      %v2293 = vunpack.c.l.b16 %v2210
      %v2294 = vunpack.c.l.b16 %v2211
      %v2295 = vunpack.c.l.b16 %v2212
      %v2296 = vunpack.c.l.b16 %v2213
      %v2297 = vunpack.c.l.b16 %v2214
      %v2298 = vunpack.c.l.b16 %v2215
      %v2299 = vunpack.c.l.b16 %v2216
      %v2300 = vunpack.c.l.b16 %v2217
      %v2301 = vunpack.c.l.b16 %v2218
      %v2302 = vunpack.c.l.b16 %v2219
      %v2303 = vunpack.c.l.b16 %v2220
      %v2304 = vunpack.c.l.b16 %v2221
      %v2305 = vunpack.c.l.b16 %v2222
      %v2306 = vunpack.c.l.b16 %v2223
      %v2307 = vunpack.c.l.b16 %v2224
      %v2308 = vpack.c.b16 %v2268, %v2267
      %v2309 = vpack.c.b16 %v2270, %v2269
      %v2310 = vpack.c.b16 %v2272, %v2271
      %v2311 = vpack.c.b16 %v2274, %v2273
      %v2312 = vpack.c.b16 %v2276, %v2275
      %v2313 = vpack.c.b16 %v2278, %v2277
      %v2314 = vpack.c.b16 %v2280, %v2279
      %v2315 = vpack.c.b16 %v2282, %v2281
      %v2316 = vpack.c.b16 %v2284, %v2283
      %v2317 = vpack.c.b16 %v2286, %v2285
      %v2318 = vpack.c.b16 %v2288, %v2287
      %v2319 = vpack.c.b16 %v2290, %v2289
      %v2320 = vpack.c.b16 %v2292, %v2291
      %v2321 = vpack.c.b16 %v2294, %v2293
      %v2322 = vpack.c.b16 %v2296, %v2295
      %v2323 = vpack.c.b16 %v2298, %v2297
      %v2324 = vpack.c.b16 %v2300, %v2299
      %v2325 = vpack.c.b16 %v2302, %v2301
      %v2326 = vpack.c.b16 %v2304, %v2303
      %v2327 = vpack.c.b16 %v2306, %v2305
      %v2328 = vpack.c.b16 %v2307, %v2307
      %v2329 = vrot.slane %v2308, 2
      %v2330 = vrot.slane %v2309, 2
      %v2331 = vsel %vm1922, %v2329, %v2330
      %v2332 = vrot.slane %v2310, 2
      %v2333 = vsel %vm1922, %v2330, %v2332
      %v2334 = vrot.slane %v2311, 2
      %v2335 = vsel %vm1922, %v2332, %v2334
      %v2336 = vrot.slane %v2312, 2
      %v2337 = vsel %vm1922, %v2334, %v2336
      %v2338 = vrot.slane %v2313, 2
      %v2339 = vsel %vm1922, %v2336, %v2338
      %v2340 = vrot.slane %v2314, 2
      %v2341 = vsel %vm1922, %v2338, %v2340
      %v2342 = vrot.slane %v2315, 2
      %v2343 = vsel %vm1922, %v2340, %v2342
      %v2344 = vrot.slane %v2316, 2
      %v2345 = vsel %vm1922, %v2342, %v2344
      %v2346 = vrot.slane %v2317, 2
      %v2347 = vsel %vm1922, %v2344, %v2346
      %v2348 = vrot.slane %v2318, 2
      %v2349 = vsel %vm1922, %v2346, %v2348
      %v2350 = vrot.slane %v2319, 2
      %v2351 = vsel %vm1922, %v2348, %v2350
      %v2352 = vrot.slane %v2320, 2
      %v2353 = vsel %vm1922, %v2350, %v2352
      %v2354 = vrot.slane %v2321, 2
      %v2355 = vsel %vm1922, %v2352, %v2354
      %v2356 = vrot.slane %v2322, 2
      %v2357 = vsel %vm1922, %v2354, %v2356
      %v2358 = vrot.slane %v2323, 2
      %v2359 = vsel %vm1922, %v2356, %v2358
      %v2360 = vrot.slane %v2324, 2
      %v2361 = vsel %vm1922, %v2358, %v2360
      %v2362 = vrot.slane %v2325, 2
      %v2363 = vsel %vm1922, %v2360, %v2362
      %v2364 = vrot.slane %v2326, 2
      %v2365 = vsel %vm1922, %v2362, %v2364
      %v2366 = vrot.slane %v2327, 2
      %v2367 = vsel %vm1922, %v2364, %v2366
      %v2368 = vrot.slane %v2328, 2
      %v2369 = vsel %vm1922, %v2366, %v2368
      %v2371 = vsel %vm487, %v2331, 0
      %v2374 = vsel %vm487, %v2333, 0
      %v2377 = vsel %vm487, %v2335, 0
      %v2380 = vsel %vm487, %v2337, 0
      %v2383 = vsel %vm487, %v2339, 0
      %v2386 = vsel %vm487, %v2341, 0
      %v2389 = vsel %vm487, %v2343, 0
      %v2392 = vsel %vm487, %v2345, 0
      %v2395 = vsel %vm487, %v2347, 0
      %v2398 = vsel %vm487, %v2349, 0
      %v2401 = vsel %vm487, %v2351, 0
      %v2404 = vsel %vm487, %v2353, 0
      %v2407 = vsel %vm487, %v2355, 0
      %v2410 = vsel %vm487, %v2357, 0
      %v2413 = vsel %vm487, %v2359, 0
      %v2416 = vsel %vm487, %v2361, 0
      %v2419 = vsel %vm487, %v2363, 0
      %v2422 = vsel %vm487, %v2365, 0
      %v2425 = vsel %vm487, %v2367, 0
      %v2428 = vsel %vm487, %v2369, 0
      %v2431 = vsel %vm487, %v2368, 0
      %v2434 = vsel %vm551, %v2225, 0
      %2436 = vmatpush.bf16.msra.mxu0 0
      %2437 = vmatpush.bf16.msra.mxu0 0
      %2438 = vmatpush.bf16.msra.mxu0 0
      %2439 = vmatpush.bf16.msra.mxu0 0
      %2440 = vmatpush.bf16.msra.mxu0 0
      %2441 = vmatpush.bf16.msra.mxu0 0
      %2442 = vmatpush.bf16.msra.mxu0 0
      %2443 = vmatpush.bf16.msra.mxu0 %v2434
      %2444 = vmatmul.bf16.gmra.mxu0 %v2371
      %v2445 = vpop.f32.mrf.mxu0
      %v2446 = vadd.f32 0.0, %v2445
      %v2447 = vpop.f32.mrf.mxu0
      %v2448 = vadd.f32 0.0, %v2447
      %2449 = vmatmul.bf16.gmra.mxu0 %v2374
      %v2450 = vpop.f32.mrf.mxu0
      %v2451 = vadd.f32 0.0, %v2450
      %v2452 = vpop.f32.mrf.mxu0
      %v2453 = vadd.f32 0.0, %v2452
      %2454 = vmatmul.bf16.gmra.mxu0 %v2377
      %v2455 = vpop.f32.mrf.mxu0
      %v2456 = vadd.f32 0.0, %v2455
      %v2457 = vpop.f32.mrf.mxu0
      %v2458 = vadd.f32 0.0, %v2457
      %2459 = vmatmul.bf16.gmra.mxu0 %v2380
      %v2460 = vpop.f32.mrf.mxu0
      %v2461 = vadd.f32 0.0, %v2460
      %v2462 = vpop.f32.mrf.mxu0
      %v2463 = vadd.f32 0.0, %v2462
      %2464 = vmatmul.bf16.gmra.mxu0 %v2383
      %v2465 = vpop.f32.mrf.mxu0
      %v2466 = vadd.f32 0.0, %v2465
      %v2467 = vpop.f32.mrf.mxu0
      %v2468 = vadd.f32 0.0, %v2467
      %2469 = vmatmul.bf16.gmra.mxu0 %v2386
      %v2470 = vpop.f32.mrf.mxu0
      %v2471 = vadd.f32 0.0, %v2470
      %v2472 = vpop.f32.mrf.mxu0
      %v2473 = vadd.f32 0.0, %v2472
      %2474 = vmatmul.bf16.gmra.mxu0 %v2389
      %v2475 = vpop.f32.mrf.mxu0
      %v2476 = vadd.f32 0.0, %v2475
      %v2477 = vpop.f32.mrf.mxu0
      %v2478 = vadd.f32 0.0, %v2477
      %2479 = vmatmul.bf16.gmra.mxu0 %v2392
      %v2480 = vpop.f32.mrf.mxu0
      %v2481 = vadd.f32 0.0, %v2480
      %v2482 = vpop.f32.mrf.mxu0
      %v2483 = vadd.f32 0.0, %v2482
      %2484 = vmatmul.bf16.gmra.mxu0 %v2395
      %v2485 = vpop.f32.mrf.mxu0
      %v2486 = vadd.f32 0.0, %v2485
      %v2487 = vpop.f32.mrf.mxu0
      %v2488 = vadd.f32 0.0, %v2487
      %2489 = vmatmul.bf16.gmra.mxu0 %v2398
      %v2490 = vpop.f32.mrf.mxu0
      %v2491 = vadd.f32 0.0, %v2490
      %v2492 = vpop.f32.mrf.mxu0
      %v2493 = vadd.f32 0.0, %v2492
      %2494 = vmatmul.bf16.gmra.mxu0 %v2401
      %v2495 = vpop.f32.mrf.mxu0
      %v2496 = vadd.f32 0.0, %v2495
      %v2497 = vpop.f32.mrf.mxu0
      %v2498 = vadd.f32 0.0, %v2497
      %2499 = vmatmul.bf16.gmra.mxu0 %v2404
      %v2500 = vpop.f32.mrf.mxu0
      %v2501 = vadd.f32 0.0, %v2500
      %v2502 = vpop.f32.mrf.mxu0
      %v2503 = vadd.f32 0.0, %v2502
      %2504 = vmatmul.bf16.gmra.mxu0 %v2407
      %v2505 = vpop.f32.mrf.mxu0
      %v2506 = vadd.f32 0.0, %v2505
      %v2507 = vpop.f32.mrf.mxu0
      %v2508 = vadd.f32 0.0, %v2507
      %2509 = vmatmul.bf16.gmra.mxu0 %v2410
      %v2510 = vpop.f32.mrf.mxu0
      %v2511 = vadd.f32 0.0, %v2510
      %v2512 = vpop.f32.mrf.mxu0
      %v2513 = vadd.f32 0.0, %v2512
      %2514 = vmatmul.bf16.gmra.mxu0 %v2413
      %v2515 = vpop.f32.mrf.mxu0
      %v2516 = vadd.f32 0.0, %v2515
      %v2517 = vpop.f32.mrf.mxu0
      %v2518 = vadd.f32 0.0, %v2517
      %2519 = vmatmul.bf16.gmra.mxu0 %v2416
      %v2520 = vpop.f32.mrf.mxu0
      %v2521 = vadd.f32 0.0, %v2520
      %v2522 = vpop.f32.mrf.mxu0
      %v2523 = vadd.f32 0.0, %v2522
      %2524 = vmatmul.bf16.gmra.mxu0 %v2419
      %v2525 = vpop.f32.mrf.mxu0
      %v2526 = vadd.f32 0.0, %v2525
      %v2527 = vpop.f32.mrf.mxu0
      %v2528 = vadd.f32 0.0, %v2527
      %2529 = vmatmul.bf16.gmra.mxu0 %v2422
      %v2530 = vpop.f32.mrf.mxu0
      %v2531 = vadd.f32 0.0, %v2530
      %v2532 = vpop.f32.mrf.mxu0
      %v2533 = vadd.f32 0.0, %v2532
      %2534 = vmatmul.bf16.gmra.mxu0 %v2425
      %v2535 = vpop.f32.mrf.mxu0
      %v2536 = vadd.f32 0.0, %v2535
      %v2537 = vpop.f32.mrf.mxu0
      %v2538 = vadd.f32 0.0, %v2537
      %2539 = vmatmul.bf16.gmra.mxu0 %v2428
      %v2540 = vpop.f32.mrf.mxu0
      %v2541 = vadd.f32 0.0, %v2540
      %v2542 = vpop.f32.mrf.mxu0
      %v2543 = vadd.f32 0.0, %v2542
      %2544 = vmatmul.bf16.gmra.mxu0 %v2431
      %v2545 = vpop.f32.mrf.mxu0
      %v2546 = vadd.f32 0.0, %v2545
      %v2547 = vpop.f32.mrf.mxu0
      %2548 = vdwg.mxu0
      %v2549 = vadd.f32 %v2143, %v2446
      %v2550 = vadd.f32 %v2144, %v2448
      %v2551 = vadd.f32 %v2145, %v2451
      %v2552 = vadd.f32 %v2146, %v2453
      %v2553 = vadd.f32 %v2147, %v2456
      %v2554 = vadd.f32 %v2148, %v2458
      %v2555 = vadd.f32 %v2149, %v2461
      %v2556 = vadd.f32 %v2150, %v2463
      %v2557 = vadd.f32 %v2151, %v2466
      %v2558 = vadd.f32 %v2152, %v2468
      %v2559 = vadd.f32 %v2153, %v2471
      %v2560 = vadd.f32 %v2154, %v2473
      %v2561 = vadd.f32 %v2155, %v2476
      %v2562 = vadd.f32 %v2156, %v2478
      %v2563 = vadd.f32 %v2157, %v2481
      %v2564 = vadd.f32 %v2158, %v2483
      %v2565 = vadd.f32 %v2159, %v2486
      %v2566 = vadd.f32 %v2160, %v2488
      %v2567 = vadd.f32 %v2161, %v2491
      %v2568 = vadd.f32 %v2162, %v2493
      %v2569 = vadd.f32 %v2163, %v2496
      %v2570 = vadd.f32 %v2164, %v2498
      %v2571 = vadd.f32 %v2165, %v2501
      %v2572 = vadd.f32 %v2166, %v2503
      %v2573 = vadd.f32 %v2167, %v2506
      %v2574 = vadd.f32 %v2168, %v2508
      %v2575 = vadd.f32 %v2169, %v2511
      %v2576 = vadd.f32 %v2170, %v2513
      %v2577 = vadd.f32 %v2171, %v2516
      %v2578 = vadd.f32 %v2172, %v2518
      %v2579 = vadd.f32 %v2173, %v2521
      %v2580 = vadd.f32 %v2174, %v2523
      %v2581 = vadd.f32 %v2175, %v2526
      %v2582 = vadd.f32 %v2176, %v2528
      %v2583 = vadd.f32 %v2177, %v2531
      %v2584 = vadd.f32 %v2178, %v2533
      %v2585 = vadd.f32 %v2179, %v2536
      %v2586 = vadd.f32 %v2180, %v2538
      %v2587 = vadd.f32 %v2181, %v2541
      %v2588 = vadd.f32 %v2182, %v2543
      %v2589 = vadd.f32 %v2183, %v2546
      %v2590 = vld [vmem:[%s165 + $0x10] sm:$0xc]
      %v2591 = vld [vmem:[%s165 + $0x14] sm:$0xf]
      %v2592 = vld [vmem:[%s165 + $0x18] sm:$0xf]
      %v2593 = vld [vmem:[%s165 + $0x1c] sm:$0xf]
      %v2594 = vld [vmem:[%s165 + $0x20] sm:$0xf]
      %v2595 = vld [vmem:[%s165 + $0x24] sm:$0xf]
      %v2596 = vld [vmem:[%s165 + $0x28] sm:$0xf]
      %v2597 = vld [vmem:[%s165 + $0x2c] sm:$0xf]
      %v2598 = vld [vmem:[%s165 + $0x30] sm:$0xf]
      %v2599 = vld [vmem:[%s165 + $0x34] sm:$0xf]
      %v2600 = vld [vmem:[%s165 + $0x38] sm:$0xf]
      %v2601 = vld [vmem:[%s165 + $0x3c] sm:$0xf]
      %v2602 = vld [vmem:[%s165 + $0x40] sm:$0xf]
      %v2603 = vld [vmem:[%s165 + $0x44] sm:$0xf]
      %v2604 = vld [vmem:[%s165 + $0x48] sm:$0xf]
      %v2605 = vld [vmem:[%s165 + $0x4c] sm:$0xf]
      %v2606 = vld [vmem:[%s165 + $0x50] sm:$0xf]
      %v2607 = vld [vmem:[%s165 + $0x54] sm:$0xf]
      %v2608 = vld [vmem:[%s165 + $0x58] sm:$0xf]
      %v2609 = vld [vmem:[%s165 + $0x5c] sm:$0xf]
      %v2610 = vld [vmem:[%s165 + $0x60] sm:$0xf]
      %v2611 = vld [vmem:[%s165 + $0x64] sm:$0xf]
      %v2612 = vld [vmem:[%s165 + $0x68] sm:$0xf]
      %v2613 = vld [vmem:[%s165 + $0x6c] sm:$0xf]
      %v2614 = vld [vmem:[%s165 + $0x70] sm:$0xf]
      %v2615 = vld [vmem:[%s165 + $0x74] sm:$0xf]
      %v2616 = vld [vmem:[%s165 + $0x78] sm:$0xf]
      %v2617 = vld [vmem:[%s165 + $0x7c] sm:$0xf]
      %v2618 = vld [vmem:[%s165 + $0x80] sm:$0xf]
      %v2619 = vld [vmem:[%s165 + $0x84] sm:$0xf]
      %v2620 = vld [vmem:[%s165 + $0x88] sm:$0xf]
      %v2621 = vld [vmem:[%s165 + $0x8c] sm:$0xf]
      %v2622 = vld [vmem:[%s165 + $0x90] sm:$0xf]
      %v2623 = vld [vmem:[%s165 + $0x94] sm:$0xf]
      %v2624 = vld [vmem:[%s165 + $0x98] sm:$0xf]
      %v2625 = vld [vmem:[%s165 + $0x9c] sm:$0xf]
      %v2626 = vld [vmem:[%s165 + $0xa0] sm:$0xf]
      %v2627 = vld [vmem:[%s165 + $0xa4] sm:$0xf]
      %v2628 = vld [vmem:[%s165 + $0xa8] sm:$0xf]
      %v2629 = vld [vmem:[%s165 + $0xac] sm:$0xf]
      %v2630 = vld [vmem:[%s165 + $0xb0] sm:$0xf]
      %v2631 = vld [vmem:[%s165 + $0xb4] sm:$0x1]
      %v2632 = vld [vmem:[%s1 + $0x1c] sm:$0xf]
      %v2675 = vunpack.c.l.b16 %v2590
      %v2676 = vunpack.c.l.b16 %v2591
      %v2677 = vunpack.c.l.b16 %v2592
      %v2678 = vunpack.c.l.b16 %v2593
      %v2679 = vunpack.c.l.b16 %v2594
      %v2680 = vunpack.c.l.b16 %v2595
      %v2681 = vunpack.c.l.b16 %v2596
      %v2682 = vunpack.c.l.b16 %v2597
      %v2683 = vunpack.c.l.b16 %v2598
      %v2684 = vunpack.c.l.b16 %v2599
      %v2685 = vunpack.c.l.b16 %v2600
      %v2686 = vunpack.c.l.b16 %v2601
      %v2687 = vunpack.c.l.b16 %v2602
      %v2688 = vunpack.c.l.b16 %v2603
      %v2689 = vunpack.c.l.b16 %v2604
      %v2690 = vunpack.c.l.b16 %v2605
      %v2691 = vunpack.c.l.b16 %v2606
      %v2692 = vunpack.c.l.b16 %v2607
      %v2693 = vunpack.c.l.b16 %v2608
      %v2694 = vunpack.c.l.b16 %v2609
      %v2695 = vunpack.c.l.b16 %v2610
      %v2696 = vunpack.c.l.b16 %v2611
      %v2697 = vunpack.c.l.b16 %v2612
      %v2698 = vunpack.c.l.b16 %v2613
      %v2699 = vunpack.c.l.b16 %v2614
      %v2700 = vunpack.c.l.b16 %v2615
      %v2701 = vunpack.c.l.b16 %v2616
      %v2702 = vunpack.c.l.b16 %v2617
      %v2703 = vunpack.c.l.b16 %v2618
      %v2704 = vunpack.c.l.b16 %v2619
      %v2705 = vunpack.c.l.b16 %v2620
      %v2706 = vunpack.c.l.b16 %v2621
      %v2707 = vunpack.c.l.b16 %v2622
      %v2708 = vunpack.c.l.b16 %v2623
      %v2709 = vunpack.c.l.b16 %v2624
      %v2710 = vunpack.c.l.b16 %v2625
      %v2711 = vunpack.c.l.b16 %v2626
      %v2712 = vunpack.c.l.b16 %v2627
      %v2713 = vunpack.c.l.b16 %v2628
      %v2714 = vunpack.c.l.b16 %v2629
      %v2715 = vunpack.c.l.b16 %v2630
      %v2716 = vunpack.c.l.b16 %v2631
      %v2717 = vpack.c.b16 %v2676, %v2675
      %v2718 = vpack.c.b16 %v2678, %v2677
      %v2719 = vpack.c.b16 %v2680, %v2679
      %v2720 = vpack.c.b16 %v2682, %v2681
      %v2721 = vpack.c.b16 %v2684, %v2683
      %v2722 = vpack.c.b16 %v2686, %v2685
      %v2723 = vpack.c.b16 %v2688, %v2687
      %v2724 = vpack.c.b16 %v2690, %v2689
      %v2725 = vpack.c.b16 %v2692, %v2691
      %v2726 = vpack.c.b16 %v2694, %v2693
      %v2727 = vpack.c.b16 %v2696, %v2695
      %v2728 = vpack.c.b16 %v2698, %v2697
      %v2729 = vpack.c.b16 %v2700, %v2699
      %v2730 = vpack.c.b16 %v2702, %v2701
      %v2731 = vpack.c.b16 %v2704, %v2703
      %v2732 = vpack.c.b16 %v2706, %v2705
      %v2733 = vpack.c.b16 %v2708, %v2707
      %v2734 = vpack.c.b16 %v2710, %v2709
      %v2735 = vpack.c.b16 %v2712, %v2711
      %v2736 = vpack.c.b16 %v2714, %v2713
      %v2737 = vpack.c.b16 %v2716, %v2715
      %vm2738 = vsmask.f32 5376
      %v2740 = vshrl.u32 %v2717, 16
      %v2742 = vrot.slane %v2740, 2
      %v2743 = vshll.u32 %v2717, 16
      %v2745 = vrot.slane %v2743, 3
      %v2746 = vor.u32 %v2742, %v2745
      %v2748 = vshrl.u32 %v2718, 16
      %v2750 = vrot.slane %v2748, 2
      %v2751 = vshll.u32 %v2718, 16
      %v2753 = vrot.slane %v2751, 3
      %v2754 = vor.u32 %v2750, %v2753
      %v2755 = vsel %vm2738, %v2746, %v2754
      %v2757 = vshrl.u32 %v2719, 16
      %v2759 = vrot.slane %v2757, 2
      %v2760 = vshll.u32 %v2719, 16
      %v2762 = vrot.slane %v2760, 3
      %v2763 = vor.u32 %v2759, %v2762
      %v2764 = vsel %vm2738, %v2754, %v2763
      %v2766 = vshrl.u32 %v2720, 16
      %v2768 = vrot.slane %v2766, 2
      %v2769 = vshll.u32 %v2720, 16
      %v2771 = vrot.slane %v2769, 3
      %v2772 = vor.u32 %v2768, %v2771
      %v2773 = vsel %vm2738, %v2763, %v2772
      %v2775 = vshrl.u32 %v2721, 16
      %v2777 = vrot.slane %v2775, 2
      %v2778 = vshll.u32 %v2721, 16
      %v2780 = vrot.slane %v2778, 3
      %v2781 = vor.u32 %v2777, %v2780
      %v2782 = vsel %vm2738, %v2772, %v2781
      %v2784 = vshrl.u32 %v2722, 16
      %v2786 = vrot.slane %v2784, 2
      %v2787 = vshll.u32 %v2722, 16
      %v2789 = vrot.slane %v2787, 3
      %v2790 = vor.u32 %v2786, %v2789
      %v2791 = vsel %vm2738, %v2781, %v2790
      %v2793 = vshrl.u32 %v2723, 16
      %v2795 = vrot.slane %v2793, 2
      %v2796 = vshll.u32 %v2723, 16
      %v2798 = vrot.slane %v2796, 3
      %v2799 = vor.u32 %v2795, %v2798
      %v2800 = vsel %vm2738, %v2790, %v2799
      %v2802 = vshrl.u32 %v2724, 16
      %v2804 = vrot.slane %v2802, 2
      %v2805 = vshll.u32 %v2724, 16
      %v2807 = vrot.slane %v2805, 3
      %v2808 = vor.u32 %v2804, %v2807
      %v2809 = vsel %vm2738, %v2799, %v2808
      %v2811 = vshrl.u32 %v2725, 16
      %v2813 = vrot.slane %v2811, 2
      %v2814 = vshll.u32 %v2725, 16
      %v2816 = vrot.slane %v2814, 3
      %v2817 = vor.u32 %v2813, %v2816
      %v2818 = vsel %vm2738, %v2808, %v2817
      %v2820 = vshrl.u32 %v2726, 16
      %v2822 = vrot.slane %v2820, 2
      %v2823 = vshll.u32 %v2726, 16
      %v2825 = vrot.slane %v2823, 3
      %v2826 = vor.u32 %v2822, %v2825
      %v2827 = vsel %vm2738, %v2817, %v2826
      %v2829 = vshrl.u32 %v2727, 16
      %v2831 = vrot.slane %v2829, 2
      %v2832 = vshll.u32 %v2727, 16
      %v2834 = vrot.slane %v2832, 3
      %v2835 = vor.u32 %v2831, %v2834
      %v2836 = vsel %vm2738, %v2826, %v2835
      %v2838 = vshrl.u32 %v2728, 16
      %v2840 = vrot.slane %v2838, 2
      %v2841 = vshll.u32 %v2728, 16
      %v2843 = vrot.slane %v2841, 3
      %v2844 = vor.u32 %v2840, %v2843
      %v2845 = vsel %vm2738, %v2835, %v2844
      %v2847 = vshrl.u32 %v2729, 16
      %v2849 = vrot.slane %v2847, 2
      %v2850 = vshll.u32 %v2729, 16
      %v2852 = vrot.slane %v2850, 3
      %v2853 = vor.u32 %v2849, %v2852
      %v2854 = vsel %vm2738, %v2844, %v2853
      %v2856 = vshrl.u32 %v2730, 16
      %v2858 = vrot.slane %v2856, 2
      %v2859 = vshll.u32 %v2730, 16
      %v2861 = vrot.slane %v2859, 3
      %v2862 = vor.u32 %v2858, %v2861
      %v2863 = vsel %vm2738, %v2853, %v2862
      %v2865 = vshrl.u32 %v2731, 16
      %v2867 = vrot.slane %v2865, 2
      %v2868 = vshll.u32 %v2731, 16
      %v2870 = vrot.slane %v2868, 3
      %v2871 = vor.u32 %v2867, %v2870
      %v2872 = vsel %vm2738, %v2862, %v2871
      %v2874 = vshrl.u32 %v2732, 16
      %v2876 = vrot.slane %v2874, 2
      %v2877 = vshll.u32 %v2732, 16
      %v2879 = vrot.slane %v2877, 3
      %v2880 = vor.u32 %v2876, %v2879
      %v2881 = vsel %vm2738, %v2871, %v2880
      %v2883 = vshrl.u32 %v2733, 16
      %v2885 = vrot.slane %v2883, 2
      %v2886 = vshll.u32 %v2733, 16
      %v2888 = vrot.slane %v2886, 3
      %v2889 = vor.u32 %v2885, %v2888
      %v2890 = vsel %vm2738, %v2880, %v2889
      %v2892 = vshrl.u32 %v2734, 16
      %v2894 = vrot.slane %v2892, 2
      %v2895 = vshll.u32 %v2734, 16
      %v2897 = vrot.slane %v2895, 3
      %v2898 = vor.u32 %v2894, %v2897
      %v2899 = vsel %vm2738, %v2889, %v2898
      %v2901 = vshrl.u32 %v2735, 16
      %v2903 = vrot.slane %v2901, 2
      %v2904 = vshll.u32 %v2735, 16
      %v2906 = vrot.slane %v2904, 3
      %v2907 = vor.u32 %v2903, %v2906
      %v2908 = vsel %vm2738, %v2898, %v2907
      %v2910 = vshrl.u32 %v2736, 16
      %v2912 = vrot.slane %v2910, 2
      %v2913 = vshll.u32 %v2736, 16
      %v2915 = vrot.slane %v2913, 3
      %v2916 = vor.u32 %v2912, %v2915
      %v2917 = vsel %vm2738, %v2907, %v2916
      %v2919 = vshrl.u32 %v2737, 16
      %v2921 = vrot.slane %v2919, 2
      %v2922 = vshll.u32 %v2737, 16
      %v2924 = vrot.slane %v2922, 3
      %v2925 = vor.u32 %v2921, %v2924
      %v2926 = vsel %vm2738, %v2916, %v2925
      %v2928 = vsel %vm487, %v2755, 0
      %v2931 = vsel %vm487, %v2764, 0
      %v2934 = vsel %vm487, %v2773, 0
      %v2937 = vsel %vm487, %v2782, 0
      %v2940 = vsel %vm487, %v2791, 0
      %v2943 = vsel %vm487, %v2800, 0
      %v2946 = vsel %vm487, %v2809, 0
      %v2949 = vsel %vm487, %v2818, 0
      %v2952 = vsel %vm487, %v2827, 0
      %v2955 = vsel %vm487, %v2836, 0
      %v2958 = vsel %vm487, %v2845, 0
      %v2961 = vsel %vm487, %v2854, 0
      %v2964 = vsel %vm487, %v2863, 0
      %v2967 = vsel %vm487, %v2872, 0
      %v2970 = vsel %vm487, %v2881, 0
      %v2973 = vsel %vm487, %v2890, 0
      %v2976 = vsel %vm487, %v2899, 0
      %v2979 = vsel %vm487, %v2908, 0
      %v2982 = vsel %vm487, %v2917, 0
      %v2985 = vsel %vm487, %v2926, 0
      %v2988 = vsel %vm487, %v2925, 0
      %v2991 = vsel %vm551, %v2632, 0
      %2993 = vmatpush.bf16.msra.mxu0 0
      %2994 = vmatpush.bf16.msra.mxu0 0
      %2995 = vmatpush.bf16.msra.mxu0 0
      %2996 = vmatpush.bf16.msra.mxu0 0
      %2997 = vmatpush.bf16.msra.mxu0 0
      %2998 = vmatpush.bf16.msra.mxu0 0
      %2999 = vmatpush.bf16.msra.mxu0 0
      %3000 = vmatpush.bf16.msra.mxu0 %v2991
      %3001 = vmatmul.bf16.gmra.mxu0 %v2928
      %v3002 = vpop.f32.mrf.mxu0
      %v3003 = vadd.f32 0.0, %v3002
      %v3004 = vpop.f32.mrf.mxu0
      %v3005 = vadd.f32 0.0, %v3004
      %3006 = vmatmul.bf16.gmra.mxu0 %v2931
      %v3007 = vpop.f32.mrf.mxu0
      %v3008 = vadd.f32 0.0, %v3007
      %v3009 = vpop.f32.mrf.mxu0
      %v3010 = vadd.f32 0.0, %v3009
      %3011 = vmatmul.bf16.gmra.mxu0 %v2934
      %v3012 = vpop.f32.mrf.mxu0
      %v3013 = vadd.f32 0.0, %v3012
      %v3014 = vpop.f32.mrf.mxu0
      %v3015 = vadd.f32 0.0, %v3014
      %3016 = vmatmul.bf16.gmra.mxu0 %v2937
      %v3017 = vpop.f32.mrf.mxu0
      %v3018 = vadd.f32 0.0, %v3017
      %v3019 = vpop.f32.mrf.mxu0
      %v3020 = vadd.f32 0.0, %v3019
      %3021 = vmatmul.bf16.gmra.mxu0 %v2940
      %v3022 = vpop.f32.mrf.mxu0
      %v3023 = vadd.f32 0.0, %v3022
      %v3024 = vpop.f32.mrf.mxu0
      %v3025 = vadd.f32 0.0, %v3024
      %3026 = vmatmul.bf16.gmra.mxu0 %v2943
      %v3027 = vpop.f32.mrf.mxu0
      %v3028 = vadd.f32 0.0, %v3027
      %v3029 = vpop.f32.mrf.mxu0
      %v3030 = vadd.f32 0.0, %v3029
      %3031 = vmatmul.bf16.gmra.mxu0 %v2946
      %v3032 = vpop.f32.mrf.mxu0
      %v3033 = vadd.f32 0.0, %v3032
      %v3034 = vpop.f32.mrf.mxu0
      %v3035 = vadd.f32 0.0, %v3034
      %3036 = vmatmul.bf16.gmra.mxu0 %v2949
      %v3037 = vpop.f32.mrf.mxu0
      %v3038 = vadd.f32 0.0, %v3037
      %v3039 = vpop.f32.mrf.mxu0
      %v3040 = vadd.f32 0.0, %v3039
      %3041 = vmatmul.bf16.gmra.mxu0 %v2952
      %v3042 = vpop.f32.mrf.mxu0
      %v3043 = vadd.f32 0.0, %v3042
      %v3044 = vpop.f32.mrf.mxu0
      %v3045 = vadd.f32 0.0, %v3044
      %3046 = vmatmul.bf16.gmra.mxu0 %v2955
      %v3047 = vpop.f32.mrf.mxu0
      %v3048 = vadd.f32 0.0, %v3047
      %v3049 = vpop.f32.mrf.mxu0
      %v3050 = vadd.f32 0.0, %v3049
      %3051 = vmatmul.bf16.gmra.mxu0 %v2958
      %v3052 = vpop.f32.mrf.mxu0
      %v3053 = vadd.f32 0.0, %v3052
      %v3054 = vpop.f32.mrf.mxu0
      %v3055 = vadd.f32 0.0, %v3054
      %3056 = vmatmul.bf16.gmra.mxu0 %v2961
      %v3057 = vpop.f32.mrf.mxu0
      %v3058 = vadd.f32 0.0, %v3057
      %v3059 = vpop.f32.mrf.mxu0
      %v3060 = vadd.f32 0.0, %v3059
      %3061 = vmatmul.bf16.gmra.mxu0 %v2964
      %v3062 = vpop.f32.mrf.mxu0
      %v3063 = vadd.f32 0.0, %v3062
      %v3064 = vpop.f32.mrf.mxu0
      %v3065 = vadd.f32 0.0, %v3064
      %3066 = vmatmul.bf16.gmra.mxu0 %v2967
      %v3067 = vpop.f32.mrf.mxu0
      %v3068 = vadd.f32 0.0, %v3067
      %v3069 = vpop.f32.mrf.mxu0
      %v3070 = vadd.f32 0.0, %v3069
      %3071 = vmatmul.bf16.gmra.mxu0 %v2970
      %v3072 = vpop.f32.mrf.mxu0
      %v3073 = vadd.f32 0.0, %v3072
      %v3074 = vpop.f32.mrf.mxu0
      %v3075 = vadd.f32 0.0, %v3074
      %3076 = vmatmul.bf16.gmra.mxu0 %v2973
      %v3077 = vpop.f32.mrf.mxu0
      %v3078 = vadd.f32 0.0, %v3077
      %v3079 = vpop.f32.mrf.mxu0
      %v3080 = vadd.f32 0.0, %v3079
      %3081 = vmatmul.bf16.gmra.mxu0 %v2976
      %v3082 = vpop.f32.mrf.mxu0
      %v3083 = vadd.f32 0.0, %v3082
      %v3084 = vpop.f32.mrf.mxu0
      %v3085 = vadd.f32 0.0, %v3084
      %3086 = vmatmul.bf16.gmra.mxu0 %v2979
      %v3087 = vpop.f32.mrf.mxu0
      %v3088 = vadd.f32 0.0, %v3087
      %v3089 = vpop.f32.mrf.mxu0
      %v3090 = vadd.f32 0.0, %v3089
      %3091 = vmatmul.bf16.gmra.mxu0 %v2982
      %v3092 = vpop.f32.mrf.mxu0
      %v3093 = vadd.f32 0.0, %v3092
      %v3094 = vpop.f32.mrf.mxu0
      %v3095 = vadd.f32 0.0, %v3094
      %3096 = vmatmul.bf16.gmra.mxu0 %v2985
      %v3097 = vpop.f32.mrf.mxu0
      %v3098 = vadd.f32 0.0, %v3097
      %v3099 = vpop.f32.mrf.mxu0
      %v3100 = vadd.f32 0.0, %v3099
      %3101 = vmatmul.bf16.gmra.mxu0 %v2988
      %v3102 = vpop.f32.mrf.mxu0
      %v3103 = vadd.f32 0.0, %v3102
      %v3104 = vpop.f32.mrf.mxu0
      %3105 = vdwg.mxu0
      %v3106 = vadd.f32 %v2549, %v3003
      %v3107 = vadd.f32 %v2550, %v3005
      %v3108 = vadd.f32 %v2551, %v3008
      %v3109 = vadd.f32 %v2552, %v3010
      %v3110 = vadd.f32 %v2553, %v3013
      %v3111 = vadd.f32 %v2554, %v3015
      %v3112 = vadd.f32 %v2555, %v3018
      %v3113 = vadd.f32 %v2556, %v3020
      %v3114 = vadd.f32 %v2557, %v3023
      %v3115 = vadd.f32 %v2558, %v3025
      %v3116 = vadd.f32 %v2559, %v3028
      %v3117 = vadd.f32 %v2560, %v3030
      %v3118 = vadd.f32 %v2561, %v3033
      %v3119 = vadd.f32 %v2562, %v3035
      %v3120 = vadd.f32 %v2563, %v3038
      %v3121 = vadd.f32 %v2564, %v3040
      %v3122 = vadd.f32 %v2565, %v3043
      %v3123 = vadd.f32 %v2566, %v3045
      %v3124 = vadd.f32 %v2567, %v3048
      %v3125 = vadd.f32 %v2568, %v3050
      %v3126 = vadd.f32 %v2569, %v3053
      %v3127 = vadd.f32 %v2570, %v3055
      %v3128 = vadd.f32 %v2571, %v3058
      %v3129 = vadd.f32 %v2572, %v3060
      %v3130 = vadd.f32 %v2573, %v3063
      %v3131 = vadd.f32 %v2574, %v3065
      %v3132 = vadd.f32 %v2575, %v3068
      %v3133 = vadd.f32 %v2576, %v3070
      %v3134 = vadd.f32 %v2577, %v3073
      %v3135 = vadd.f32 %v2578, %v3075
      %v3136 = vadd.f32 %v2579, %v3078
      %v3137 = vadd.f32 %v2580, %v3080
      %v3138 = vadd.f32 %v2581, %v3083
      %v3139 = vadd.f32 %v2582, %v3085
      %v3140 = vadd.f32 %v2583, %v3088
      %v3141 = vadd.f32 %v2584, %v3090
      %v3142 = vadd.f32 %v2585, %v3093
      %v3143 = vadd.f32 %v2586, %v3095
      %v3144 = vadd.f32 %v2587, %v3098
      %v3145 = vadd.f32 %v2588, %v3100
      %v3146 = vadd.f32 %v2589, %v3103
      %v3147 = vld [vmem:[%s165 + $0x10] sm:$0x8]
      %v3148 = vld [vmem:[%s1 + $0x20] sm:$0xf]
      %v3150 = vunpack.c.l.b16 %v3147
      %v3151 = vpack.c.b16 %v2676, %v3150
      %vm3152 = vcmask 1044480
      %v3153 = vrot.slane %v3151, 3
      %v3154 = vrot.slane %v2718, 3
      %v3155 = vsel %vm3152, %v3153, %v3154
      %v3156 = vrot.slane %v2719, 3
      %v3157 = vsel %vm3152, %v3154, %v3156
      %v3158 = vrot.slane %v2720, 3
      %v3159 = vsel %vm3152, %v3156, %v3158
      %v3160 = vrot.slane %v2721, 3
      %v3161 = vsel %vm3152, %v3158, %v3160
      %v3162 = vrot.slane %v2722, 3
      %v3163 = vsel %vm3152, %v3160, %v3162
      %v3164 = vrot.slane %v2723, 3
      %v3165 = vsel %vm3152, %v3162, %v3164
      %v3166 = vrot.slane %v2724, 3
      %v3167 = vsel %vm3152, %v3164, %v3166
      %v3168 = vrot.slane %v2725, 3
      %v3169 = vsel %vm3152, %v3166, %v3168
      %v3170 = vrot.slane %v2726, 3
      %v3171 = vsel %vm3152, %v3168, %v3170
      %v3172 = vrot.slane %v2727, 3
      %v3173 = vsel %vm3152, %v3170, %v3172
      %v3174 = vrot.slane %v2728, 3
      %v3175 = vsel %vm3152, %v3172, %v3174
      %v3176 = vrot.slane %v2729, 3
      %v3177 = vsel %vm3152, %v3174, %v3176
      %v3178 = vrot.slane %v2730, 3
      %v3179 = vsel %vm3152, %v3176, %v3178
      %v3180 = vrot.slane %v2731, 3
      %v3181 = vsel %vm3152, %v3178, %v3180
      %v3182 = vrot.slane %v2732, 3
      %v3183 = vsel %vm3152, %v3180, %v3182
      %v3184 = vrot.slane %v2733, 3
      %v3185 = vsel %vm3152, %v3182, %v3184
      %v3186 = vrot.slane %v2734, 3
      %v3187 = vsel %vm3152, %v3184, %v3186
      %v3188 = vrot.slane %v2735, 3
      %v3189 = vsel %vm3152, %v3186, %v3188
      %v3190 = vrot.slane %v2736, 3
      %v3191 = vsel %vm3152, %v3188, %v3190
      %v3192 = vrot.slane %v2737, 3
      %v3193 = vsel %vm3152, %v3190, %v3192
      %v3195 = vsel %vm487, %v3155, 0
      %v3198 = vsel %vm487, %v3157, 0
      %v3201 = vsel %vm487, %v3159, 0
      %v3204 = vsel %vm487, %v3161, 0
      %v3207 = vsel %vm487, %v3163, 0
      %v3210 = vsel %vm487, %v3165, 0
      %v3213 = vsel %vm487, %v3167, 0
      %v3216 = vsel %vm487, %v3169, 0
      %v3219 = vsel %vm487, %v3171, 0
      %v3222 = vsel %vm487, %v3173, 0
      %v3225 = vsel %vm487, %v3175, 0
      %v3228 = vsel %vm487, %v3177, 0
      %v3231 = vsel %vm487, %v3179, 0
      %v3234 = vsel %vm487, %v3181, 0
      %v3237 = vsel %vm487, %v3183, 0
      %v3240 = vsel %vm487, %v3185, 0
      %v3243 = vsel %vm487, %v3187, 0
      %v3246 = vsel %vm487, %v3189, 0
      %v3249 = vsel %vm487, %v3191, 0
      %v3252 = vsel %vm487, %v3193, 0
      %v3255 = vsel %vm487, %v3192, 0
      %v3258 = vsel %vm551, %v3148, 0
      %3260 = vmatpush.bf16.msra.mxu0 0
      %3261 = vmatpush.bf16.msra.mxu0 0
      %3262 = vmatpush.bf16.msra.mxu0 0
      %3263 = vmatpush.bf16.msra.mxu0 0
      %3264 = vmatpush.bf16.msra.mxu0 0
      %3265 = vmatpush.bf16.msra.mxu0 0
      %3266 = vmatpush.bf16.msra.mxu0 0
      %3267 = vmatpush.bf16.msra.mxu0 %v3258
      %3268 = vmatmul.bf16.gmra.mxu0 %v3195
      %v3269 = vpop.f32.mrf.mxu0
      %v3270 = vadd.f32 0.0, %v3269
      %v3271 = vpop.f32.mrf.mxu0
      %v3272 = vadd.f32 0.0, %v3271
      %3273 = vmatmul.bf16.gmra.mxu0 %v3198
      %v3274 = vpop.f32.mrf.mxu0
      %v3275 = vadd.f32 0.0, %v3274
      %v3276 = vpop.f32.mrf.mxu0
      %v3277 = vadd.f32 0.0, %v3276
      %3278 = vmatmul.bf16.gmra.mxu0 %v3201
      %v3279 = vpop.f32.mrf.mxu0
      %v3280 = vadd.f32 0.0, %v3279
      %v3281 = vpop.f32.mrf.mxu0
      %v3282 = vadd.f32 0.0, %v3281
      %3283 = vmatmul.bf16.gmra.mxu0 %v3204
      %v3284 = vpop.f32.mrf.mxu0
      %v3285 = vadd.f32 0.0, %v3284
      %v3286 = vpop.f32.mrf.mxu0
      %v3287 = vadd.f32 0.0, %v3286
      %3288 = vmatmul.bf16.gmra.mxu0 %v3207
      %v3289 = vpop.f32.mrf.mxu0
      %v3290 = vadd.f32 0.0, %v3289
      %v3291 = vpop.f32.mrf.mxu0
      %v3292 = vadd.f32 0.0, %v3291
      %3293 = vmatmul.bf16.gmra.mxu0 %v3210
      %v3294 = vpop.f32.mrf.mxu0
      %v3295 = vadd.f32 0.0, %v3294
      %v3296 = vpop.f32.mrf.mxu0
      %v3297 = vadd.f32 0.0, %v3296
      %3298 = vmatmul.bf16.gmra.mxu0 %v3213
      %v3299 = vpop.f32.mrf.mxu0
      %v3300 = vadd.f32 0.0, %v3299
      %v3301 = vpop.f32.mrf.mxu0
      %v3302 = vadd.f32 0.0, %v3301
      %3303 = vmatmul.bf16.gmra.mxu0 %v3216
      %v3304 = vpop.f32.mrf.mxu0
      %v3305 = vadd.f32 0.0, %v3304
      %v3306 = vpop.f32.mrf.mxu0
      %v3307 = vadd.f32 0.0, %v3306
      %3308 = vmatmul.bf16.gmra.mxu0 %v3219
      %v3309 = vpop.f32.mrf.mxu0
      %v3310 = vadd.f32 0.0, %v3309
      %v3311 = vpop.f32.mrf.mxu0
      %v3312 = vadd.f32 0.0, %v3311
      %3313 = vmatmul.bf16.gmra.mxu0 %v3222
      %v3314 = vpop.f32.mrf.mxu0
      %v3315 = vadd.f32 0.0, %v3314
      %v3316 = vpop.f32.mrf.mxu0
      %v3317 = vadd.f32 0.0, %v3316
      %3318 = vmatmul.bf16.gmra.mxu0 %v3225
      %v3319 = vpop.f32.mrf.mxu0
      %v3320 = vadd.f32 0.0, %v3319
      %v3321 = vpop.f32.mrf.mxu0
      %v3322 = vadd.f32 0.0, %v3321
      %3323 = vmatmul.bf16.gmra.mxu0 %v3228
      %v3324 = vpop.f32.mrf.mxu0
      %v3325 = vadd.f32 0.0, %v3324
      %v3326 = vpop.f32.mrf.mxu0
      %v3327 = vadd.f32 0.0, %v3326
      %3328 = vmatmul.bf16.gmra.mxu0 %v3231
      %v3329 = vpop.f32.mrf.mxu0
      %v3330 = vadd.f32 0.0, %v3329
      %v3331 = vpop.f32.mrf.mxu0
      %v3332 = vadd.f32 0.0, %v3331
      %3333 = vmatmul.bf16.gmra.mxu0 %v3234
      %v3334 = vpop.f32.mrf.mxu0
      %v3335 = vadd.f32 0.0, %v3334
      %v3336 = vpop.f32.mrf.mxu0
      %v3337 = vadd.f32 0.0, %v3336
      %3338 = vmatmul.bf16.gmra.mxu0 %v3237
      %v3339 = vpop.f32.mrf.mxu0
      %v3340 = vadd.f32 0.0, %v3339
      %v3341 = vpop.f32.mrf.mxu0
      %v3342 = vadd.f32 0.0, %v3341
      %3343 = vmatmul.bf16.gmra.mxu0 %v3240
      %v3344 = vpop.f32.mrf.mxu0
      %v3345 = vadd.f32 0.0, %v3344
      %v3346 = vpop.f32.mrf.mxu0
      %v3347 = vadd.f32 0.0, %v3346
      %3348 = vmatmul.bf16.gmra.mxu0 %v3243
      %v3349 = vpop.f32.mrf.mxu0
      %v3350 = vadd.f32 0.0, %v3349
      %v3351 = vpop.f32.mrf.mxu0
      %v3352 = vadd.f32 0.0, %v3351
      %3353 = vmatmul.bf16.gmra.mxu0 %v3246
      %v3354 = vpop.f32.mrf.mxu0
      %v3355 = vadd.f32 0.0, %v3354
      %v3356 = vpop.f32.mrf.mxu0
      %v3357 = vadd.f32 0.0, %v3356
      %3358 = vmatmul.bf16.gmra.mxu0 %v3249
      %v3359 = vpop.f32.mrf.mxu0
      %v3360 = vadd.f32 0.0, %v3359
      %v3361 = vpop.f32.mrf.mxu0
      %v3362 = vadd.f32 0.0, %v3361
      %3363 = vmatmul.bf16.gmra.mxu0 %v3252
      %v3364 = vpop.f32.mrf.mxu0
      %v3365 = vadd.f32 0.0, %v3364
      %v3366 = vpop.f32.mrf.mxu0
      %v3367 = vadd.f32 0.0, %v3366
      %3368 = vmatmul.bf16.gmra.mxu0 %v3255
      %v3369 = vpop.f32.mrf.mxu0
      %v3370 = vadd.f32 0.0, %v3369
      %v3371 = vpop.f32.mrf.mxu0
      %3372 = vdwg.mxu0
      %v3373 = vadd.f32 %v3106, %v3270
      %v3374 = vadd.f32 %v3107, %v3272
      %v3375 = vadd.f32 %v3108, %v3275
      %v3376 = vadd.f32 %v3109, %v3277
      %v3377 = vadd.f32 %v3110, %v3280
      %v3378 = vadd.f32 %v3111, %v3282
      %v3379 = vadd.f32 %v3112, %v3285
      %v3380 = vadd.f32 %v3113, %v3287
      %v3381 = vadd.f32 %v3114, %v3290
      %v3382 = vadd.f32 %v3115, %v3292
      %v3383 = vadd.f32 %v3116, %v3295
      %v3384 = vadd.f32 %v3117, %v3297
      %v3385 = vadd.f32 %v3118, %v3300
      %v3386 = vadd.f32 %v3119, %v3302
      %v3387 = vadd.f32 %v3120, %v3305
      %v3388 = vadd.f32 %v3121, %v3307
      %v3389 = vadd.f32 %v3122, %v3310
      %v3390 = vadd.f32 %v3123, %v3312
      %v3391 = vadd.f32 %v3124, %v3315
      %v3392 = vadd.f32 %v3125, %v3317
      %v3393 = vadd.f32 %v3126, %v3320
      %v3394 = vadd.f32 %v3127, %v3322
      %v3395 = vadd.f32 %v3128, %v3325
      %v3396 = vadd.f32 %v3129, %v3327
      %v3397 = vadd.f32 %v3130, %v3330
      %v3398 = vadd.f32 %v3131, %v3332
      %v3399 = vadd.f32 %v3132, %v3335
      %v3400 = vadd.f32 %v3133, %v3337
      %v3401 = vadd.f32 %v3134, %v3340
      %v3402 = vadd.f32 %v3135, %v3342
      %v3403 = vadd.f32 %v3136, %v3345
      %v3404 = vadd.f32 %v3137, %v3347
      %v3405 = vadd.f32 %v3138, %v3350
      %v3406 = vadd.f32 %v3139, %v3352
      %v3407 = vadd.f32 %v3140, %v3355
      %v3408 = vadd.f32 %v3141, %v3357
      %v3409 = vadd.f32 %v3142, %v3360
      %v3410 = vadd.f32 %v3143, %v3362
      %v3411 = vadd.f32 %v3144, %v3365
      %v3412 = vadd.f32 %v3145, %v3367
      %v3413 = vadd.f32 %v3146, %v3370
      %v3414 = vld [vmem:[%s2] sm:$0x1]
      %v3416 = vperm.slane %v3414, 0
      %v3418 = vadd.f32 %v3373, %v3416
      %v3419 = vadd.f32 %v3374, %v3416
      %v3420 = vadd.f32 %v3375, %v3416
      %v3421 = vadd.f32 %v3376, %v3416
      %v3422 = vadd.f32 %v3377, %v3416
      %v3423 = vadd.f32 %v3378, %v3416
      %v3424 = vadd.f32 %v3379, %v3416
      %v3425 = vadd.f32 %v3380, %v3416
      %v3426 = vadd.f32 %v3381, %v3416
      %v3427 = vadd.f32 %v3382, %v3416
      %v3428 = vadd.f32 %v3383, %v3416
      %v3429 = vadd.f32 %v3384, %v3416
      %v3430 = vadd.f32 %v3385, %v3416
      %v3431 = vadd.f32 %v3386, %v3416
      %v3432 = vadd.f32 %v3387, %v3416
      %v3433 = vadd.f32 %v3388, %v3416
      %v3434 = vadd.f32 %v3389, %v3416
      %v3435 = vadd.f32 %v3390, %v3416
      %v3436 = vadd.f32 %v3391, %v3416
      %v3437 = vadd.f32 %v3392, %v3416
      %v3438 = vadd.f32 %v3393, %v3416
      %v3439 = vadd.f32 %v3394, %v3416
      %v3440 = vadd.f32 %v3395, %v3416
      %v3441 = vadd.f32 %v3396, %v3416
      %v3442 = vadd.f32 %v3397, %v3416
      %v3443 = vadd.f32 %v3398, %v3416
      %v3444 = vadd.f32 %v3399, %v3416
      %v3445 = vadd.f32 %v3400, %v3416
      %v3446 = vadd.f32 %v3401, %v3416
      %v3447 = vadd.f32 %v3402, %v3416
      %v3448 = vadd.f32 %v3403, %v3416
      %v3449 = vadd.f32 %v3404, %v3416
      %v3450 = vadd.f32 %v3405, %v3416
      %v3451 = vadd.f32 %v3406, %v3416
      %v3452 = vadd.f32 %v3407, %v3416
      %v3453 = vadd.f32 %v3408, %v3416
      %v3454 = vadd.f32 %v3409, %v3416
      %v3455 = vadd.f32 %v3410, %v3416
      %v3456 = vadd.f32 %v3411, %v3416
      %v3457 = vadd.f32 %v3412, %v3416
      %v3458 = vadd.f32 %v3413, %v3416
      %v3459 = vmax.f32 %v3418, 0.0
      %v3460 = vmax.f32 %v3419, 0.0
      %v3461 = vmax.f32 %v3420, 0.0
      %v3462 = vmax.f32 %v3421, 0.0
      %v3463 = vmax.f32 %v3422, 0.0
      %v3464 = vmax.f32 %v3423, 0.0
      %v3465 = vmax.f32 %v3424, 0.0
      %v3466 = vmax.f32 %v3425, 0.0
      %v3467 = vmax.f32 %v3426, 0.0
      %v3468 = vmax.f32 %v3427, 0.0
      %v3469 = vmax.f32 %v3428, 0.0
      %v3470 = vmax.f32 %v3429, 0.0
      %v3471 = vmax.f32 %v3430, 0.0
      %v3472 = vmax.f32 %v3431, 0.0
      %v3473 = vmax.f32 %v3432, 0.0
      %v3474 = vmax.f32 %v3433, 0.0
      %v3475 = vmax.f32 %v3434, 0.0
      %v3476 = vmax.f32 %v3435, 0.0
      %v3477 = vmax.f32 %v3436, 0.0
      %v3478 = vmax.f32 %v3437, 0.0
      %v3479 = vmax.f32 %v3438, 0.0
      %v3480 = vmax.f32 %v3439, 0.0
      %v3481 = vmax.f32 %v3440, 0.0
      %v3482 = vmax.f32 %v3441, 0.0
      %v3483 = vmax.f32 %v3442, 0.0
      %v3484 = vmax.f32 %v3443, 0.0
      %v3485 = vmax.f32 %v3444, 0.0
      %v3486 = vmax.f32 %v3445, 0.0
      %v3487 = vmax.f32 %v3446, 0.0
      %v3488 = vmax.f32 %v3447, 0.0
      %v3489 = vmax.f32 %v3448, 0.0
      %v3490 = vmax.f32 %v3449, 0.0
      %v3491 = vmax.f32 %v3450, 0.0
      %v3492 = vmax.f32 %v3451, 0.0
      %v3493 = vmax.f32 %v3452, 0.0
      %v3494 = vmax.f32 %v3453, 0.0
      %v3495 = vmax.f32 %v3454, 0.0
      %v3496 = vmax.f32 %v3455, 0.0
      %v3497 = vmax.f32 %v3456, 0.0
      %v3498 = vmax.f32 %v3457, 0.0
      %v3499 = vmax.f32 %v3458, 0.0
      %v3500 = vpack.c.bf16 %v3459, %v3459
      %v3501 = vpack.c.bf16 %v3460, %v3460
      %v3502 = vpack.c.bf16 %v3461, %v3461
      %v3503 = vpack.c.bf16 %v3462, %v3462
      %v3504 = vpack.c.bf16 %v3463, %v3463
      %v3505 = vpack.c.bf16 %v3464, %v3464
      %v3506 = vpack.c.bf16 %v3465, %v3465
      %v3507 = vpack.c.bf16 %v3466, %v3466
      %v3508 = vpack.c.bf16 %v3467, %v3467
      %v3509 = vpack.c.bf16 %v3468, %v3468
      %v3510 = vpack.c.bf16 %v3469, %v3469
      %v3511 = vpack.c.bf16 %v3470, %v3470
      %v3512 = vpack.c.bf16 %v3471, %v3471
      %v3513 = vpack.c.bf16 %v3472, %v3472
      %v3514 = vpack.c.bf16 %v3473, %v3473
      %v3515 = vpack.c.bf16 %v3474, %v3474
      %v3516 = vpack.c.bf16 %v3475, %v3475
      %v3517 = vpack.c.bf16 %v3476, %v3476
      %v3518 = vpack.c.bf16 %v3477, %v3477
      %v3519 = vpack.c.bf16 %v3478, %v3478
      %v3520 = vpack.c.bf16 %v3479, %v3479
      %v3521 = vpack.c.bf16 %v3480, %v3480
      %v3522 = vpack.c.bf16 %v3481, %v3481
      %v3523 = vpack.c.bf16 %v3482, %v3482
      %v3524 = vpack.c.bf16 %v3483, %v3483
      %v3525 = vpack.c.bf16 %v3484, %v3484
      %v3526 = vpack.c.bf16 %v3485, %v3485
      %v3527 = vpack.c.bf16 %v3486, %v3486
      %v3528 = vpack.c.bf16 %v3487, %v3487
      %v3529 = vpack.c.bf16 %v3488, %v3488
      %v3530 = vpack.c.bf16 %v3489, %v3489
      %v3531 = vpack.c.bf16 %v3490, %v3490
      %v3532 = vpack.c.bf16 %v3491, %v3491
      %v3533 = vpack.c.bf16 %v3492, %v3492
      %v3534 = vpack.c.bf16 %v3493, %v3493
      %v3535 = vpack.c.bf16 %v3494, %v3494
      %v3536 = vpack.c.bf16 %v3495, %v3495
      %v3537 = vpack.c.bf16 %v3496, %v3496
      %v3538 = vpack.c.bf16 %v3497, %v3497
      %v3539 = vpack.c.bf16 %v3498, %v3498
      %v3540 = vpack.c.bf16 %v3499, %v3499
      %vm3541 = vcmask 125952
      %3542 = vst.msk [vmem:[%s170] sm:$0xf] %vm3541, %v3500
      %3543 = vst.msk [vmem:[%s170 + $0x4] sm:$0xf] %vm3541, %v3501
      %3544 = vst.msk [vmem:[%s170 + $0x8] sm:$0xf] %vm3541, %v3502
      %3545 = vst.msk [vmem:[%s170 + $0xc] sm:$0xf] %vm3541, %v3503
      %3546 = vst.msk [vmem:[%s170 + $0x10] sm:$0xf] %vm3541, %v3504
      %3547 = vst.msk [vmem:[%s170 + $0x14] sm:$0xf] %vm3541, %v3505
      %3548 = vst.msk [vmem:[%s170 + $0x18] sm:$0xf] %vm3541, %v3506
      %3549 = vst.msk [vmem:[%s170 + $0x1c] sm:$0xf] %vm3541, %v3507
      %3550 = vst.msk [vmem:[%s170 + $0x20] sm:$0xf] %vm3541, %v3508
      %3551 = vst.msk [vmem:[%s170 + $0x24] sm:$0xf] %vm3541, %v3509
      %3552 = vst.msk [vmem:[%s170 + $0x28] sm:$0xf] %vm3541, %v3510
      %3553 = vst.msk [vmem:[%s170 + $0x2c] sm:$0xf] %vm3541, %v3511
      %3554 = vst.msk [vmem:[%s170 + $0x30] sm:$0xf] %vm3541, %v3512
      %3555 = vst.msk [vmem:[%s170 + $0x34] sm:$0xf] %vm3541, %v3513
      %3556 = vst.msk [vmem:[%s170 + $0x38] sm:$0xf] %vm3541, %v3514
      %3557 = vst.msk [vmem:[%s170 + $0x3c] sm:$0xf] %vm3541, %v3515
      %3558 = vst.msk [vmem:[%s170 + $0x40] sm:$0xf] %vm3541, %v3516
      %3559 = vst.msk [vmem:[%s170 + $0x44] sm:$0xf] %vm3541, %v3517
      %3560 = vst.msk [vmem:[%s170 + $0x48] sm:$0xf] %vm3541, %v3518
      %3561 = vst.msk [vmem:[%s170 + $0x4c] sm:$0xf] %vm3541, %v3519
      %3562 = vst.msk [vmem:[%s170 + $0x50] sm:$0xf] %vm3541, %v3520
      %3563 = vst.msk [vmem:[%s170 + $0x54] sm:$0xf] %vm3541, %v3521
      %3564 = vst.msk [vmem:[%s170 + $0x58] sm:$0xf] %vm3541, %v3522
      %3565 = vst.msk [vmem:[%s170 + $0x5c] sm:$0xf] %vm3541, %v3523
      %3566 = vst.msk [vmem:[%s170 + $0x60] sm:$0xf] %vm3541, %v3524
      %3567 = vst.msk [vmem:[%s170 + $0x64] sm:$0xf] %vm3541, %v3525
      %3568 = vst.msk [vmem:[%s170 + $0x68] sm:$0xf] %vm3541, %v3526
      %3569 = vst.msk [vmem:[%s170 + $0x6c] sm:$0xf] %vm3541, %v3527
      %3570 = vst.msk [vmem:[%s170 + $0x70] sm:$0xf] %vm3541, %v3528
      %3571 = vst.msk [vmem:[%s170 + $0x74] sm:$0xf] %vm3541, %v3529
      %3572 = vst.msk [vmem:[%s170 + $0x78] sm:$0xf] %vm3541, %v3530
      %3573 = vst.msk [vmem:[%s170 + $0x7c] sm:$0xf] %vm3541, %v3531
      %3574 = vst.msk [vmem:[%s170 + $0x80] sm:$0xf] %vm3541, %v3532
      %3575 = vst.msk [vmem:[%s170 + $0x84] sm:$0xf] %vm3541, %v3533
      %3576 = vst.msk [vmem:[%s170 + $0x88] sm:$0xf] %vm3541, %v3534
      %3577 = vst.msk [vmem:[%s170 + $0x8c] sm:$0xf] %vm3541, %v3535
      %3578 = vst.msk [vmem:[%s170 + $0x90] sm:$0xf] %vm3541, %v3536
      %3579 = vst.msk [vmem:[%s170 + $0x94] sm:$0xf] %vm3541, %v3537
      %3580 = vst.msk [vmem:[%s170 + $0x98] sm:$0xf] %vm3541, %v3538
      %3581 = vst.msk [vmem:[%s170 + $0x9c] sm:$0xf] %vm3541, %v3539
      %vm3582 = vcmask 123904
      %3583 = vst.msk [vmem:[%s170 + $0xa0] sm:$0x3] %vm3582, %v3540
      %p3584 = scmp.lt.s32.totalorder %s14, 1
      %s3585 = scalar_select %p3584, %s14, 1
      %s3586 = smul.addr %s3585, 41
      %s3587 = smul.addr %s3586, 4
      %s3588 = scalar_lea.vmem %s3, %s3587
      // Predicated region
      $region33: #{tpu_custom_call.1} parent=31 // pred_check
        %p3589 = pneg %p100
      $region34: #{tpu_custom_call.1} parent=31 // pred_check_branch
        %3591 = sbr.rel (%p3589) target = $region36
      $region35: #{tpu_custom_call.1} parent=31 // pred_region
        _
      $region36: #{tpu_custom_call.1} parent=31 // pred_fallthru
        _
    $region32: #{tpu_custom_call.1} parent=5 // pred_fallthru
      _
    %p3592 = scmp.le.s32.totalorder 2, %s9
    // Predicated region
    $region37: #{tpu_custom_call.1} parent=5 // pred_check
      %p3593 = pneg %p3592
    $region38: #{tpu_custom_call.1} parent=5 // pred_check_branch
      %3595 = sbr.rel (%p3593) target = $region40
    $region39: #{tpu_custom_call.1} parent=5 // pred_region
      %s3596 = ssub.s32 %s9, 2
      // Predicated region
      $region41: #{tpu_custom_call.1} parent=39 // pred_check
        %p3597 = pneg %p106
      $region42: #{tpu_custom_call.1} parent=39 // pred_check_branch
        %3599 = sbr.rel (%p3597) target = $region44
      $region43: #{tpu_custom_call.1} parent=39 // pred_region
        %p3600 = scmp.lt.s32.totalorder %s15, 1
        %s3601 = scalar_select %p3600, %s15, 1
        %s3602 = smul.addr %s3601, 41
        %s3603 = smul.addr %s3602, 4
        %s3604 = scalar_lea.vmem %s3, %s3603
      $region44: #{tpu_custom_call.1} parent=39 // pred_fallthru
        _
    $region40: #{tpu_custom_call.1} parent=5 // pred_fallthru
      _
  $region6: #{tpu_custom_call.1} parent=0 // loop_footer
    %s13 = sadd.s32 1, %s9
  $region7: #{tpu_custom_call.1} parent=0 // loop_footer_branch
    %8 = sbr.rel target = $region3
  $region8: #{tpu_custom_call.1} parent=0 // loop_exit
    _

</llo_original>
